<compile_context>
chip_gen: v7x
topology: tpu7x:2x2x1
jax: 0.10.0
libtpu: 0.0.40
codegen_flags: <defaults>
</compile_context>

<pallas_src>
import math
import functools

import jax
import jax.numpy as jnp
from jax.experimental import pallas as pl
from jax.experimental.pallas import tpu as pltpu

LANE = 128


def _round_up(x, m):
    return ((x + m - 1) // m) * m


def _compute_vmem_limit():
    """Generation-aware scoped-VMEM limit (~80% of physical; fallback fits every chip)."""
    try:
        cap = int(pltpu.get_tpu_info().vmem_capacity_bytes)
    except Exception:
        cap = 64 * 1024 * 1024
    return max(32 * 1024 * 1024, int(cap * 0.8))


_VMEM_LIMIT = _compute_vmem_limit()


# ----------------------------------------------------------------------------
# Pallas kernel 1: fused pairwise distance + radius test (all scales at once).
#   src: (B, S, 8) query centroids (coords padded 3->8), dst: (B, 8, N) all points.
#   output[r, b, s, n] = n if ||src[b,s]-dst[b,:,n]||^2 <= radius_r^2 else N
#   (exactly the encoding query_ball_point selects on), stored int16 when N < 32768.
# ----------------------------------------------------------------------------
def _make_ball_idx_kernel(radii_sq, TN, N, out_dtype):
    def kernel(src_ref, dst_ref, idx_ref):
        src = src_ref[0]                                    # (S, 8)  f32
        dst = dst_ref[0]                                    # (8, TN) f32
        # reference square_distance expansion; cross term on the otherwise-idle MXU
        cross = jnp.dot(src, dst, preferred_element_type=jnp.float32)   # (S, TN)
        s2 = jnp.sum(src * src, axis=1, keepdims=True)                  # (S, 1)
        d2 = jnp.sum(dst * dst, axis=0, keepdims=True)                  # (1, TN)
        d = s2 + d2 - 2.0 * cross
        n0 = pl.program_id(1) * TN
        base = n0 + jax.lax.broadcasted_iota(jnp.int32, d.shape, 1)
        for r_i, r2 in enumerate(radii_sq):
            idx_ref[r_i, 0] = jnp.where(d > r2, N, base).astype(out_dtype)
    return kernel


def _plan_n_tile(N, target=512):
    if N <= target:
        return N, 1
    for tn in range(target, 0, -LANE):                      # lane-aligned tiles of N
        if N % tn == 0:
            return tn, N // tn
    return N, 1


def pallas_ball_query_idx(new_xyz, xyz, radius_list):
    """new_xyz: (B, S, 3) f32, xyz: (B, 3, N) f32 -> (n_rad, B, S, N) int16/int32 indices."""
    B, S, _ = new_xyz.shape
    N = xyz.shape[2]
    n_rad = len(radius_list)
    radii_sq = [float(r) ** 2 for r in radius_list]
    out_dtype = jnp.int16 if N < 32767 else jnp.int32
    # pad the coordinate axis 3 -> 8 so the cross term is an aligned MXU matmul
    src8 = jnp.pad(new_xyz.astype(jnp.float32), ((0, 0), (0, 0), (0, 5)))
    dst8 = jnp.pad(xyz.astype(jnp.float32), ((0, 0), (0, 5), (0, 0)))
    TN, ntn = _plan_n_tile(N)
    return pl.pallas_call(
        _make_ball_idx_kernel(radii_sq, TN, N, out_dtype),
        grid=(B, ntn),
        in_specs=[
            pl.BlockSpec((1, S, 8), lambda b, n: (b, 0, 0)),
            pl.BlockSpec((1, 8, TN), lambda b, n: (b, 0, n)),
        ],
        out_specs=pl.BlockSpec((n_rad, 1, S, TN), lambda b, n: (0, b, 0, n)),
        out_shape=jax.ShapeDtypeStruct((n_rad, B, S, N), out_dtype),
        compiler_params=pltpu.CompilerParams(
            dimension_semantics=("parallel", "parallel"),
            vmem_limit_bytes=_VMEM_LIMIT),
    )(src8, dst8)


# ----------------------------------------------------------------------------
# Pallas kernel 2: one MLP layer, row-tiled.
#   Per tile: [folded BN scale/shift + ReLU] -> bf16 1x1-conv matmul (f32 acc) -> + bias,
#   write y in bf16 (lane-dense, 128-multiple channels) and accumulate per-channel
#   (8, Cout) sum / sum-of-squares sublane partials into a resident VMEM accumulator.
# ----------------------------------------------------------------------------
def _make_mlp_layer_kernel(apply_bn, TRK, T, rk_real):
    sublane_ok = (TRK % 8 == 0)

    def kernel(*refs):
        if apply_bn:
            (x_ref, scale_ref, shift_ref, w_ref, b_ref,
             y_ref, sum_ref, sumsq_ref) = refs
        else:
            x_ref, w_ref, b_ref, y_ref, sum_ref, sumsq_ref = refs

        x = x_ref[...].astype(jnp.float32)                      # (TRK, Cin)
        if apply_bn:
            # previous layer's BatchNorm2d folded into scale/shift, then ReLU (2 VPU ops)
            x = jnp.maximum(x * scale_ref[...] + shift_ref[...], 0.0)
        # 1x1 conv == matmul over channels; bf16 operands, f32 accumulation on the MXU.
        y = jnp.dot(x.astype(jnp.bfloat16), w_ref[...],
                    preferred_element_type=jnp.float32) + b_ref[...]
        y_ref[...] = y.astype(jnp.bfloat16)                     # bf16 lane-dense store

        @pl.when(pl.program_id(1) == 0)
        def _init():
            sum_ref[...] = jnp.zeros_like(sum_ref)
            sumsq_ref[...] = jnp.zeros_like(sumsq_ref)

        if rk_real is not None:
            # zero the zero-padded rows so they don't pollute the BN batch statistics
            tile = pl.program_id(0) * T + pl.program_id(1)
            rows = tile * TRK + jax.lax.broadcasted_iota(jnp.int32, (TRK, 1), 0)
            ym = jnp.where(rows < rk_real, y, 0.0)
        else:
            ym = y
        cout = y.shape[1]
        if sublane_ok:
            # (8, Cout) sublane partials: pure vreg adds, unmasked accumulator update
            sum_ref[0] += jnp.sum(ym.reshape(TRK // 8, 8, cout), axis=0)
            sumsq_ref[0] += jnp.sum((ym * ym).reshape(TRK // 8, 8, cout), axis=0)
        else:
            sum_ref[0, 0:1, :] += jnp.sum(ym, axis=0, keepdims=True)
            sumsq_ref[0, 0:1, :] += jnp.sum(ym * ym, axis=0, keepdims=True)

    return kernel


# ----------------------------------------------------------------------------
# Pallas kernel 3: final folded BN + ReLU + max over the K neighbors.
# ----------------------------------------------------------------------------
def _bn_relu_max_kernel(x_ref, scale_ref, shift_ref, out_ref):
    x = x_ref[...].astype(jnp.float32)                          # (TR, K, C)
    x = jnp.maximum(x * scale_ref[...] + shift_ref[...], 0.0)
    out_ref[...] = jnp.max(x, axis=1)                           # max over K, lane-dense out


def _plan_tiles(R, K, target_rows=8192):
    """Pick TR ((b,s)-groups per tile) so TR*K ~ target rows; force an even tile count
    (padding rows if needed) so both v7x TensorCores always get work."""
    per = max(8, target_rows // max(K, 1))
    if R <= per:
        TR, nt = R, 1
        if R >= 16 and R % 2 == 0 and ((R // 2) * K) % 16 == 0:
            TR, nt = R // 2, 2                               # small case: still split 2 ways
    else:
        nt = -(-R // per)
        if nt % 2 == 1:
            nt += 1                                          # even tile count -> P = 2
        TR = _round_up(-(-R // nt), 16)                      # 16-aligned (bf16 sublane pack)
    R_pad = nt * TR
    P = 2 if nt % 2 == 0 else 1
    T = nt // P
    return TR, nt, R_pad, P, T


def _mlp_layer_call(x, bn_prev, W, b, TRK, P, T, rk_real):
    RKp, Cin = x.shape
    Cout = W.shape[1]
    apply_bn = bn_prev is not None

    row_map = lambda p, t: (p * T + t, 0)
    const_map = lambda p, t: (0, 0)
    acc_map = lambda p, t: (p, 0, 0)

    in_specs = [pl.BlockSpec((TRK, Cin), row_map)]
    args = [x]
    if apply_bn:
        for a in bn_prev:                                    # scale, shift
            in_specs.append(pl.BlockSpec((1, Cin), const_map))
            args.append(a)
    in_specs += [pl.BlockSpec((Cin, Cout), const_map),
                 pl.BlockSpec((1, Cout), const_map)]
    args += [W, b]

    out_shape = (jax.ShapeDtypeStruct((RKp, Cout), jnp.bfloat16),   # bf16 activations
                 jax.ShapeDtypeStruct((P, 8, Cout), jnp.float32),
                 jax.ShapeDtypeStruct((P, 8, Cout), jnp.float32))
    out_specs = (pl.BlockSpec((TRK, Cout), row_map),
                 pl.BlockSpec((1, 8, Cout), acc_map),
                 pl.BlockSpec((1, 8, Cout), acc_map))

    return pl.pallas_call(
        _make_mlp_layer_kernel(apply_bn, TRK, T, rk_real),
        grid=(P, T),
        in_specs=in_specs,
        out_specs=out_specs,
        out_shape=out_shape,
        compiler_params=pltpu.CompilerParams(
            dimension_semantics=("parallel", "arbitrary"),   # rows split across 2 TCs (v7x)
            vmem_limit_bytes=_VMEM_LIMIT),
    )(*args)


def _bn_relu_max_call(x3, scale, shift, TR, nt):
    Rp, K, C = x3.shape
    return pl.pallas_call(
        _bn_relu_max_kernel,
        grid=(nt,),
        in_specs=[pl.BlockSpec((TR, K, C), lambda t: (t, 0, 0)),
                  pl.BlockSpec((1, C), lambda t: (0, 0)),
                  pl.BlockSpec((1, C), lambda t: (0, 0))],
        out_specs=pl.BlockSpec((TR, C), lambda t: (t, 0)),
        out_shape=jax.ShapeDtypeStruct((Rp, C), jnp.float32),
        compiler_params=pltpu.CompilerParams(
            dimension_semantics=("parallel",),
            vmem_limit_bytes=_VMEM_LIMIT),
    )(x3, scale, shift)


def run_scale_mlp(grouped2d, layers_padded, K):
    """grouped2d: (B*S*K, C0) f32, rows ordered (b, s, k).
    layers_padded: list of (W bf16 (Cin_p, Cout_p), bias, gamma, beta each f32 (1, Cout_p)).
    Returns (B*S, Cout_last_p) f32 (padded channels are exactly zero)."""
    RK_real, C0 = grouped2d.shape
    R = RK_real // K
    TR, nt, R_pad, P, T = _plan_tiles(R, K)
    TRK = TR * K
    RK_pad = R_pad * K

    cin0_pad = layers_padded[0][0].shape[0]                  # layer-0 Cin padded to 8-mult
    pad_rows = RK_pad - RK_real
    pad_ch = cin0_pad - C0
    if pad_rows or pad_ch:
        grouped2d = jnp.pad(grouped2d, ((0, pad_rows), (0, pad_ch)))
    need_mask = pad_rows > 0

    count = float(RK_real)
    eps = 1e-5                                               # BatchNorm2d default

    x = grouped2d
    bn_prev = None                                           # (scale, shift), each (1, Cout)
    for (W, b, gamma, beta) in layers_padded:
        y, ssum, ssq = _mlp_layer_call(
            x, bn_prev, W, b, TRK, P, T,
            rk_real=RK_real if need_mask else None)
        mean = jnp.sum(ssum, axis=(0, 1)) / count            # (Cout,)
        ex2 = jnp.sum(ssq, axis=(0, 1)) / count
        var = jnp.maximum(ex2 - mean * mean, 0.0)            # single-pass stats, clamp
        invstd = jax.lax.rsqrt(var + eps)
        scale = (gamma[0] * invstd)[None, :]                 # fold BN into scale/shift
        shift = (beta[0] - mean * gamma[0] * invstd)[None, :]
        bn_prev = (scale, shift)
        x = y                                                # bf16 inter-layer activations
    C_last = x.shape[1]
    out = _bn_relu_max_call(x.reshape(R_pad, K, C_last), bn_prev[0], bn_prev[1], TR, nt)
    return out[:R]


# ----------------------------------------------------------------------------
# Plain-JAX glue: FPS, ball-query top-K selection, gathers.
# ----------------------------------------------------------------------------
def index_points(points, idx):
    """points: (B, N, C), idx: (B, ...) int -> (B, ..., C)."""
    return jax.vmap(lambda p, i: p[i])(points, idx)


def farthest_point_sample(xyz, npoint):
    """xyz: (B, N, 3) -> (B, npoint) int32 indices."""
    B, N, _ = xyz.shape
    # TODO(synk): torch seeds `farthest` with randint; index 0 kept for determinism.
    def body(i, state):
        centroids, distance, farthest = state
        centroids = centroids.at[:, i].set(farthest)
        centroid = jax.vmap(lambda p, f: p[f])(xyz, farthest)[:, None, :]  # (B, 1, 3)
        dist = jnp.sum((xyz - centroid) ** 2, axis=-1)                     # (B, N)
        distance = jnp.minimum(distance, dist)
        farthest = jnp.argmax(distance, axis=-1).astype(jnp.int32)
        return centroids, distance, farthest

    centroids = jnp.zeros((B, npoint), jnp.int32)
    distance = jnp.full((B, N), 1e10, jnp.float32)
    farthest = jnp.zeros((B,), jnp.int32)
    centroids, _, _ = jax.lax.fori_loop(0, npoint, body,
                                        (centroids, distance, farthest))
    return centroids


def finish_ball_query(masked_idx, nsample, N):
    """masked_idx: (B, S, N) int with out-of-radius entries == N (from the Pallas kernel)."""
    # TODO(synk): partial selection uses lax.top_k in XLA; no clean Pallas top-k primitive.
    neg_top, _ = jax.lax.top_k(-masked_idx.astype(jnp.int32), nsample)
    group_idx = -neg_top                                     # nsample smallest idx, ascending
    group_first = group_idx[:, :, :1]
    return jnp.where(group_idx == N, group_first, group_idx)


# ----------------------------------------------------------------------------
# Parameters: init (mirrors Conv2d(1x1) + BatchNorm2d) + lane padding for kernels.
# ----------------------------------------------------------------------------
def init_params(key, in_channel, mlp_list):
    params = []
    for mlp in mlp_list:
        layers = []
        last = in_channel + 3
        for out_c in mlp:
            key, k1, k2, k3, k4 = jax.random.split(key, 5)
            W = jax.random.normal(k1, (last, out_c), jnp.float32) / math.sqrt(last)
            b = 0.1 * jax.random.normal(k2, (out_c,), jnp.float32)
            gamma = 1.0 + 0.1 * jax.random.normal(k3, (out_c,), jnp.float32)
            beta = 0.1 * jax.random.normal(k4, (out_c,), jnp.float32)
            layers.append((W, b, gamma, beta))
            last = out_c
        params.append(layers)
    return params


def pad_params_for_kernel(params, in_channel):
    """Zero-pad layer-0 input channels to a multiple of 8 and all output channels to
    multiples of 128 lanes (weights in bf16).  Padded channels stay exactly zero through
    conv/BN/ReLU/max; sliced off after."""
    padded = []
    for layers in params:
        cin_real = in_channel + 3
        cin_pad = _round_up(cin_real, 8)
        plist = []
        for (W, b, g, be) in layers:
            cout_real = W.shape[1]
            cout_pad = _round_up(cout_real, LANE)
            Wp = jnp.zeros((cin_pad, cout_pad), jnp.float32)
            Wp = Wp.at[:cin_real, :cout_real].set(W).astype(jnp.bfloat16)
            bp = jnp.zeros((1, cout_pad), jnp.float32).at[0, :cout_real].set(b)
            gp = jnp.zeros((1, cout_pad), jnp.float32).at[0, :cout_real].set(g)
            bep = jnp.zeros((1, cout_pad), jnp.float32).at[0, :cout_real].set(be)
            plist.append((Wp, bp, gp, bep))
            cin_real, cin_pad = cout_real, cout_pad
        padded.append(plist)
    return padded


# ----------------------------------------------------------------------------
# Forward pass (matches PointNetSetAbstractionMsg.forward, training-mode BN).
# ----------------------------------------------------------------------------
def pointnet_sa_msg_forward(xyz, points, params_padded, npoint,
                            radius_list, nsample_list, out_channels):
    """xyz: (B, 3, N), points: (B, D, N) or None
    -> new_xyz (B, 3, S), new_points_concat (B, sum(out_channels), S)."""
    B, _, N = xyz.shape
    S = npoint
    xyz_t = jnp.transpose(xyz, (0, 2, 1))                        # (B, N, 3) for FPS/gather
    points_t = None if points is None else jnp.transpose(points, (0, 2, 1))

    fps_idx = farthest_point_sample(xyz_t, S)                    # (B, S)
    new_xyz = index_points(xyz_t, fps_idx)                       # (B, S, 3)

    # fused distance + radius masks for every scale, lane-dense over N       [Pallas]
    ball_idx = pallas_ball_query_idx(new_xyz, xyz, radius_list)  # (n_rad, B, S, N)

    new_points_list = []
    for i in range(len(radius_list)):
        K = nsample_list[i]
        group_idx = finish_ball_query(ball_idx[i], K, N)         # (B, S, K)
        grouped_xyz = index_points(xyz_t, group_idx) - new_xyz[:, :, None, :]
        if points_t is not None:
            grouped = jnp.concatenate(
                [index_points(points_t, group_idx), grouped_xyz], axis=-1)
        else:
            grouped = grouped_xyz                                # (B, S, K, C0)
        C0 = grouped.shape[-1]
        g2d = grouped.reshape(B * S * K, C0).astype(jnp.float32) # free reshape, no transpose
        out = run_scale_mlp(g2d, params_padded[i], K)            # (B*S, C_pad)    [Pallas]
        new_points_list.append(
            out[:, :out_channels[i]].reshape(B, S, out_channels[i]))

    new_xyz_out = jnp.transpose(new_xyz, (0, 2, 1))                          # (B, 3, S)
    new_points_concat = jnp.transpose(
        jnp.concatenate(new_points_list, axis=-1), (0, 2, 1))                # (B, C', S)
    return new_xyz_out, new_points_concat


# ----------------------------------------------------------------------------
if __name__ == "__main__":
    # Module config (small shapes consistent with the module)
    npoint = 16
    radius_list = [0.2, 0.4]
    nsample_list = [8, 16]
    in_channel = 4
    mlp_list = [[16, 32], [16, 32, 64]]

    B, N, D = 2, 64, in_channel
    key = jax.random.PRNGKey(0)
    k_xyz, k_pts, k_par = jax.random.split(key, 3)
    xyz = jax.random.uniform(k_xyz, (B, 3, N), jnp.float32)       # positions in unit cube
    points = jax.random.normal(k_pts, (B, D, N), jnp.float32)     # features

    params = init_params(k_par, in_channel, mlp_list)
    params_p = pad_params_for_kernel(params, in_channel)
    out_channels = [m[-1] for m in mlp_list]

    fwd = jax.jit(functools.partial(
        pointnet_sa_msg_forward, npoint=npoint, radius_list=radius_list,
        nsample_list=nsample_list, out_channels=out_channels))
    new_xyz, new_points = fwd(xyz, points, params_p)
    jax.block_until_ready((new_xyz, new_points))

    assert new_xyz.shape == (B, 3, npoint)
    assert new_points.shape == (B, sum(out_channels), npoint)
    assert bool(jnp.all(jnp.isfinite(new_points)))
    print("KERNEL_OK")
</pallas_src>

<mosaic_0001>
module attributes {stable_mosaic.version = 11 : i64} {
  func.func @kernel(%arg0: i32, %arg1: i32, %arg2: memref<1x16x8xf32, #tpu.memory_space<vmem>>, %arg3: memref<1x8x64xf32, #tpu.memory_space<vmem>>, %arg4: memref<2x1x16x64xi16, #tpu.memory_space<vmem>>) attributes {dimension_semantics = [#tpu.dimension_semantics<parallel>, #tpu.dimension_semantics<parallel>], iteration_bounds = array<i64: 2, 1>, scalar_prefetch = 0 : i64, scratch_operands = 0 : i64, tpu.core_type = #tpu.core_type<tc>, window_params = [{transform_indices = @transform_0, window_bounds = array<i64: 1, 16, 8>}, {transform_indices = @transform_1, window_bounds = array<i64: 1, 8, 64>}, {transform_indices = @transform_2, window_bounds = array<i64: 2, 1, 16, 64>}]} {
    %c0 = arith.constant 0 : index
    %c0_0 = arith.constant 0 : index
    %c0_1 = arith.constant 0 : index
    %0 = vector.load %arg2[%c0, %c0_0, %c0_1] : memref<1x16x8xf32, #tpu.memory_space<vmem>>, vector<1x16x8xf32>
    %1 = vector.shape_cast %0 : vector<1x16x8xf32> to vector<16x8xf32>
    %c0_2 = arith.constant 0 : index
    %c0_3 = arith.constant 0 : index
    %c0_4 = arith.constant 0 : index
    %2 = vector.load %arg3[%c0_2, %c0_3, %c0_4] : memref<1x8x64xf32, #tpu.memory_space<vmem>>, vector<1x8x64xf32>
    %3 = vector.shape_cast %2 : vector<1x8x64xf32> to vector<8x64xf32>
    %cst = arith.constant dense<0.000000e+00> : vector<16x64xf32>
    %4 = tpu.matmul %1, %3, %cst {dimension_numbers = #tpu.dot_dimension_numbers<[1], [0], [0], [1], [0, 0, 1, 1], [], []>} : vector<16x8xf32>, vector<8x64xf32>, vector<16x64xf32> -> vector<16x64xf32>
    %5 = arith.mulf %1, %1 : vector<16x8xf32>
    %cst_5 = arith.constant dense<0.000000e+00> : vector<16xf32>
    %6 = vector.multi_reduction <add>, %5, %cst_5 [1] : vector<16x8xf32> to vector<16xf32>
    %7 = vector.shape_cast %6 : vector<16xf32> to vector<16x1xf32>
    %8 = arith.mulf %3, %3 : vector<8x64xf32>
    %cst_6 = arith.constant dense<0.000000e+00> : vector<64xf32>
    %9 = vector.multi_reduction <add>, %8, %cst_6 [0] : vector<8x64xf32> to vector<64xf32>
    %10 = vector.shape_cast %9 : vector<64xf32> to vector<1x64xf32>
    %11 = vector.broadcast %7 : vector<16x1xf32> to vector<16x64xf32>
    %12 = vector.broadcast %10 : vector<1x64xf32> to vector<16x64xf32>
    %13 = arith.addf %11, %12 : vector<16x64xf32>
    %cst_7 = arith.constant 2.000000e+00 : f32
    %14 = vector.broadcast %cst_7 : f32 to vector<16x64xf32>
    %15 = arith.mulf %14, %4 : vector<16x64xf32>
    %16 = arith.subf %13, %15 : vector<16x64xf32>
    %c64_i32 = arith.constant 64 : i32
    %17 = arith.muli %arg1, %c64_i32 : i32
    %18 = tpu.iota {dimensions = array<i32: 1>} : vector<16x64xi32>
    %19 = vector.broadcast %17 : i32 to vector<16x64xi32>
    %20 = arith.addi %19, %18 : vector<16x64xi32>
    %cst_8 = arith.constant 4.000000e-02 : f32
    %21 = vector.broadcast %cst_8 : f32 to vector<16x64xf32>
    %22 = arith.cmpf ogt, %16, %21 : vector<16x64xf32>
    %c64_i32_9 = arith.constant 64 : i32
    %23 = vector.broadcast %c64_i32_9 : i32 to vector<16x64xi32>
    %24 = arith.select %22, %23, %20 : vector<16x64xi1>, vector<16x64xi32>
    %25 = arith.trunci %24 : vector<16x64xi32> to vector<16x64xi16>
    %c0_10 = arith.constant 0 : index
    %c0_11 = arith.constant 0 : index
    %c0_12 = arith.constant 0 : index
    %c0_13 = arith.constant 0 : index
    %26 = vector.load %arg4[%c0_10, %c0_11, %c0_12, %c0_13] : memref<2x1x16x64xi16, #tpu.memory_space<vmem>>, vector<1x1x16x64xi16>
    %27 = vector.shape_cast %26 : vector<1x1x16x64xi16> to vector<16x64xi16>
    %28 = vector.shape_cast %25 : vector<16x64xi16> to vector<1x1x16x64xi16>
    tpu.vector_store %arg4[%c0_10, %c0_11, %c0_12, %c0_13], %28 {strides = array<i32>} : memref<2x1x16x64xi16, #tpu.memory_space<vmem>>, vector<1x1x16x64xi16>,
    %cst_14 = arith.constant 1.600000e-01 : f32
    %29 = vector.broadcast %cst_14 : f32 to vector<16x64xf32>
    %30 = arith.cmpf ogt, %16, %29 : vector<16x64xf32>
    %c64_i32_15 = arith.constant 64 : i32
    %31 = vector.broadcast %c64_i32_15 : i32 to vector<16x64xi32>
    %32 = arith.select %30, %31, %20 : vector<16x64xi1>, vector<16x64xi32>
    %33 = arith.trunci %32 : vector<16x64xi32> to vector<16x64xi16>
    %c1 = arith.constant 1 : index
    %c0_16 = arith.constant 0 : index
    %c0_17 = arith.constant 0 : index
    %c0_18 = arith.constant 0 : index
    %34 = vector.load %arg4[%c1, %c0_16, %c0_17, %c0_18] : memref<2x1x16x64xi16, #tpu.memory_space<vmem>>, vector<1x1x16x64xi16>
    %35 = vector.shape_cast %34 : vector<1x1x16x64xi16> to vector<16x64xi16>
    %36 = vector.shape_cast %33 : vector<16x64xi16> to vector<1x1x16x64xi16>
    tpu.vector_store %arg4[%c1, %c0_16, %c0_17, %c0_18], %36 {strides = array<i32>} : memref<2x1x16x64xi16, #tpu.memory_space<vmem>>, vector<1x1x16x64xi16>,
    return
  }
  func.func @transform_0(%arg0: i32, %arg1: i32) -> (i32, i32, i32) {
    %c0_i32 = arith.constant 0 : i32
    %c0_i32_0 = arith.constant 0 : i32
    %c0_i32_1 = arith.constant 0 : i32
    return %arg0, %c0_i32, %c0_i32_0 : i32, i32, i32
  }
  func.func @transform_1(%arg0: i32, %arg1: i32) -> (i32, i32, i32) {
    %c0_i32 = arith.constant 0 : i32
    %c0_i32_0 = arith.constant 0 : i32
    return %arg0, %c0_i32, %arg1 : i32, i32, i32
  }
  func.func @transform_2(%arg0: i32, %arg1: i32) -> (i32, i32, i32, i32) {
    %c0_i32 = arith.constant 0 : i32
    %c0_i32_0 = arith.constant 0 : i32
    %c0_i32_1 = arith.constant 0 : i32
    return %c0_i32, %arg0, %c0_i32_0, %arg1 : i32, i32, i32, i32
  }
}

module attributes {stable_mosaic.version = 11 : i64} {
  func.func @kernel(%arg0: i32, %arg1: i32, %arg2: memref<128x8xf32, #tpu.memory_space<vmem>>, %arg3: memref<8x128xbf16, #tpu.memory_space<vmem>>, %arg4: memref<1x128xf32, #tpu.memory_space<vmem>>, %arg5: memref<128x128xbf16, #tpu.memory_space<vmem>>, %arg6: memref<1x8x128xf32, #tpu.memory_space<vmem>>, %arg7: memref<1x8x128xf32, #tpu.memory_space<vmem>>) attributes {dimension_semantics = [#tpu.dimension_semantics<parallel>, #tpu.dimension_semantics<arbitrary>], iteration_bounds = array<i64: 2, 1>, scalar_prefetch = 0 : i64, scratch_operands = 0 : i64, tpu.core_type = #tpu.core_type<tc>, window_params = [{transform_indices = @transform_0, window_bounds = array<i64: 128, 8>}, {pipeline_mode = #tpu.pipeline_mode<synchronous>, transform_indices = @transform_1, window_bounds = array<i64: 8, 128>}, {pipeline_mode = #tpu.pipeline_mode<synchronous>, transform_indices = @transform_2, window_bounds = array<i64: 1, 128>}, {transform_indices = @transform_3, window_bounds = array<i64: 128, 128>}, {transform_indices = @transform_4, window_bounds = array<i64: 1, 8, 128>}, {transform_indices = @transform_5, window_bounds = array<i64: 1, 8, 128>}]} {
    %c0 = arith.constant 0 : index
    %c0_0 = arith.constant 0 : index
    %0 = vector.load %arg2[%c0, %c0_0] : memref<128x8xf32, #tpu.memory_space<vmem>>, vector<128x8xf32>
    %1 = arith.truncf %0 : vector<128x8xf32> to vector<128x8xbf16>
    %c0_1 = arith.constant 0 : index
    %c0_2 = arith.constant 0 : index
    %2 = vector.load %arg3[%c0_1, %c0_2] : memref<8x128xbf16, #tpu.memory_space<vmem>>, vector<8x128xbf16>
    %cst = arith.constant dense<0.000000e+00> : vector<128x128xf32>
    %3 = tpu.matmul %1, %2, %cst {dimension_numbers = #tpu.dot_dimension_numbers<[1], [0], [0], [1], [0, 0, 1, 1], [], []>} : vector<128x8xbf16>, vector<8x128xbf16>, vector<128x128xf32> -> vector<128x128xf32>
    %c0_3 = arith.constant 0 : index
    %c0_4 = arith.constant 0 : index
    %4 = vector.load %arg4[%c0_3, %c0_4] : memref<1x128xf32, #tpu.memory_space<vmem>>, vector<1x128xf32>
    %5 = vector.broadcast %4 : vector<1x128xf32> to vector<128x128xf32>
    %6 = arith.addf %3, %5 : vector<128x128xf32>
    %7 = arith.truncf %6 : vector<128x128xf32> to vector<128x128xbf16>
    %c0_5 = arith.constant 0 : index
    %c0_6 = arith.constant 0 : index
    %8 = vector.load %arg5[%c0_5, %c0_6] : memref<128x128xbf16, #tpu.memory_space<vmem>>, vector<128x128xbf16>
    tpu.vector_store %arg5[%c0_5, %c0_6], %7 {strides = array<i32>} : memref<128x128xbf16, #tpu.memory_space<vmem>>, vector<128x128xbf16>,
    %c0_i32 = arith.constant 0 : i32
    %9 = arith.cmpi eq, %arg1, %c0_i32 : i32
    %10 = arith.extui %9 : i1 to i32
    %c0_i32_7 = arith.constant 0 : i32
    %11 = arith.cmpi ne, %10, %c0_i32_7 : i32
    scf.if %11 {
      %cst_22 = arith.constant 0.000000e+00 : f32
      %29 = vector.broadcast %cst_22 : f32 to vector<1x8x128xf32>
      %c0_23 = arith.constant 0 : index
      %c0_24 = arith.constant 0 : index
      %c0_25 = arith.constant 0 : index
      %30 = vector.load %arg6[%c0_23, %c0_24, %c0_25] : memref<1x8x128xf32, #tpu.memory_space<vmem>>, vector<1x8x128xf32>
      tpu.vector_store %arg6[%c0_23, %c0_24, %c0_25], %29 {strides = array<i32>} : memref<1x8x128xf32, #tpu.memory_space<vmem>>, vector<1x8x128xf32>,
      %cst_26 = arith.constant 0.000000e+00 : f32
      %31 = vector.broadcast %cst_26 : f32 to vector<1x8x128xf32>
      %c0_27 = arith.constant 0 : index
      %c0_28 = arith.constant 0 : index
      %c0_29 = arith.constant 0 : index
      %32 = vector.load %arg7[%c0_27, %c0_28, %c0_29] : memref<1x8x128xf32, #tpu.memory_space<vmem>>, vector<1x8x128xf32>
      tpu.vector_store %arg7[%c0_27, %c0_28, %c0_29], %31 {strides = array<i32>} : memref<1x8x128xf32, #tpu.memory_space<vmem>>, vector<1x8x128xf32>,
    } else {
    }
    %c0_8 = arith.constant 0 : index
    %c0_9 = arith.constant 0 : index
    %c0_10 = arith.constant 0 : index
    %12 = vector.load %arg6[%c0_8, %c0_9, %c0_10] : memref<1x8x128xf32, #tpu.memory_space<vmem>>, vector<1x8x128xf32>
    %13 = vector.shape_cast %12 : vector<1x8x128xf32> to vector<8x128xf32>
    %14 = vector.shape_cast %6 : vector<128x128xf32> to vector<16x8x128xf32>
    %cst_11 = arith.constant dense<0.000000e+00> : vector<8x128xf32>
    %15 = vector.multi_reduction <add>, %14, %cst_11 [0] : vector<16x8x128xf32> to vector<8x128xf32>
    %16 = arith.addf %13, %15 : vector<8x128xf32>
    %c0_12 = arith.constant 0 : index
    %c0_13 = arith.constant 0 : index
    %c0_14 = arith.constant 0 : index
    %17 = vector.load %arg6[%c0_12, %c0_13, %c0_14] : memref<1x8x128xf32, #tpu.memory_space<vmem>>, vector<1x8x128xf32>
    %18 = vector.shape_cast %17 : vector<1x8x128xf32> to vector<8x128xf32>
    %19 = vector.shape_cast %16 : vector<8x128xf32> to vector<1x8x128xf32>
    tpu.vector_store %arg6[%c0_12, %c0_13, %c0_14], %19 {strides = array<i32>} : memref<1x8x128xf32, #tpu.memory_space<vmem>>, vector<1x8x128xf32>,
    %c0_15 = arith.constant 0 : index
    %c0_16 = arith.constant 0 : index
    %c0_17 = arith.constant 0 : index
    %20 = vector.load %arg7[%c0_15, %c0_16, %c0_17] : memref<1x8x128xf32, #tpu.memory_space<vmem>>, vector<1x8x128xf32>
    %21 = vector.shape_cast %20 : vector<1x8x128xf32> to vector<8x128xf32>
    %22 = arith.mulf %6, %6 : vector<128x128xf32>
    %23 = vector.shape_cast %22 : vector<128x128xf32> to vector<16x8x128xf32>
    %cst_18 = arith.constant dense<0.000000e+00> : vector<8x128xf32>
    %24 = vector.multi_reduction <add>, %23, %cst_18 [0] : vector<16x8x128xf32> to vector<8x128xf32>
    %25 = arith.addf %21, %24 : vector<8x128xf32>
    %c0_19 = arith.constant 0 : index
    %c0_20 = arith.constant 0 : index
    %c0_21 = arith.constant 0 : index
    %26 = vector.load %arg7[%c0_19, %c0_20, %c0_21] : memref<1x8x128xf32, #tpu.memory_space<vmem>>, vector<1x8x128xf32>
    %27 = vector.shape_cast %26 : vector<1x8x128xf32> to vector<8x128xf32>
    %28 = vector.shape_cast %25 : vector<8x128xf32> to vector<1x8x128xf32>
    tpu.vector_store %arg7[%c0_19, %c0_20, %c0_21], %28 {strides = array<i32>} : memref<1x8x128xf32, #tpu.memory_space<vmem>>, vector<1x8x128xf32>,
    return
  }
  func.func @transform_0(%arg0: i32, %arg1: i32) -> (i32, i32) {
    %c1_i32 = arith.constant 1 : i32
    %0 = arith.muli %arg0, %c1_i32 : i32
    %1 = arith.addi %0, %arg1 : i32
    %c0_i32 = arith.constant 0 : i32
    %c0_i32_0 = arith.constant 0 : i32
    return %1, %c0_i32 : i32, i32
  }
  func.func @transform_1(%arg0: i32, %arg1: i32) -> (i32, i32) {
    %c0_i32 = arith.constant 0 : i32
    %c0_i32_0 = arith.constant 0 : i32
    %c0_i32_1 = arith.constant 0 : i32
    return %c0_i32, %c0_i32_0 : i32, i32
  }
  func.func @transform_2(%arg0: i32, %arg1: i32) -> (i32, i32) {
    %c0_i32 = arith.constant 0 : i32
    %c0_i32_0 = arith.constant 0 : i32
    %c0_i32_1 = arith.constant 0 : i32
    return %c0_i32, %c0_i32_0 : i32, i32
  }
  func.func @transform_3(%arg0: i32, %arg1: i32) -> (i32, i32) {
    %c1_i32 = arith.constant 1 : i32
    %0 = arith.muli %arg0, %c1_i32 : i32
    %1 = arith.addi %0, %arg1 : i32
    %c0_i32 = arith.constant 0 : i32
    %c0_i32_0 = arith.constant 0 : i32
    return %1, %c0_i32 : i32, i32
  }
  func.func @transform_4(%arg0: i32, %arg1: i32) -> (i32, i32, i32) {
    %c0_i32 = arith.constant 0 : i32
    %c0_i32_0 = arith.constant 0 : i32
    %c0_i32_1 = arith.constant 0 : i32
    return %arg0, %c0_i32, %c0_i32_0 : i32, i32, i32
  }
  func.func @transform_5(%arg0: i32, %arg1: i32) -> (i32, i32, i32) {
    %c0_i32 = arith.constant 0 : i32
    %c0_i32_0 = arith.constant 0 : i32
    %c0_i32_1 = arith.constant 0 : i32
    return %arg0, %c0_i32, %c0_i32_0 : i32, i32, i32
  }
}

module attributes {stable_mosaic.version = 11 : i64} {
  func.func @kernel(%arg0: i32, %arg1: i32, %arg2: memref<128x128xbf16, #tpu.memory_space<vmem>>, %arg3: memref<1x128xf32, #tpu.memory_space<vmem>>, %arg4: memref<1x128xf32, #tpu.memory_space<vmem>>, %arg5: memref<128x128xbf16, #tpu.memory_space<vmem>>, %arg6: memref<1x128xf32, #tpu.memory_space<vmem>>, %arg7: memref<128x128xbf16, #tpu.memory_space<vmem>>, %arg8: memref<1x8x128xf32, #tpu.memory_space<vmem>>, %arg9: memref<1x8x128xf32, #tpu.memory_space<vmem>>) attributes {dimension_semantics = [#tpu.dimension_semantics<parallel>, #tpu.dimension_semantics<arbitrary>], iteration_bounds = array<i64: 2, 1>, scalar_prefetch = 0 : i64, scratch_operands = 0 : i64, tpu.core_type = #tpu.core_type<tc>, window_params = [{transform_indices = @transform_0, window_bounds = array<i64: 128, 128>}, {pipeline_mode = #tpu.pipeline_mode<synchronous>, transform_indices = @transform_1, window_bounds = array<i64: 1, 128>}, {pipeline_mode = #tpu.pipeline_mode<synchronous>, transform_indices = @transform_2, window_bounds = array<i64: 1, 128>}, {pipeline_mode = #tpu.pipeline_mode<synchronous>, transform_indices = @transform_3, window_bounds = array<i64: 128, 128>}, {pipeline_mode = #tpu.pipeline_mode<synchronous>, transform_indices = @transform_4, window_bounds = array<i64: 1, 128>}, {transform_indices = @transform_5, window_bounds = array<i64: 128, 128>}, {transform_indices = @transform_6, window_bounds = array<i64: 1, 8, 128>}, {transform_indices = @transform_7, window_bounds = array<i64: 1, 8, 128>}]} {
    %c0 = arith.constant 0 : index
    %c0_0 = arith.constant 0 : index
    %0 = vector.load %arg2[%c0, %c0_0] : memref<128x128xbf16, #tpu.memory_space<vmem>>, vector<128x128xbf16>
    %1 = arith.extf %0 : vector<128x128xbf16> to vector<128x128xf32>
    %c0_1 = arith.constant 0 : index
    %c0_2 = arith.constant 0 : index
    %2 = vector.load %arg3[%c0_1, %c0_2] : memref<1x128xf32, #tpu.memory_space<vmem>>, vector<1x128xf32>
    %3 = vector.broadcast %2 : vector<1x128xf32> to vector<128x128xf32>
    %4 = arith.mulf %1, %3 : vector<128x128xf32>
    %c0_3 = arith.constant 0 : index
    %c0_4 = arith.constant 0 : index
    %5 = vector.load %arg4[%c0_3, %c0_4] : memref<1x128xf32, #tpu.memory_space<vmem>>, vector<1x128xf32>
    %6 = vector.broadcast %5 : vector<1x128xf32> to vector<128x128xf32>
    %7 = arith.addf %4, %6 : vector<128x128xf32>
    %cst = arith.constant 0.000000e+00 : f32
    %8 = vector.broadcast %cst : f32 to vector<128x128xf32>
    %9 = arith.maximumf %7, %8 : vector<128x128xf32>
    %10 = arith.truncf %9 : vector<128x128xf32> to vector<128x128xbf16>
    %c0_5 = arith.constant 0 : index
    %c0_6 = arith.constant 0 : index
    %11 = vector.load %arg5[%c0_5, %c0_6] : memref<128x128xbf16, #tpu.memory_space<vmem>>, vector<128x128xbf16>
    %cst_7 = arith.constant dense<0.000000e+00> : vector<128x128xf32>
    %12 = tpu.matmul %10, %11, %cst_7 {dimension_numbers = #tpu.dot_dimension_numbers<[1], [0], [0], [1], [0, 0, 1, 1], [], []>} : vector<128x128xbf16>, vector<128x128xbf16>, vector<128x128xf32> -> vector<128x128xf32>
    %c0_8 = arith.constant 0 : index
    %c0_9 = arith.constant 0 : index
    %13 = vector.load %arg6[%c0_8, %c0_9] : memref<1x128xf32, #tpu.memory_space<vmem>>, vector<1x128xf32>
    %14 = vector.broadcast %13 : vector<1x128xf32> to vector<128x128xf32>
    %15 = arith.addf %12, %14 : vector<128x128xf32>
    %16 = arith.truncf %15 : vector<128x128xf32> to vector<128x128xbf16>
    %c0_10 = arith.constant 0 : index
    %c0_11 = arith.constant 0 : index
    %17 = vector.load %arg7[%c0_10, %c0_11] : memref<128x128xbf16, #tpu.memory_space<vmem>>, vector<128x128xbf16>
    tpu.vector_store %arg7[%c0_10, %c0_11], %16 {strides = array<i32>} : memref<128x128xbf16, #tpu.memory_space<vmem>>, vector<128x128xbf16>,
    %c0_i32 = arith.constant 0 : i32
    %18 = arith.cmpi eq, %arg1, %c0_i32 : i32
    %19 = arith.extui %18 : i1 to i32
    %c0_i32_12 = arith.constant 0 : i32
    %20 = arith.cmpi ne, %19, %c0_i32_12 : i32
    scf.if %20 {
      %cst_27 = arith.constant 0.000000e+00 : f32
      %38 = vector.broadcast %cst_27 : f32 to vector<1x8x128xf32>
      %c0_28 = arith.constant 0 : index
      %c0_29 = arith.constant 0 : index
      %c0_30 = arith.constant 0 : index
      %39 = vector.load %arg8[%c0_28, %c0_29, %c0_30] : memref<1x8x128xf32, #tpu.memory_space<vmem>>, vector<1x8x128xf32>
      tpu.vector_store %arg8[%c0_28, %c0_29, %c0_30], %38 {strides = array<i32>} : memref<1x8x128xf32, #tpu.memory_space<vmem>>, vector<1x8x128xf32>,
      %cst_31 = arith.constant 0.000000e+00 : f32
      %40 = vector.broadcast %cst_31 : f32 to vector<1x8x128xf32>
      %c0_32 = arith.constant 0 : index
      %c0_33 = arith.constant 0 : index
      %c0_34 = arith.constant 0 : index
      %41 = vector.load %arg9[%c0_32, %c0_33, %c0_34] : memref<1x8x128xf32, #tpu.memory_space<vmem>>, vector<1x8x128xf32>
      tpu.vector_store %arg9[%c0_32, %c0_33, %c0_34], %40 {strides = array<i32>} : memref<1x8x128xf32, #tpu.memory_space<vmem>>, vector<1x8x128xf32>,
    } else {
    }
    %c0_13 = arith.constant 0 : index
    %c0_14 = arith.constant 0 : index
    %c0_15 = arith.constant 0 : index
    %21 = vector.load %arg8[%c0_13, %c0_14, %c0_15] : memref<1x8x128xf32, #tpu.memory_space<vmem>>, vector<1x8x128xf32>
    %22 = vector.shape_cast %21 : vector<1x8x128xf32> to vector<8x128xf32>
    %23 = vector.shape_cast %15 : vector<128x128xf32> to vector<16x8x128xf32>
    %cst_16 = arith.constant dense<0.000000e+00> : vector<8x128xf32>
    %24 = vector.multi_reduction <add>, %23, %cst_16 [0] : vector<16x8x128xf32> to vector<8x128xf32>
    %25 = arith.addf %22, %24 : vector<8x128xf32>
    %c0_17 = arith.constant 0 : index
    %c0_18 = arith.constant 0 : index
    %c0_19 = arith.constant 0 : index
    %26 = vector.load %arg8[%c0_17, %c0_18, %c0_19] : memref<1x8x128xf32, #tpu.memory_space<vmem>>, vector<1x8x128xf32>
    %27 = vector.shape_cast %26 : vector<1x8x128xf32> to vector<8x128xf32>
    %28 = vector.shape_cast %25 : vector<8x128xf32> to vector<1x8x128xf32>
    tpu.vector_store %arg8[%c0_17, %c0_18, %c0_19], %28 {strides = array<i32>} : memref<1x8x128xf32, #tpu.memory_space<vmem>>, vector<1x8x128xf32>,
    %c0_20 = arith.constant 0 : index
    %c0_21 = arith.constant 0 : index
    %c0_22 = arith.constant 0 : index
    %29 = vector.load %arg9[%c0_20, %c0_21, %c0_22] : memref<1x8x128xf32, #tpu.memory_space<vmem>>, vector<1x8x128xf32>
    %30 = vector.shape_cast %29 : vector<1x8x128xf32> to vector<8x128xf32>
    %31 = arith.mulf %15, %15 : vector<128x128xf32>
    %32 = vector.shape_cast %31 : vector<128x128xf32> to vector<16x8x128xf32>
    %cst_23 = arith.constant dense<0.000000e+00> : vector<8x128xf32>
    %33 = vector.multi_reduction <add>, %32, %cst_23 [0] : vector<16x8x128xf32> to vector<8x128xf32>
    %34 = arith.addf %30, %33 : vector<8x128xf32>
    %c0_24 = arith.constant 0 : index
    %c0_25 = arith.constant 0 : index
    %c0_26 = arith.constant 0 : index
    %35 = vector.load %arg9[%c0_24, %c0_25, %c0_26] : memref<1x8x128xf32, #tpu.memory_space<vmem>>, vector<1x8x128xf32>
    %36 = vector.shape_cast %35 : vector<1x8x128xf32> to vector<8x128xf32>
    %37 = vector.shape_cast %34 : vector<8x128xf32> to vector<1x8x128xf32>
    tpu.vector_store %arg9[%c0_24, %c0_25, %c0_26], %37 {strides = array<i32>} : memref<1x8x128xf32, #tpu.memory_space<vmem>>, vector<1x8x128xf32>,
    return
  }
  func.func @transform_0(%arg0: i32, %arg1: i32) -> (i32, i32) {
    %c1_i32 = arith.constant 1 : i32
    %0 = arith.muli %arg0, %c1_i32 : i32
    %1 = arith.addi %0, %arg1 : i32
    %c0_i32 = arith.constant 0 : i32
    %c0_i32_0 = arith.constant 0 : i32
    return %1, %c0_i32 : i32, i32
  }
  func.func @transform_1(%arg0: i32, %arg1: i32) -> (i32, i32) {
    %c0_i32 = arith.constant 0 : i32
    %c0_i32_0 = arith.constant 0 : i32
    %c0_i32_1 = arith.constant 0 : i32
    return %c0_i32, %c0_i32_0 : i32, i32
  }
  func.func @transform_2(%arg0: i32, %arg1: i32) -> (i32, i32) {
    %c0_i32 = arith.constant 0 : i32
    %c0_i32_0 = arith.constant 0 : i32
    %c0_i32_1 = arith.constant 0 : i32
    return %c0_i32, %c0_i32_0 : i32, i32
  }
  func.func @transform_3(%arg0: i32, %arg1: i32) -> (i32, i32) {
    %c0_i32 = arith.constant 0 : i32
    %c0_i32_0 = arith.constant 0 : i32
    %c0_i32_1 = arith.constant 0 : i32
    return %c0_i32, %c0_i32_0 : i32, i32
  }
  func.func @transform_4(%arg0: i32, %arg1: i32) -> (i32, i32) {
    %c0_i32 = arith.constant 0 : i32
    %c0_i32_0 = arith.constant 0 : i32
    %c0_i32_1 = arith.constant 0 : i32
    return %c0_i32, %c0_i32_0 : i32, i32
  }
  func.func @transform_5(%arg0: i32, %arg1: i32) -> (i32, i32) {
    %c1_i32 = arith.constant 1 : i32
    %0 = arith.muli %arg0, %c1_i32 : i32
    %1 = arith.addi %0, %arg1 : i32
    %c0_i32 = arith.constant 0 : i32
    %c0_i32_0 = arith.constant 0 : i32
    return %1, %c0_i32 : i32, i32
  }
  func.func @transform_6(%arg0: i32, %arg1: i32) -> (i32, i32, i32) {
    %c0_i32 = arith.constant 0 : i32
    %c0_i32_0 = arith.constant 0 : i32
    %c0_i32_1 = arith.constant 0 : i32
    return %arg0, %c0_i32, %c0_i32_0 : i32, i32, i32
  }
  func.func @transform_7(%arg0: i32, %arg1: i32) -> (i32, i32, i32) {
    %c0_i32 = arith.constant 0 : i32
    %c0_i32_0 = arith.constant 0 : i32
    %c0_i32_1 = arith.constant 0 : i32
    return %arg0, %c0_i32, %c0_i32_0 : i32, i32, i32
  }
}

module attributes {stable_mosaic.version = 11 : i64} {
  func.func @_bn_relu_max_kernel(%arg0: i32, %arg1: memref<16x8x128xbf16, #tpu.memory_space<vmem>>, %arg2: memref<1x128xf32, #tpu.memory_space<vmem>>, %arg3: memref<1x128xf32, #tpu.memory_space<vmem>>, %arg4: memref<16x128xf32, #tpu.memory_space<vmem>>) attributes {dimension_semantics = [#tpu.dimension_semantics<parallel>], iteration_bounds = array<i64: 2>, scalar_prefetch = 0 : i64, scratch_operands = 0 : i64, tpu.core_type = #tpu.core_type<tc>, window_params = [{transform_indices = @transform_0, window_bounds = array<i64: 16, 8, 128>}, {pipeline_mode = #tpu.pipeline_mode<synchronous>, transform_indices = @transform_1, window_bounds = array<i64: 1, 128>}, {pipeline_mode = #tpu.pipeline_mode<synchronous>, transform_indices = @transform_2, window_bounds = array<i64: 1, 128>}, {transform_indices = @transform_3, window_bounds = array<i64: 16, 128>}]} {
    %c0 = arith.constant 0 : index
    %c0_0 = arith.constant 0 : index
    %c0_1 = arith.constant 0 : index
    %0 = vector.load %arg1[%c0, %c0_0, %c0_1] : memref<16x8x128xbf16, #tpu.memory_space<vmem>>, vector<16x8x128xbf16>
    %1 = arith.extf %0 : vector<16x8x128xbf16> to vector<16x8x128xf32>
    %c0_2 = arith.constant 0 : index
    %c0_3 = arith.constant 0 : index
    %2 = vector.load %arg2[%c0_2, %c0_3] : memref<1x128xf32, #tpu.memory_space<vmem>>, vector<1x128xf32>
    %3 = vector.shape_cast %2 : vector<1x128xf32> to vector<1x1x128xf32>
    %4 = vector.broadcast %3 : vector<1x1x128xf32> to vector<16x8x128xf32>
    %5 = arith.mulf %1, %4 : vector<16x8x128xf32>
    %c0_4 = arith.constant 0 : index
    %c0_5 = arith.constant 0 : index
    %6 = vector.load %arg3[%c0_4, %c0_5] : memref<1x128xf32, #tpu.memory_space<vmem>>, vector<1x128xf32>
    %7 = vector.shape_cast %6 : vector<1x128xf32> to vector<1x1x128xf32>
    %8 = vector.broadcast %7 : vector<1x1x128xf32> to vector<16x8x128xf32>
    %9 = arith.addf %5, %8 : vector<16x8x128xf32>
    %cst = arith.constant 0.000000e+00 : f32
    %10 = vector.broadcast %cst : f32 to vector<16x8x128xf32>
    %11 = arith.maximumf %9, %10 : vector<16x8x128xf32>
    %cst_6 = arith.constant dense<0xFF800000> : vector<16x128xf32>
    %12 = vector.multi_reduction <maximumf>, %11, %cst_6 [1] : vector<16x8x128xf32> to vector<16x128xf32>
    %c0_7 = arith.constant 0 : index
    %c0_8 = arith.constant 0 : index
    %13 = vector.load %arg4[%c0_7, %c0_8] : memref<16x128xf32, #tpu.memory_space<vmem>>, vector<16x128xf32>
    tpu.vector_store %arg4[%c0_7, %c0_8], %12 {strides = array<i32>} : memref<16x128xf32, #tpu.memory_space<vmem>>, vector<16x128xf32>,
    return
  }
  func.func @transform_0(%arg0: i32) -> (i32, i32, i32) {
    %c0_i32 = arith.constant 0 : i32
    %c0_i32_0 = arith.constant 0 : i32
    %c0_i32_1 = arith.constant 0 : i32
    return %arg0, %c0_i32, %c0_i32_0 : i32, i32, i32
  }
  func.func @transform_1(%arg0: i32) -> (i32, i32) {
    %c0_i32 = arith.constant 0 : i32
    %c0_i32_0 = arith.constant 0 : i32
    %c0_i32_1 = arith.constant 0 : i32
    return %c0_i32, %c0_i32_0 : i32, i32
  }
  func.func @transform_2(%arg0: i32) -> (i32, i32) {
    %c0_i32 = arith.constant 0 : i32
    %c0_i32_0 = arith.constant 0 : i32
    %c0_i32_1 = arith.constant 0 : i32
    return %c0_i32, %c0_i32_0 : i32, i32
  }
  func.func @transform_3(%arg0: i32) -> (i32, i32) {
    %c0_i32 = arith.constant 0 : i32
    %c0_i32_0 = arith.constant 0 : i32
    return %arg0, %c0_i32 : i32, i32
  }
}

module attributes {stable_mosaic.version = 11 : i64} {
  func.func @kernel(%arg0: i32, %arg1: i32, %arg2: memref<256x128xbf16, #tpu.memory_space<vmem>>, %arg3: memref<1x128xf32, #tpu.memory_space<vmem>>, %arg4: memref<1x128xf32, #tpu.memory_space<vmem>>, %arg5: memref<128x128xbf16, #tpu.memory_space<vmem>>, %arg6: memref<1x128xf32, #tpu.memory_space<vmem>>, %arg7: memref<256x128xbf16, #tpu.memory_space<vmem>>, %arg8: memref<1x8x128xf32, #tpu.memory_space<vmem>>, %arg9: memref<1x8x128xf32, #tpu.memory_space<vmem>>) attributes {dimension_semantics = [#tpu.dimension_semantics<parallel>, #tpu.dimension_semantics<arbitrary>], iteration_bounds = array<i64: 2, 1>, scalar_prefetch = 0 : i64, scratch_operands = 0 : i64, tpu.core_type = #tpu.core_type<tc>, window_params = [{transform_indices = @transform_0, window_bounds = array<i64: 256, 128>}, {pipeline_mode = #tpu.pipeline_mode<synchronous>, transform_indices = @transform_1, window_bounds = array<i64: 1, 128>}, {pipeline_mode = #tpu.pipeline_mode<synchronous>, transform_indices = @transform_2, window_bounds = array<i64: 1, 128>}, {pipeline_mode = #tpu.pipeline_mode<synchronous>, transform_indices = @transform_3, window_bounds = array<i64: 128, 128>}, {pipeline_mode = #tpu.pipeline_mode<synchronous>, transform_indices = @transform_4, window_bounds = array<i64: 1, 128>}, {transform_indices = @transform_5, window_bounds = array<i64: 256, 128>}, {transform_indices = @transform_6, window_bounds = array<i64: 1, 8, 128>}, {transform_indices = @transform_7, window_bounds = array<i64: 1, 8, 128>}]} {
    %c0 = arith.constant 0 : index
    %c0_0 = arith.constant 0 : index
    %0 = vector.load %arg2[%c0, %c0_0] : memref<256x128xbf16, #tpu.memory_space<vmem>>, vector<256x128xbf16>
    %1 = arith.extf %0 : vector<256x128xbf16> to vector<256x128xf32>
    %c0_1 = arith.constant 0 : index
    %c0_2 = arith.constant 0 : index
    %2 = vector.load %arg3[%c0_1, %c0_2] : memref<1x128xf32, #tpu.memory_space<vmem>>, vector<1x128xf32>
    %3 = vector.broadcast %2 : vector<1x128xf32> to vector<256x128xf32>
    %4 = arith.mulf %1, %3 : vector<256x128xf32>
    %c0_3 = arith.constant 0 : index
    %c0_4 = arith.constant 0 : index
    %5 = vector.load %arg4[%c0_3, %c0_4] : memref<1x128xf32, #tpu.memory_space<vmem>>, vector<1x128xf32>
    %6 = vector.broadcast %5 : vector<1x128xf32> to vector<256x128xf32>
    %7 = arith.addf %4, %6 : vector<256x128xf32>
    %cst = arith.constant 0.000000e+00 : f32
    %8 = vector.broadcast %cst : f32 to vector<256x128xf32>
    %9 = arith.maximumf %7, %8 : vector<256x128xf32>
    %10 = arith.truncf %9 : vector<256x128xf32> to vector<256x128xbf16>
    %c0_5 = arith.constant 0 : index
    %c0_6 = arith.constant 0 : index
    %11 = vector.load %arg5[%c0_5, %c0_6] : memref<128x128xbf16, #tpu.memory_space<vmem>>, vector<128x128xbf16>
    %cst_7 = arith.constant dense<0.000000e+00> : vector<256x128xf32>
    %12 = tpu.matmul %10, %11, %cst_7 {dimension_numbers = #tpu.dot_dimension_numbers<[1], [0], [0], [1], [0, 0, 1, 1], [], []>} : vector<256x128xbf16>, vector<128x128xbf16>, vector<256x128xf32> -> vector<256x128xf32>
    %c0_8 = arith.constant 0 : index
    %c0_9 = arith.constant 0 : index
    %13 = vector.load %arg6[%c0_8, %c0_9] : memref<1x128xf32, #tpu.memory_space<vmem>>, vector<1x128xf32>
    %14 = vector.broadcast %13 : vector<1x128xf32> to vector<256x128xf32>
    %15 = arith.addf %12, %14 : vector<256x128xf32>
    %16 = arith.truncf %15 : vector<256x128xf32> to vector<256x128xbf16>
    %c0_10 = arith.constant 0 : index
    %c0_11 = arith.constant 0 : index
    %17 = vector.load %arg7[%c0_10, %c0_11] : memref<256x128xbf16, #tpu.memory_space<vmem>>, vector<256x128xbf16>
    tpu.vector_store %arg7[%c0_10, %c0_11], %16 {strides = array<i32>} : memref<256x128xbf16, #tpu.memory_space<vmem>>, vector<256x128xbf16>,
    %c0_i32 = arith.constant 0 : i32
    %18 = arith.cmpi eq, %arg1, %c0_i32 : i32
    %19 = arith.extui %18 : i1 to i32
    %c0_i32_12 = arith.constant 0 : i32
    %20 = arith.cmpi ne, %19, %c0_i32_12 : i32
    scf.if %20 {
      %cst_27 = arith.constant 0.000000e+00 : f32
      %38 = vector.broadcast %cst_27 : f32 to vector<1x8x128xf32>
      %c0_28 = arith.constant 0 : index
      %c0_29 = arith.constant 0 : index
      %c0_30 = arith.constant 0 : index
      %39 = vector.load %arg8[%c0_28, %c0_29, %c0_30] : memref<1x8x128xf32, #tpu.memory_space<vmem>>, vector<1x8x128xf32>
      tpu.vector_store %arg8[%c0_28, %c0_29, %c0_30], %38 {strides = array<i32>} : memref<1x8x128xf32, #tpu.memory_space<vmem>>, vector<1x8x128xf32>,
      %cst_31 = arith.constant 0.000000e+00 : f32
      %40 = vector.broadcast %cst_31 : f32 to vector<1x8x128xf32>
      %c0_32 = arith.constant 0 : index
      %c0_33 = arith.constant 0 : index
      %c0_34 = arith.constant 0 : index
      %41 = vector.load %arg9[%c0_32, %c0_33, %c0_34] : memref<1x8x128xf32, #tpu.memory_space<vmem>>, vector<1x8x128xf32>
      tpu.vector_store %arg9[%c0_32, %c0_33, %c0_34], %40 {strides = array<i32>} : memref<1x8x128xf32, #tpu.memory_space<vmem>>, vector<1x8x128xf32>,
    } else {
    }
    %c0_13 = arith.constant 0 : index
    %c0_14 = arith.constant 0 : index
    %c0_15 = arith.constant 0 : index
    %21 = vector.load %arg8[%c0_13, %c0_14, %c0_15] : memref<1x8x128xf32, #tpu.memory_space<vmem>>, vector<1x8x128xf32>
    %22 = vector.shape_cast %21 : vector<1x8x128xf32> to vector<8x128xf32>
    %23 = vector.shape_cast %15 : vector<256x128xf32> to vector<32x8x128xf32>
    %cst_16 = arith.constant dense<0.000000e+00> : vector<8x128xf32>
    %24 = vector.multi_reduction <add>, %23, %cst_16 [0] : vector<32x8x128xf32> to vector<8x128xf32>
    %25 = arith.addf %22, %24 : vector<8x128xf32>
    %c0_17 = arith.constant 0 : index
    %c0_18 = arith.constant 0 : index
    %c0_19 = arith.constant 0 : index
    %26 = vector.load %arg8[%c0_17, %c0_18, %c0_19] : memref<1x8x128xf32, #tpu.memory_space<vmem>>, vector<1x8x128xf32>
    %27 = vector.shape_cast %26 : vector<1x8x128xf32> to vector<8x128xf32>
    %28 = vector.shape_cast %25 : vector<8x128xf32> to vector<1x8x128xf32>
    tpu.vector_store %arg8[%c0_17, %c0_18, %c0_19], %28 {strides = array<i32>} : memref<1x8x128xf32, #tpu.memory_space<vmem>>, vector<1x8x128xf32>,
    %c0_20 = arith.constant 0 : index
    %c0_21 = arith.constant 0 : index
    %c0_22 = arith.constant 0 : index
    %29 = vector.load %arg9[%c0_20, %c0_21, %c0_22] : memref<1x8x128xf32, #tpu.memory_space<vmem>>, vector<1x8x128xf32>
    %30 = vector.shape_cast %29 : vector<1x8x128xf32> to vector<8x128xf32>
    %31 = arith.mulf %15, %15 : vector<256x128xf32>
    %32 = vector.shape_cast %31 : vector<256x128xf32> to vector<32x8x128xf32>
    %cst_23 = arith.constant dense<0.000000e+00> : vector<8x128xf32>
    %33 = vector.multi_reduction <add>, %32, %cst_23 [0] : vector<32x8x128xf32> to vector<8x128xf32>
    %34 = arith.addf %30, %33 : vector<8x128xf32>
    %c0_24 = arith.constant 0 : index
    %c0_25 = arith.constant 0 : index
    %c0_26 = arith.constant 0 : index
    %35 = vector.load %arg9[%c0_24, %c0_25, %c0_26] : memref<1x8x128xf32, #tpu.memory_space<vmem>>, vector<1x8x128xf32>
    %36 = vector.shape_cast %35 : vector<1x8x128xf32> to vector<8x128xf32>
    %37 = vector.shape_cast %34 : vector<8x128xf32> to vector<1x8x128xf32>
    tpu.vector_store %arg9[%c0_24, %c0_25, %c0_26], %37 {strides = array<i32>} : memref<1x8x128xf32, #tpu.memory_space<vmem>>, vector<1x8x128xf32>,
    return
  }
  func.func @transform_0(%arg0: i32, %arg1: i32) -> (i32, i32) {
    %c1_i32 = arith.constant 1 : i32
    %0 = arith.muli %arg0, %c1_i32 : i32
    %1 = arith.addi %0, %arg1 : i32
    %c0_i32 = arith.constant 0 : i32
    %c0_i32_0 = arith.constant 0 : i32
    return %1, %c0_i32 : i32, i32
  }
  func.func @transform_1(%arg0: i32, %arg1: i32) -> (i32, i32) {
    %c0_i32 = arith.constant 0 : i32
    %c0_i32_0 = arith.constant 0 : i32
    %c0_i32_1 = arith.constant 0 : i32
    return %c0_i32, %c0_i32_0 : i32, i32
  }
  func.func @transform_2(%arg0: i32, %arg1: i32) -> (i32, i32) {
    %c0_i32 = arith.constant 0 : i32
    %c0_i32_0 = arith.constant 0 : i32
    %c0_i32_1 = arith.constant 0 : i32
    return %c0_i32, %c0_i32_0 : i32, i32
  }
  func.func @transform_3(%arg0: i32, %arg1: i32) -> (i32, i32) {
    %c0_i32 = arith.constant 0 : i32
    %c0_i32_0 = arith.constant 0 : i32
    %c0_i32_1 = arith.constant 0 : i32
    return %c0_i32, %c0_i32_0 : i32, i32
  }
  func.func @transform_4(%arg0: i32, %arg1: i32) -> (i32, i32) {
    %c0_i32 = arith.constant 0 : i32
    %c0_i32_0 = arith.constant 0 : i32
    %c0_i32_1 = arith.constant 0 : i32
    return %c0_i32, %c0_i32_0 : i32, i32
  }
  func.func @transform_5(%arg0: i32, %arg1: i32) -> (i32, i32) {
    %c1_i32 = arith.constant 1 : i32
    %0 = arith.muli %arg0, %c1_i32 : i32
    %1 = arith.addi %0, %arg1 : i32
    %c0_i32 = arith.constant 0 : i32
    %c0_i32_0 = arith.constant 0 : i32
    return %1, %c0_i32 : i32, i32
  }
  func.func @transform_6(%arg0: i32, %arg1: i32) -> (i32, i32, i32) {
    %c0_i32 = arith.constant 0 : i32
    %c0_i32_0 = arith.constant 0 : i32
    %c0_i32_1 = arith.constant 0 : i32
    return %arg0, %c0_i32, %c0_i32_0 : i32, i32, i32
  }
  func.func @transform_7(%arg0: i32, %arg1: i32) -> (i32, i32, i32) {
    %c0_i32 = arith.constant 0 : i32
    %c0_i32_0 = arith.constant 0 : i32
    %c0_i32_1 = arith.constant 0 : i32
    return %arg0, %c0_i32, %c0_i32_0 : i32, i32, i32
  }
}

module attributes {stable_mosaic.version = 11 : i64} {
  func.func @kernel(%arg0: i32, %arg1: i32, %arg2: memref<256x8xf32, #tpu.memory_space<vmem>>, %arg3: memref<8x128xbf16, #tpu.memory_space<vmem>>, %arg4: memref<1x128xf32, #tpu.memory_space<vmem>>, %arg5: memref<256x128xbf16, #tpu.memory_space<vmem>>, %arg6: memref<1x8x128xf32, #tpu.memory_space<vmem>>, %arg7: memref<1x8x128xf32, #tpu.memory_space<vmem>>) attributes {dimension_semantics = [#tpu.dimension_semantics<parallel>, #tpu.dimension_semantics<arbitrary>], iteration_bounds = array<i64: 2, 1>, scalar_prefetch = 0 : i64, scratch_operands = 0 : i64, tpu.core_type = #tpu.core_type<tc>, window_params = [{transform_indices = @transform_0, window_bounds = array<i64: 256, 8>}, {pipeline_mode = #tpu.pipeline_mode<synchronous>, transform_indices = @transform_1, window_bounds = array<i64: 8, 128>}, {pipeline_mode = #tpu.pipeline_mode<synchronous>, transform_indices = @transform_2, window_bounds = array<i64: 1, 128>}, {transform_indices = @transform_3, window_bounds = array<i64: 256, 128>}, {transform_indices = @transform_4, window_bounds = array<i64: 1, 8, 128>}, {transform_indices = @transform_5, window_bounds = array<i64: 1, 8, 128>}]} {
    %c0 = arith.constant 0 : index
    %c0_0 = arith.constant 0 : index
    %0 = vector.load %arg2[%c0, %c0_0] : memref<256x8xf32, #tpu.memory_space<vmem>>, vector<256x8xf32>
    %1 = arith.truncf %0 : vector<256x8xf32> to vector<256x8xbf16>
    %c0_1 = arith.constant 0 : index
    %c0_2 = arith.constant 0 : index
    %2 = vector.load %arg3[%c0_1, %c0_2] : memref<8x128xbf16, #tpu.memory_space<vmem>>, vector<8x128xbf16>
    %cst = arith.constant dense<0.000000e+00> : vector<256x128xf32>
    %3 = tpu.matmul %1, %2, %cst {dimension_numbers = #tpu.dot_dimension_numbers<[1], [0], [0], [1], [0, 0, 1, 1], [], []>} : vector<256x8xbf16>, vector<8x128xbf16>, vector<256x128xf32> -> vector<256x128xf32>
    %c0_3 = arith.constant 0 : index
    %c0_4 = arith.constant 0 : index
    %4 = vector.load %arg4[%c0_3, %c0_4] : memref<1x128xf32, #tpu.memory_space<vmem>>, vector<1x128xf32>
    %5 = vector.broadcast %4 : vector<1x128xf32> to vector<256x128xf32>
    %6 = arith.addf %3, %5 : vector<256x128xf32>
    %7 = arith.truncf %6 : vector<256x128xf32> to vector<256x128xbf16>
    %c0_5 = arith.constant 0 : index
    %c0_6 = arith.constant 0 : index
    %8 = vector.load %arg5[%c0_5, %c0_6] : memref<256x128xbf16, #tpu.memory_space<vmem>>, vector<256x128xbf16>
    tpu.vector_store %arg5[%c0_5, %c0_6], %7 {strides = array<i32>} : memref<256x128xbf16, #tpu.memory_space<vmem>>, vector<256x128xbf16>,
    %c0_i32 = arith.constant 0 : i32
    %9 = arith.cmpi eq, %arg1, %c0_i32 : i32
    %10 = arith.extui %9 : i1 to i32
    %c0_i32_7 = arith.constant 0 : i32
    %11 = arith.cmpi ne, %10, %c0_i32_7 : i32
    scf.if %11 {
      %cst_22 = arith.constant 0.000000e+00 : f32
      %29 = vector.broadcast %cst_22 : f32 to vector<1x8x128xf32>
      %c0_23 = arith.constant 0 : index
      %c0_24 = arith.constant 0 : index
      %c0_25 = arith.constant 0 : index
      %30 = vector.load %arg6[%c0_23, %c0_24, %c0_25] : memref<1x8x128xf32, #tpu.memory_space<vmem>>, vector<1x8x128xf32>
      tpu.vector_store %arg6[%c0_23, %c0_24, %c0_25], %29 {strides = array<i32>} : memref<1x8x128xf32, #tpu.memory_space<vmem>>, vector<1x8x128xf32>,
      %cst_26 = arith.constant 0.000000e+00 : f32
      %31 = vector.broadcast %cst_26 : f32 to vector<1x8x128xf32>
      %c0_27 = arith.constant 0 : index
      %c0_28 = arith.constant 0 : index
      %c0_29 = arith.constant 0 : index
      %32 = vector.load %arg7[%c0_27, %c0_28, %c0_29] : memref<1x8x128xf32, #tpu.memory_space<vmem>>, vector<1x8x128xf32>
      tpu.vector_store %arg7[%c0_27, %c0_28, %c0_29], %31 {strides = array<i32>} : memref<1x8x128xf32, #tpu.memory_space<vmem>>, vector<1x8x128xf32>,
    } else {
    }
    %c0_8 = arith.constant 0 : index
    %c0_9 = arith.constant 0 : index
    %c0_10 = arith.constant 0 : index
    %12 = vector.load %arg6[%c0_8, %c0_9, %c0_10] : memref<1x8x128xf32, #tpu.memory_space<vmem>>, vector<1x8x128xf32>
    %13 = vector.shape_cast %12 : vector<1x8x128xf32> to vector<8x128xf32>
    %14 = vector.shape_cast %6 : vector<256x128xf32> to vector<32x8x128xf32>
    %cst_11 = arith.constant dense<0.000000e+00> : vector<8x128xf32>
    %15 = vector.multi_reduction <add>, %14, %cst_11 [0] : vector<32x8x128xf32> to vector<8x128xf32>
    %16 = arith.addf %13, %15 : vector<8x128xf32>
    %c0_12 = arith.constant 0 : index
    %c0_13 = arith.constant 0 : index
    %c0_14 = arith.constant 0 : index
    %17 = vector.load %arg6[%c0_12, %c0_13, %c0_14] : memref<1x8x128xf32, #tpu.memory_space<vmem>>, vector<1x8x128xf32>
    %18 = vector.shape_cast %17 : vector<1x8x128xf32> to vector<8x128xf32>
    %19 = vector.shape_cast %16 : vector<8x128xf32> to vector<1x8x128xf32>
    tpu.vector_store %arg6[%c0_12, %c0_13, %c0_14], %19 {strides = array<i32>} : memref<1x8x128xf32, #tpu.memory_space<vmem>>, vector<1x8x128xf32>,
    %c0_15 = arith.constant 0 : index
    %c0_16 = arith.constant 0 : index
    %c0_17 = arith.constant 0 : index
    %20 = vector.load %arg7[%c0_15, %c0_16, %c0_17] : memref<1x8x128xf32, #tpu.memory_space<vmem>>, vector<1x8x128xf32>
    %21 = vector.shape_cast %20 : vector<1x8x128xf32> to vector<8x128xf32>
    %22 = arith.mulf %6, %6 : vector<256x128xf32>
    %23 = vector.shape_cast %22 : vector<256x128xf32> to vector<32x8x128xf32>
    %cst_18 = arith.constant dense<0.000000e+00> : vector<8x128xf32>
    %24 = vector.multi_reduction <add>, %23, %cst_18 [0] : vector<32x8x128xf32> to vector<8x128xf32>
    %25 = arith.addf %21, %24 : vector<8x128xf32>
    %c0_19 = arith.constant 0 : index
    %c0_20 = arith.constant 0 : index
    %c0_21 = arith.constant 0 : index
    %26 = vector.load %arg7[%c0_19, %c0_20, %c0_21] : memref<1x8x128xf32, #tpu.memory_space<vmem>>, vector<1x8x128xf32>
    %27 = vector.shape_cast %26 : vector<1x8x128xf32> to vector<8x128xf32>
    %28 = vector.shape_cast %25 : vector<8x128xf32> to vector<1x8x128xf32>
    tpu.vector_store %arg7[%c0_19, %c0_20, %c0_21], %28 {strides = array<i32>} : memref<1x8x128xf32, #tpu.memory_space<vmem>>, vector<1x8x128xf32>,
    return
  }
  func.func @transform_0(%arg0: i32, %arg1: i32) -> (i32, i32) {
    %c1_i32 = arith.constant 1 : i32
    %0 = arith.muli %arg0, %c1_i32 : i32
    %1 = arith.addi %0, %arg1 : i32
    %c0_i32 = arith.constant 0 : i32
    %c0_i32_0 = arith.constant 0 : i32
    return %1, %c0_i32 : i32, i32
  }
  func.func @transform_1(%arg0: i32, %arg1: i32) -> (i32, i32) {
    %c0_i32 = arith.constant 0 : i32
    %c0_i32_0 = arith.constant 0 : i32
    %c0_i32_1 = arith.constant 0 : i32
    return %c0_i32, %c0_i32_0 : i32, i32
  }
  func.func @transform_2(%arg0: i32, %arg1: i32) -> (i32, i32) {
    %c0_i32 = arith.constant 0 : i32
    %c0_i32_0 = arith.constant 0 : i32
    %c0_i32_1 = arith.constant 0 : i32
    return %c0_i32, %c0_i32_0 : i32, i32
  }
  func.func @transform_3(%arg0: i32, %arg1: i32) -> (i32, i32) {
    %c1_i32 = arith.constant 1 : i32
    %0 = arith.muli %arg0, %c1_i32 : i32
    %1 = arith.addi %0, %arg1 : i32
    %c0_i32 = arith.constant 0 : i32
    %c0_i32_0 = arith.constant 0 : i32
    return %1, %c0_i32 : i32, i32
  }
  func.func @transform_4(%arg0: i32, %arg1: i32) -> (i32, i32, i32) {
    %c0_i32 = arith.constant 0 : i32
    %c0_i32_0 = arith.constant 0 : i32
    %c0_i32_1 = arith.constant 0 : i32
    return %arg0, %c0_i32, %c0_i32_0 : i32, i32, i32
  }
  func.func @transform_5(%arg0: i32, %arg1: i32) -> (i32, i32, i32) {
    %c0_i32 = arith.constant 0 : i32
    %c0_i32_0 = arith.constant 0 : i32
    %c0_i32_1 = arith.constant 0 : i32
    return %arg0, %c0_i32, %c0_i32_0 : i32, i32, i32
  }
}

module attributes {stable_mosaic.version = 11 : i64} {
  func.func @_bn_relu_max_kernel(%arg0: i32, %arg1: memref<16x16x128xbf16, #tpu.memory_space<vmem>>, %arg2: memref<1x128xf32, #tpu.memory_space<vmem>>, %arg3: memref<1x128xf32, #tpu.memory_space<vmem>>, %arg4: memref<16x128xf32, #tpu.memory_space<vmem>>) attributes {dimension_semantics = [#tpu.dimension_semantics<parallel>], iteration_bounds = array<i64: 2>, scalar_prefetch = 0 : i64, scratch_operands = 0 : i64, tpu.core_type = #tpu.core_type<tc>, window_params = [{transform_indices = @transform_0, window_bounds = array<i64: 16, 16, 128>}, {pipeline_mode = #tpu.pipeline_mode<synchronous>, transform_indices = @transform_1, window_bounds = array<i64: 1, 128>}, {pipeline_mode = #tpu.pipeline_mode<synchronous>, transform_indices = @transform_2, window_bounds = array<i64: 1, 128>}, {transform_indices = @transform_3, window_bounds = array<i64: 16, 128>}]} {
    %c0 = arith.constant 0 : index
    %c0_0 = arith.constant 0 : index
    %c0_1 = arith.constant 0 : index
    %0 = vector.load %arg1[%c0, %c0_0, %c0_1] : memref<16x16x128xbf16, #tpu.memory_space<vmem>>, vector<16x16x128xbf16>
    %1 = arith.extf %0 : vector<16x16x128xbf16> to vector<16x16x128xf32>
    %c0_2 = arith.constant 0 : index
    %c0_3 = arith.constant 0 : index
    %2 = vector.load %arg2[%c0_2, %c0_3] : memref<1x128xf32, #tpu.memory_space<vmem>>, vector<1x128xf32>
    %3 = vector.shape_cast %2 : vector<1x128xf32> to vector<1x1x128xf32>
    %4 = vector.broadcast %3 : vector<1x1x128xf32> to vector<16x16x128xf32>
    %5 = arith.mulf %1, %4 : vector<16x16x128xf32>
    %c0_4 = arith.constant 0 : index
    %c0_5 = arith.constant 0 : index
    %6 = vector.load %arg3[%c0_4, %c0_5] : memref<1x128xf32, #tpu.memory_space<vmem>>, vector<1x128xf32>
    %7 = vector.shape_cast %6 : vector<1x128xf32> to vector<1x1x128xf32>
    %8 = vector.broadcast %7 : vector<1x1x128xf32> to vector<16x16x128xf32>
    %9 = arith.addf %5, %8 : vector<16x16x128xf32>
    %cst = arith.constant 0.000000e+00 : f32
    %10 = vector.broadcast %cst : f32 to vector<16x16x128xf32>
    %11 = arith.maximumf %9, %10 : vector<16x16x128xf32>
    %cst_6 = arith.constant dense<0xFF800000> : vector<16x128xf32>
    %12 = vector.multi_reduction <maximumf>, %11, %cst_6 [1] : vector<16x16x128xf32> to vector<16x128xf32>
    %c0_7 = arith.constant 0 : index
    %c0_8 = arith.constant 0 : index
    %13 = vector.load %arg4[%c0_7, %c0_8] : memref<16x128xf32, #tpu.memory_space<vmem>>, vector<16x128xf32>
    tpu.vector_store %arg4[%c0_7, %c0_8], %12 {strides = array<i32>} : memref<16x128xf32, #tpu.memory_space<vmem>>, vector<16x128xf32>,
    return
  }
  func.func @transform_0(%arg0: i32) -> (i32, i32, i32) {
    %c0_i32 = arith.constant 0 : i32
    %c0_i32_0 = arith.constant 0 : i32
    %c0_i32_1 = arith.constant 0 : i32
    return %arg0, %c0_i32, %c0_i32_0 : i32, i32, i32
  }
  func.func @transform_1(%arg0: i32) -> (i32, i32) {
    %c0_i32 = arith.constant 0 : i32
    %c0_i32_0 = arith.constant 0 : i32
    %c0_i32_1 = arith.constant 0 : i32
    return %c0_i32, %c0_i32_0 : i32, i32
  }
  func.func @transform_2(%arg0: i32) -> (i32, i32) {
    %c0_i32 = arith.constant 0 : i32
    %c0_i32_0 = arith.constant 0 : i32
    %c0_i32_1 = arith.constant 0 : i32
    return %c0_i32, %c0_i32_0 : i32, i32
  }
  func.func @transform_3(%arg0: i32) -> (i32, i32) {
    %c0_i32 = arith.constant 0 : i32
    %c0_i32_0 = arith.constant 0 : i32
    return %arg0, %c0_i32 : i32, i32
  }
}

</mosaic_0001>

<llo_original>
// kernel: custom-call.12
$region0: #{custom-call.12}
  %s0 = inlined_call_operand.vmem [shape: f32[2,64], index: 0, kind: output, shape index: {}]

// kernel: pointnet_sa_msg_forward.8
$region0: #{pointnet_sa_msg_forward.8}
  #allocation0 [shape = 'u32[]', space=smem, size = 0x4, offset = 0x4, fixed_abs, tag = 'smem constant byte address 0x4 - core index']
  #allocation1 [shape = 'u32[144,128]{1,0:T(1,128)}', space=vmem, size = 0x12000, scoped, tag = 'internal scratch']
  %s0 = inlined_call_operand.vmem [shape: f32[2,16,8], index: 0, kind: input, shape index: {}]
  %s1 = inlined_call_operand.vmem [shape: f32[2,8,64], index: 1, kind: input, shape index: {}]
  %s2 = inlined_call_operand.vmem [shape: s16[2,2,16,64], index: 2, kind: output, shape index: {}]
  %s3 = sld [smem:[#allocation0]]
  $region78: #{pointnet_sa_msg_forward.8} parent=0
    _
  %s5 = ssub.s32 1, %s3
  %s6 = scalar_select 0, %s5, %s3
  $region1: #{pointnet_sa_msg_forward.8} parent=0
    #allocation2 [shape = 'u8[16384]{0}', space=vmem, size = 0x4000, scoped, tag = 'output window, operand 0']
    loop: start=0, step=1, limit=4
    $region2: #{pointnet_sa_msg_forward.8} parent=1 // loop_pre_header
      _
    $region3: #{pointnet_sa_msg_forward.8} parent=1 // loop_header
      %s8 = sphi 0, %s12
      %p9 = scmp.ge.s32.totalorder %s8, 4
      %s15 = sphi 0, %s27
      %s16 = sphi 0, %s23
      %s17 = sphi 0, %s15
      %s18 = sphi 0, %s16
      %s19 = sphi 0, %s17
      %s20 = sphi 0, %s18
      %s30 = sphi 0, %s32
      %s33 = sphi 0, %s30
      %s34 = sphi 0, %s33
      %s50 = sphi 0, %s34
      %s58 = sphi 0, %s60
      %s61 = sphi 0, %s58
      %s62 = sphi 0, %s61
      %s78 = sphi 0, %s62
      %s86 = sphi 0, %s88
      %s89 = sphi 0, %s86
      %s90 = sphi 0, %s89
      %s106 = sphi 0, %s90
    $region4: #{pointnet_sa_msg_forward.8} parent=1 // loop_header_branch
      %11 = sbr.rel (%p9) target = $region8
    $region5: #{pointnet_sa_msg_forward.8} parent=1 // loop_body
      %s13 = ssub.s32 %s8, 1
      %s14 = ssub.s32 %s8, 2
      %s21 = sadd.s32 1, %s16
      %p22 = scmp.ge.s32.totalorder %s21, 1
      %s23 = scalar_select %p22, 0, %s21
      %s24 = sadd.s32 1, %s15
      %s25 = scalar_select %p22, %s24, %s15
      %p26 = scmp.ge.s32.totalorder %s25, 2
      %s27 = scalar_select %p26, 0, %s25
      %s28 = ssub.s32 %s15, %s27
      %p29 = scmp.eq.s32.totalorder %s28, 0
      %s31 = sadd.s32 %s30, 1
      %s32 = scalar_select %p29, %s30, %s31
      %p35 = pneg %p29
      %p36 = scmp.eq.s32.totalorder %s8, 1
      %p37 = por %p35, %p36
      %p38 = scmp.ne.s32.totalorder %s30, %s33
      %p39 = scmp.eq.s32.totalorder %s8, 0
      %p40 = por %p38, %p39
      %p41 = scmp.ne.s32.totalorder %s30, %s33
      %p42 = scmp.eq.s32.totalorder %s13, 1
      %p43 = por %p41, %p42
      %p44 = scmp.ne.s32.totalorder %s33, %s34
      %p45 = scmp.eq.s32.totalorder %s13, 0
      %p46 = por %p44, %p45
      %p47 = scmp.ne.s32.totalorder %s33, %s34
      %p48 = scmp.eq.s32.totalorder %s14, 1
      %p49 = por %p47, %p48
      %p51 = scmp.ne.s32.totalorder %s34, %s50
      %p52 = scmp.eq.s32.totalorder %s14, 0
      %p53 = por %p51, %p52
      %s54 = ssub.s32 %s15, %s27
      %s55 = ssub.s32 %s16, %s23
      %s56 = sor.u32 %s54, %s55
      %p57 = scmp.eq.s32.totalorder %s56, 0
      %s59 = sadd.s32 %s58, 1
      %s60 = scalar_select %p57, %s58, %s59
      %p63 = pneg %p57
      %p64 = scmp.eq.s32.totalorder %s8, 1
      %p65 = por %p63, %p64
      %p66 = scmp.ne.s32.totalorder %s58, %s61
      %p67 = scmp.eq.s32.totalorder %s8, 0
      %p68 = por %p66, %p67
      %p69 = scmp.ne.s32.totalorder %s58, %s61
      %p70 = scmp.eq.s32.totalorder %s13, 1
      %p71 = por %p69, %p70
      %p72 = scmp.ne.s32.totalorder %s61, %s62
      %p73 = scmp.eq.s32.totalorder %s13, 0
      %p74 = por %p72, %p73
      %p75 = scmp.ne.s32.totalorder %s61, %s62
      %p76 = scmp.eq.s32.totalorder %s14, 1
      %p77 = por %p75, %p76
      %p79 = scmp.ne.s32.totalorder %s62, %s78
      %p80 = scmp.eq.s32.totalorder %s14, 0
      %p81 = por %p79, %p80
      %s82 = ssub.s32 %s15, %s27
      %s83 = ssub.s32 %s16, %s23
      %s84 = sor.u32 %s82, %s83
      %p85 = scmp.eq.s32.totalorder %s84, 0
      %s87 = sadd.s32 %s86, 1
      %s88 = scalar_select %p85, %s86, %s87
      %p91 = pneg %p85
      %p92 = scmp.eq.s32.totalorder %s8, 1
      %p93 = por %p91, %p92
      %p94 = scmp.ne.s32.totalorder %s86, %s89
      %p95 = scmp.eq.s32.totalorder %s8, 0
      %p96 = por %p94, %p95
      %p97 = scmp.ne.s32.totalorder %s86, %s89
      %p98 = scmp.eq.s32.totalorder %s13, 1
      %p99 = por %p97, %p98
      %p100 = scmp.ne.s32.totalorder %s89, %s90
      %p101 = scmp.eq.s32.totalorder %s13, 0
      %p102 = por %p100, %p101
      %p103 = scmp.ne.s32.totalorder %s89, %s90
      %p104 = scmp.eq.s32.totalorder %s14, 1
      %p105 = por %p103, %p104
      %p107 = scmp.ne.s32.totalorder %s90, %s106
      %p108 = scmp.eq.s32.totalorder %s14, 0
      %p109 = por %p107, %p108
      %p110 = scmp.le.s32.totalorder 1, %s8
      %p111 = scmp.lt.s32.totalorder %s8, 3
      %p112 = pnand %p110, %p111
      %p113 = pneg %p112
      // Predicated region
      $region9: #{pointnet_sa_msg_forward.8} parent=5 // pred_check
        _
      $region10: #{pointnet_sa_msg_forward.8} parent=5 // pred_check_branch
        %115 = sbr.rel (%p112) target = $region12
      $region11: #{pointnet_sa_msg_forward.8} parent=5 // pred_region
        %s116 = ssub.s32 %s8, 1
      $region12: #{pointnet_sa_msg_forward.8} parent=5 // pred_fallthru
        _
      %p117 = scmp.lt.s32.totalorder %s8, 2
      // Predicated region
      $region13: #{pointnet_sa_msg_forward.8} parent=5 // pred_check
        %p118 = pneg %p117
      $region14: #{pointnet_sa_msg_forward.8} parent=5 // pred_check_branch
        %120 = sbr.rel (%p118) target = $region16
      $region15: #{pointnet_sa_msg_forward.8} parent=5 // pred_region
        // Predicated region
        $region17: #{pointnet_sa_msg_forward.8} parent=15 // pred_check
          %p121 = pneg %p40
        $region18: #{pointnet_sa_msg_forward.8} parent=15 // pred_check_branch
          %123 = sbr.rel (%p121) target = $region20
        $region19: #{pointnet_sa_msg_forward.8} parent=15 // pred_region
          %p124 = scmp.lt.s32.totalorder %s15, 1
          %s125 = scalar_select %p124, %s15, 1
          %s126 = smul.addr %s125, 2
          %s127 = smul.addr %s126, 8
          %s128 = scalar_lea.vmem %s0, %s127
        $region20: #{pointnet_sa_msg_forward.8} parent=15 // pred_fallthru
          _
        // Predicated region
        $region21: #{pointnet_sa_msg_forward.8} parent=15 // pred_check
          %p129 = pneg %p68
        $region22: #{pointnet_sa_msg_forward.8} parent=15 // pred_check_branch
          %131 = sbr.rel (%p129) target = $region24
        $region23: #{pointnet_sa_msg_forward.8} parent=15 // pred_region
          %p132 = scmp.lt.s32.totalorder %s15, 1
          %s133 = scalar_select %p132, %s15, 1
          %p134 = scmp.lt.s32.totalorder %s16, 0
          %s135 = scalar_select %p134, %s16, 0
          %s136 = sadd.s32 %s135, %s133
          %s137 = smul.addr %s136, 8
          %s138 = scalar_lea.vmem %s1, %s137
        $region24: #{pointnet_sa_msg_forward.8} parent=15 // pred_fallthru
          _
      $region16: #{pointnet_sa_msg_forward.8} parent=5 // pred_fallthru
        _
      %p139 = scmp.le.s32.totalorder 1, %s8
      %p140 = scmp.lt.s32.totalorder %s8, 3
      %p141 = pnand %p139, %p140
      %p142 = pneg %p141
      // Predicated region
      $region25: #{pointnet_sa_msg_forward.8} parent=5 // pred_check
        _
      $region26: #{pointnet_sa_msg_forward.8} parent=5 // pred_check_branch
        %144 = sbr.rel (%p141) target = $region28
      $region27: #{pointnet_sa_msg_forward.8} parent=5 // pred_region
        %s145 = ssub.s32 %s8, 1
        %p146 = scmp.lt.s32.totalorder %s17, 1
        %s147 = scalar_select %p146, %s17, 1
        %s148 = smul.addr %s147, 2
        %s149 = smul.addr %s148, 8
        %s150 = scalar_lea.vmem %s0, %s149
        %p151 = pneg %p46
        %p152 = pneg %p43
        %p153 = scmp.lt.s32.totalorder %s17, 1
        %s154 = scalar_select %p153, %s17, 1
        %p155 = scmp.lt.s32.totalorder %s18, 0
        %s156 = scalar_select %p155, %s18, 0
        %s157 = sadd.s32 %s156, %s154
        %s158 = smul.addr %s157, 8
        %s159 = scalar_lea.vmem %s1, %s158
        %p160 = pneg %p74
        %p161 = pneg %p71
        %p162 = pneg %p102
        %p163 = pneg %p99
        %s164 = sand.u32 %s89, 1
        %s165 = sand.u32 %s89, 1
        %s166 = smul.addr %s165, 16
        %s167 = scalar_lea.vmem [#allocation2], %s166
        %p168 = scmp.lt.s32.totalorder %s17, 1
        %s169 = scalar_select %p168, %s17, 1
        %s170 = smul.addr %s169, 2
        %s171 = smul.addr %s170, 8
        %s172 = scalar_lea.vmem %s0, %s171
        %p173 = scmp.lt.s32.totalorder %s17, 1
        %s174 = scalar_select %p173, %s17, 1
        %p175 = scmp.lt.s32.totalorder %s18, 0
        %s176 = scalar_select %p175, %s18, 0
        %s177 = sadd.s32 %s176, %s174
        %s178 = smul.addr %s177, 8
        %s179 = scalar_lea.vmem %s1, %s178
        %v180 = vld [vmem:[%s172] sm:$0xff]
        %v181 = vld [vmem:[%s172 + $0x8] sm:$0xff]
        %v182 = vld [vmem:[%s179] sm:$0xff]
        %vm183 = vcmask 64512
        %v185 = vsel %vm183, %v180, 0
        %v188 = vsel %vm183, %v181, 0
        %190 = vmatprep.subr.mxu0 0.0
        %191 = vmatpush1.msra.mxu0 %v182
        %192 = vmatprep.subr.mxu0 0.0
        %193 = vmatpush1.msra.mxu0 0.0
        %194 = vmatprep.subr.mxu0 0.0
        %195 = vmatpush1.msra.mxu0 0.0
        %196 = vmatprep.subr.mxu0 0.0
        %197 = vmatpush1.msra.mxu0 0.0
        %198 = vmatprep.subr.mxu0 0.0
        %199 = vmatpush1.msra.mxu0 0.0
        %200 = vmatprep.subr.mxu0 0.0
        %201 = vmatpush1.msra.mxu0 0.0
        %202 = vmatprep.subr.mxu0 0.0
        %203 = vmatpush1.msra.mxu0 0.0
        %204 = vmatprep.subr.mxu0 0.0
        %205 = vmatpush1.msra.mxu0 0.0
        %206 = vmatprep.subr.mxu0 0.0
        %207 = vmatpush1.msra.mxu0 0.0
        %208 = vmatprep.subr.mxu0 0.0
        %209 = vmatpush1.msra.mxu0 0.0
        %210 = vmatprep.subr.mxu0 0.0
        %211 = vmatpush1.msra.mxu0 0.0
        %212 = vmatprep.subr.mxu0 0.0
        %213 = vmatpush1.msra.mxu0 0.0
        %214 = vmatprep.subr.mxu0 0.0
        %215 = vmatpush1.msra.mxu0 0.0
        %216 = vmatprep.subr.mxu0 0.0
        %217 = vmatpush1.msra.mxu0 0.0
        %218 = vmatprep.subr.mxu0 0.0
        %219 = vmatpush1.msra.mxu0 0.0
        %220 = vmatprep.subr.mxu0 0.0
        %221 = vmatpush1.msra.mxu0 0.0
        %222 = vmatprep.subr.mxu0 0.0
        %223 = vmatpush1.msra.mxu0 0.0
        %224 = vmatprep.subr.mxu0 0.0
        %225 = vmatpush1.msra.mxu0 0.0
        %226 = vmatprep.subr.mxu0 0.0
        %227 = vmatpush1.msra.mxu0 0.0
        %228 = vmatprep.subr.mxu0 0.0
        %229 = vmatpush1.msra.mxu0 0.0
        %230 = vmatprep.subr.mxu0 0.0
        %231 = vmatpush1.msra.mxu0 0.0
        %232 = vmatprep.subr.mxu0 0.0
        %233 = vmatpush1.msra.mxu0 0.0
        %234 = vmatprep.subr.mxu0 0.0
        %235 = vmatpush1.msra.mxu0 0.0
        %236 = vmatprep.subr.mxu0 0.0
        %237 = vmatpush1.msra.mxu0 0.0
        %238 = vmatprep.subr.mxu0 0.0
        %239 = vmatpush1.msra.mxu0 0.0
        %240 = vmatprep.subr.mxu0 0.0
        %241 = vmatpush1.msra.mxu0 0.0
        %242 = vmatprep.subr.mxu0 0.0
        %243 = vmatpush1.msra.mxu0 0.0
        %244 = vmatprep.subr.mxu0 0.0
        %245 = vmatpush1.msra.mxu0 0.0
        %246 = vmatprep.subr.mxu0 0.0
        %247 = vmatpush1.msra.mxu0 0.0
        %248 = vmatprep.subr.mxu0 0.0
        %249 = vmatpush1.msra.mxu0 0.0
        %250 = vmatprep.subr.mxu0 0.0
        %251 = vmatpush1.msra.mxu0 0.0
        %252 = vmatprep.subr.mxu0 0.0
        %253 = vmatpush1.msra.mxu0 0.0
        %254 = vmatprep.mubr.f32.mxu0 0.0
        %255 = vmatmul.mubr.f32.gmra.mrb[0].mxu0 %v185
        %v256 = vpop.f32.mrb[0].mxu0
        %v257 = vadd.f32 0.0, %v256
        %v258 = vpop.f32.mrb[0].mxu0
        %259 = vmatprep.mubr.f32.mxu0 0.0
        %260 = vmatmul.mubr.f32.gmra.mrb[0].mxu0 %v188
        %v261 = vpop.f32.mrb[0].mxu0
        %v262 = vadd.f32 0.0, %v261
        %v263 = vpop.f32.mrb[0].mxu0
        %264 = vdwg.mxu0
        %v265 = vmul.f32 %v180, %v180
        %v266 = vmul.f32 %v181, %v181
        %v267 = vsel %vm183, %v265, 0.0
        %268 = vadd.xlane.f32.xlu0 %v267
        %v269 = vpop.xlane.xlu0 %268
        %v270 = vsel %vm183, %v266, 0.0
        %271 = vadd.xlane.f32.xlu0 %v270
        %v272 = vpop.xlane.xlu0 %271
        %v273 = vmul.f32 %v182, %v182
        %vm274 = vcmask 523264
        %v275 = vsel %vm274, %v273, 0.0
        %v276 = vrot.slane %v275, 4
        %v277 = vadd.f32 %v275, %v276
        %v278 = vrot.slane %v277, 2
        %v279 = vadd.f32 %v277, %v278
        %v280 = vrot.slane %v279, 1
        %v281 = vadd.f32 %v279, %v280
        %v282 = vadd.f32 %v269, %v281
        %v283 = vadd.f32 %v272, %v281
        %v284 = vmul.f32 %v257, 2.0
        %v285 = vmul.f32 %v262, 2.0
        %v286 = vsub.f32 %v282, %v284
        %v287 = vsub.f32 %v283, %v285
        %s288 = smul.u32 %s18, 64
        %v289 = vlaneseq
        %v290 = vand.u32 %v289, 127
        %v291 = vstv %s288
        %v292 = vadd.s32 %v291, %v290
        %vm293 = vcmp.gt.f32.partialorder %v286, 0.04
        %vm294 = vcmp.gt.f32.partialorder %v287, 0.04
        %v295 = vsel %vm293, 64, %v292
        %v296 = vsel %vm294, 64, %v292
        %v297 = vpack.c.b16 %v295, %v295
        %v298 = vpack.c.b16 %v296, %v296
        %vm299 = vcmask 519168
        %300 = vst.msk [vmem:[%s167] sm:$0xf] %vm299, %v297
        %301 = vst.msk [vmem:[%s167 + $0x4] sm:$0xf] %vm299, %v298
        %vm302 = vcmp.gt.f32.partialorder %v286, 0.16
        %vm303 = vcmp.gt.f32.partialorder %v287, 0.16
        %v304 = vsel %vm302, 64, %v292
        %v305 = vsel %vm303, 64, %v292
        %v306 = vpack.c.b16 %v304, %v304
        %v307 = vpack.c.b16 %v305, %v305
        %s308 = scalar_lea.vmem %s167, 8 [#allocation2]
        %309 = vst.msk [vmem:[%s308] sm:$0xf] %vm299, %v306
        %310 = vst.msk [vmem:[%s308 + $0x4] sm:$0xf] %vm299, %v307
        %s311 = sand.u32 %s89, 1
        %s312 = sand.u32 %s89, 1
        %s313 = smul.addr %s312, 16
        %s314 = scalar_lea.vmem [#allocation2], %s313
        // Predicated region
        $region29: #{pointnet_sa_msg_forward.8} parent=27 // pred_check
          %p315 = pneg %p99
        $region30: #{pointnet_sa_msg_forward.8} parent=27 // pred_check_branch
          %317 = sbr.rel (%p315) target = $region32
        $region31: #{pointnet_sa_msg_forward.8} parent=27 // pred_region
          %s318 = smul.addr %s17, 2
          %s319 = sadd.s32 %s18, %s318
          %s320 = smul.addr %s319, 4
          %s321 = scalar_lea.vmem %s2, %s320
          // Predicated region
          $region33: #{pointnet_sa_msg_forward.8} parent=31 // pred_check
            _
          $region34: #{pointnet_sa_msg_forward.8} parent=31 // pred_check_branch
            %323 = sbr.rel (0) target = $region36
          $region35: #{pointnet_sa_msg_forward.8} parent=31 // pred_region
            // Predicated region
            $region37: #{pointnet_sa_msg_forward.8} parent=35 // pred_check
              _
            $region38: #{pointnet_sa_msg_forward.8} parent=35 // pred_check_branch
              %325 = sbr.rel target = $region40
            $region39: #{pointnet_sa_msg_forward.8} parent=35 // pred_region
              // Predicated region
              $region52: #{pointnet_sa_msg_forward.8} parent=39 // pred_check
                _
              $region53: #{pointnet_sa_msg_forward.8} parent=39 // pred_check_branch
                %346 = sbr.rel (0) target = $region55
              $region54: #{pointnet_sa_msg_forward.8} parent=39 // pred_region
                loop: start=0, step=1, limit=1
                $region56: #{pointnet_sa_msg_forward.8} parent=54 // loop_pre_header
                  _
                $region57: #{pointnet_sa_msg_forward.8} parent=54 // loop_header
                  %s348 = sphi 0, %s352
                  %p349 = scmp.ge.s32.totalorder %s348, 1
                  %s353 = sphi %s314, %s314
                  %s354 = sphi %s321, %s321
                $region58: #{pointnet_sa_msg_forward.8} parent=54 // loop_header_branch
                  %351 = sbr.rel (%p349) target = $region62
                $region59: #{pointnet_sa_msg_forward.8} parent=54 // loop_body
                  _
                $region60: #{pointnet_sa_msg_forward.8} parent=54 // loop_footer
                  %s352 = sadd.s32 1, %s348
                $region61: #{pointnet_sa_msg_forward.8} parent=54 // loop_footer_branch
                  %347 = sbr.rel target = $region57
                $region62: #{pointnet_sa_msg_forward.8} parent=54 // loop_exit
                  _
                loop: start=0, step=1, limit=1
                $region63: #{pointnet_sa_msg_forward.8} parent=54 // loop_pre_header
                  _
                $region64: #{pointnet_sa_msg_forward.8} parent=54 // loop_header
                  %s357 = sphi 0, %s361
                  %p358 = scmp.ge.s32.totalorder %s357, 1
                  %s362 = sphi %s314, %s314
                  %s363 = sphi %s321, %s321
                $region65: #{pointnet_sa_msg_forward.8} parent=54 // loop_header_branch
                  %360 = sbr.rel (%p358) target = $region69
                $region66: #{pointnet_sa_msg_forward.8} parent=54 // loop_body
                  %v364 = vld [vmem:[%s362] sm:$0xf]
                  %365 = vst [vmem:[%s363] sm:$0xf] %v364
                  %v366 = vld [vmem:[%s362 + $0x4] sm:$0xf]
                  %367 = vst [vmem:[%s363 + $0x4] sm:$0xf] %v366
                  %v368 = vld [vmem:[%s362 + $0x8] sm:$0xf]
                  %369 = vst [vmem:[%s363 + $0x10] sm:$0xf] %v368
                  %v370 = vld [vmem:[%s362 + $0xc] sm:$0xf]
                  %371 = vst [vmem:[%s363 + $0x14] sm:$0xf] %v370
                $region67: #{pointnet_sa_msg_forward.8} parent=54 // loop_footer
                  %s361 = sadd.s32 1, %s357
                $region68: #{pointnet_sa_msg_forward.8} parent=54 // loop_footer_branch
                  %356 = sbr.rel target = $region64
                $region69: #{pointnet_sa_msg_forward.8} parent=54 // loop_exit
                  _
              $region55: #{pointnet_sa_msg_forward.8} parent=39 // pred_fallthru
                _
            $region40: #{pointnet_sa_msg_forward.8} parent=35 // pred_fallthru
              _
            // Predicated region
            $region41: #{pointnet_sa_msg_forward.8} parent=35 // pred_check
              _
            $region42: #{pointnet_sa_msg_forward.8} parent=35 // pred_check_branch
              %327 = sbr.rel (0) target = $region44
            $region43: #{pointnet_sa_msg_forward.8} parent=35 // pred_region
              loop: start=0, step=1, limit=1
              $region45: #{pointnet_sa_msg_forward.8} parent=43 // loop_pre_header
                _
              $region46: #{pointnet_sa_msg_forward.8} parent=43 // loop_header
                %s330 = sphi 0, %s334
                %p331 = scmp.ge.s32.totalorder %s330, 1
                %s335 = sphi %s314, %s314
                %s336 = sphi %s321, %s321
              $region47: #{pointnet_sa_msg_forward.8} parent=43 // loop_header_branch
                %333 = sbr.rel (%p331) target = $region51
              $region48: #{pointnet_sa_msg_forward.8} parent=43 // loop_body
                %v337 = vld [vmem:[%s335] sm:$0xf]
                %338 = vst [vmem:[%s336] sm:$0xf] %v337
                %v339 = vld [vmem:[%s335 + $0x4] sm:$0xf]
                %340 = vst [vmem:[%s336 + $0x4] sm:$0xf] %v339
                %v341 = vld [vmem:[%s335 + $0x8] sm:$0xf]
                %342 = vst [vmem:[%s336 + $0x10] sm:$0xf] %v341
                %v343 = vld [vmem:[%s335 + $0xc] sm:$0xf]
                %344 = vst [vmem:[%s336 + $0x14] sm:$0xf] %v343
              $region49: #{pointnet_sa_msg_forward.8} parent=43 // loop_footer
                %s334 = sadd.s32 1, %s330
              $region50: #{pointnet_sa_msg_forward.8} parent=43 // loop_footer_branch
                %329 = sbr.rel target = $region46
              $region51: #{pointnet_sa_msg_forward.8} parent=43 // loop_exit
                _
            $region44: #{pointnet_sa_msg_forward.8} parent=35 // pred_fallthru
              _
          $region36: #{pointnet_sa_msg_forward.8} parent=31 // pred_fallthru
            _
          %372 = vnop
        $region32: #{pointnet_sa_msg_forward.8} parent=27 // pred_fallthru
          _
      $region28: #{pointnet_sa_msg_forward.8} parent=5 // pred_fallthru
        _
      %p373 = scmp.le.s32.totalorder 2, %s8
      // Predicated region
      $region70: #{pointnet_sa_msg_forward.8} parent=5 // pred_check
        %p374 = pneg %p373
      $region71: #{pointnet_sa_msg_forward.8} parent=5 // pred_check_branch
        %376 = sbr.rel (%p374) target = $region73
      $region72: #{pointnet_sa_msg_forward.8} parent=5 // pred_region
        %s377 = ssub.s32 %s8, 2
        // Predicated region
        $region74: #{pointnet_sa_msg_forward.8} parent=72 // pred_check
          %p378 = pneg %p105
        $region75: #{pointnet_sa_msg_forward.8} parent=72 // pred_check_branch
          %380 = sbr.rel (%p378) target = $region77
        $region76: #{pointnet_sa_msg_forward.8} parent=72 // pred_region
          %s381 = sand.u32 %s90, 1
          %s382 = sand.u32 %s90, 1
          %s383 = smul.addr %s382, 16
          %s384 = scalar_lea.vmem [#allocation2], %s383
        $region77: #{pointnet_sa_msg_forward.8} parent=72 // pred_fallthru
          _
      $region73: #{pointnet_sa_msg_forward.8} parent=5 // pred_fallthru
        _
    $region6: #{pointnet_sa_msg_forward.8} parent=1 // loop_footer
      %s12 = sadd.s32 1, %s8
    $region7: #{pointnet_sa_msg_forward.8} parent=1 // loop_footer_branch
      %7 = sbr.rel target = $region3
    $region8: #{pointnet_sa_msg_forward.8} parent=1 // loop_exit
      _

// kernel: pointnet_sa_msg_forward.9
$region0: #{pointnet_sa_msg_forward.9}
  #allocation0 [shape = 'u32[]', space=smem, size = 0x4, offset = 0x4, fixed_abs, tag = 'smem constant byte address 0x4 - core index']
  #allocation1 [shape = 'u32[144,128]{1,0:T(1,128)}', space=vmem, size = 0x12000, scoped, tag = 'internal scratch']
  %s0 = inlined_call_operand.vmem [shape: f32[256,8], index: 0, kind: input, shape index: {}]
  %s1 = inlined_call_operand.vmem [shape: bf16[8,128], index: 1, kind: input, shape index: {}]
  %s2 = inlined_call_operand.vmem [shape: f32[1,128], index: 2, kind: input, shape index: {}]
  %s3 = inlined_call_operand.vmem [shape: bf16[256,128], index: 3, kind: output, shape index: {0}]
  %s4 = inlined_call_operand.vmem [shape: f32[2,8,128], index: 4, kind: output, shape index: {1}]
  %s5 = inlined_call_operand.vmem [shape: f32[2,8,128], index: 5, kind: output, shape index: {2}]
  %6 = xla_tuple %s3, %s4, %s5
  %s7 = sld [smem:[#allocation0]]
  $region65: #{pointnet_sa_msg_forward.9} parent=0
    _
  %s9 = ssub.s32 1, %s7
  %s10 = scalar_select 0, %s9, %s7
  loop: start=0, step=1, limit=4
  $region2: #{pointnet_sa_msg_forward.9} parent=0 // loop_pre_header
    _
  $region3: #{pointnet_sa_msg_forward.9} parent=0 // loop_header
    %s12 = sphi 0, %s16
    %p13 = scmp.ge.s32.totalorder %s12, 4
    %s19 = sphi 0, %s31
    %s20 = sphi 0, %s27
    %s21 = sphi 0, %s19
    %s22 = sphi 0, %s20
    %s23 = sphi 0, %s21
    %s24 = sphi 0, %s22
    %s36 = sphi 0, %s38
    %s39 = sphi 0, %s36
    %s40 = sphi 0, %s39
    %s56 = sphi 0, %s40
    %s60 = sphi 0, %s60
    %s62 = sphi 0, %s60
    %s63 = sphi 0, %s62
    %s77 = sphi 0, %s63
    %s81 = sphi 0, %s81
    %s83 = sphi 0, %s81
    %s84 = sphi 0, %s83
    %s98 = sphi 0, %s84
    %s106 = sphi 0, %s108
    %s109 = sphi 0, %s106
    %s110 = sphi 0, %s109
    %s126 = sphi 0, %s110
    %s132 = sphi 0, %s134
    %s135 = sphi 0, %s132
    %s136 = sphi 0, %s135
    %s152 = sphi 0, %s136
    %s158 = sphi 0, %s160
    %s161 = sphi 0, %s158
    %s162 = sphi 0, %s161
    %s178 = sphi 0, %s162
  $region4: #{pointnet_sa_msg_forward.9} parent=0 // loop_header_branch
    %15 = sbr.rel (%p13) target = $region8
  $region5: #{pointnet_sa_msg_forward.9} parent=0 // loop_body
    %s17 = ssub.s32 %s12, 1
    %s18 = ssub.s32 %s12, 2
    %s25 = sadd.s32 1, %s20
    %p26 = scmp.ge.s32.totalorder %s25, 1
    %s27 = scalar_select %p26, 0, %s25
    %s28 = sadd.s32 1, %s19
    %s29 = scalar_select %p26, %s28, %s19
    %p30 = scmp.ge.s32.totalorder %s29, 2
    %s31 = scalar_select %p30, 0, %s29
    %s32 = sadd.s32 %s19, %s20
    %s33 = sadd.s32 %s31, %s27
    %s34 = ssub.s32 %s32, %s33
    %p35 = scmp.eq.s32.totalorder %s34, 0
    %s37 = sadd.s32 %s36, 1
    %s38 = scalar_select %p35, %s36, %s37
    %p41 = pneg %p35
    %p42 = scmp.eq.s32.totalorder %s12, 1
    %p43 = por %p41, %p42
    %p44 = scmp.ne.s32.totalorder %s36, %s39
    %p45 = scmp.eq.s32.totalorder %s12, 0
    %p46 = por %p44, %p45
    %p47 = scmp.ne.s32.totalorder %s36, %s39
    %p48 = scmp.eq.s32.totalorder %s17, 1
    %p49 = por %p47, %p48
    %p50 = scmp.ne.s32.totalorder %s39, %s40
    %p51 = scmp.eq.s32.totalorder %s17, 0
    %p52 = por %p50, %p51
    %p53 = scmp.ne.s32.totalorder %s39, %s40
    %p54 = scmp.eq.s32.totalorder %s18, 1
    %p55 = por %p53, %p54
    %p57 = scmp.ne.s32.totalorder %s40, %s56
    %p58 = scmp.eq.s32.totalorder %s18, 0
    %p59 = por %p57, %p58
    %s61 = sadd.s32 %s60, 1
    %p64 = scmp.eq.s32.totalorder %s12, 1
    %p65 = scmp.ne.s32.totalorder %s60, %s62
    %p66 = scmp.eq.s32.totalorder %s12, 0
    %p67 = por %p65, %p66
    %p68 = scmp.ne.s32.totalorder %s60, %s62
    %p69 = scmp.eq.s32.totalorder %s17, 1
    %p70 = por %p68, %p69
    %p71 = scmp.ne.s32.totalorder %s62, %s63
    %p72 = scmp.eq.s32.totalorder %s17, 0
    %p73 = por %p71, %p72
    %p74 = scmp.ne.s32.totalorder %s62, %s63
    %p75 = scmp.eq.s32.totalorder %s18, 1
    %p76 = por %p74, %p75
    %p78 = scmp.ne.s32.totalorder %s63, %s77
    %p79 = scmp.eq.s32.totalorder %s18, 0
    %p80 = por %p78, %p79
    %s82 = sadd.s32 %s81, 1
    %p85 = scmp.eq.s32.totalorder %s12, 1
    %p86 = scmp.ne.s32.totalorder %s81, %s83
    %p87 = scmp.eq.s32.totalorder %s12, 0
    %p88 = por %p86, %p87
    %p89 = scmp.ne.s32.totalorder %s81, %s83
    %p90 = scmp.eq.s32.totalorder %s17, 1
    %p91 = por %p89, %p90
    %p92 = scmp.ne.s32.totalorder %s83, %s84
    %p93 = scmp.eq.s32.totalorder %s17, 0
    %p94 = por %p92, %p93
    %p95 = scmp.ne.s32.totalorder %s83, %s84
    %p96 = scmp.eq.s32.totalorder %s18, 1
    %p97 = por %p95, %p96
    %p99 = scmp.ne.s32.totalorder %s84, %s98
    %p100 = scmp.eq.s32.totalorder %s18, 0
    %p101 = por %p99, %p100
    %s102 = sadd.s32 %s19, %s20
    %s103 = sadd.s32 %s31, %s27
    %s104 = ssub.s32 %s102, %s103
    %p105 = scmp.eq.s32.totalorder %s104, 0
    %s107 = sadd.s32 %s106, 1
    %s108 = scalar_select %p105, %s106, %s107
    %p111 = pneg %p105
    %p112 = scmp.eq.s32.totalorder %s12, 1
    %p113 = por %p111, %p112
    %p114 = scmp.ne.s32.totalorder %s106, %s109
    %p115 = scmp.eq.s32.totalorder %s12, 0
    %p116 = por %p114, %p115
    %p117 = scmp.ne.s32.totalorder %s106, %s109
    %p118 = scmp.eq.s32.totalorder %s17, 1
    %p119 = por %p117, %p118
    %p120 = scmp.ne.s32.totalorder %s109, %s110
    %p121 = scmp.eq.s32.totalorder %s17, 0
    %p122 = por %p120, %p121
    %p123 = scmp.ne.s32.totalorder %s109, %s110
    %p124 = scmp.eq.s32.totalorder %s18, 1
    %p125 = por %p123, %p124
    %p127 = scmp.ne.s32.totalorder %s110, %s126
    %p128 = scmp.eq.s32.totalorder %s18, 0
    %p129 = por %p127, %p128
    %s130 = ssub.s32 %s19, %s31
    %p131 = scmp.eq.s32.totalorder %s130, 0
    %s133 = sadd.s32 %s132, 1
    %s134 = scalar_select %p131, %s132, %s133
    %p137 = pneg %p131
    %p138 = scmp.eq.s32.totalorder %s12, 1
    %p139 = por %p137, %p138
    %p140 = scmp.ne.s32.totalorder %s132, %s135
    %p141 = scmp.eq.s32.totalorder %s12, 0
    %p142 = por %p140, %p141
    %p143 = scmp.ne.s32.totalorder %s132, %s135
    %p144 = scmp.eq.s32.totalorder %s17, 1
    %p145 = por %p143, %p144
    %p146 = scmp.ne.s32.totalorder %s135, %s136
    %p147 = scmp.eq.s32.totalorder %s17, 0
    %p148 = por %p146, %p147
    %p149 = scmp.ne.s32.totalorder %s135, %s136
    %p150 = scmp.eq.s32.totalorder %s18, 1
    %p151 = por %p149, %p150
    %p153 = scmp.ne.s32.totalorder %s136, %s152
    %p154 = scmp.eq.s32.totalorder %s18, 0
    %p155 = por %p153, %p154
    %s156 = ssub.s32 %s19, %s31
    %p157 = scmp.eq.s32.totalorder %s156, 0
    %s159 = sadd.s32 %s158, 1
    %s160 = scalar_select %p157, %s158, %s159
    %p163 = pneg %p157
    %p164 = scmp.eq.s32.totalorder %s12, 1
    %p165 = por %p163, %p164
    %p166 = scmp.ne.s32.totalorder %s158, %s161
    %p167 = scmp.eq.s32.totalorder %s12, 0
    %p168 = por %p166, %p167
    %p169 = scmp.ne.s32.totalorder %s158, %s161
    %p170 = scmp.eq.s32.totalorder %s17, 1
    %p171 = por %p169, %p170
    %p172 = scmp.ne.s32.totalorder %s161, %s162
    %p173 = scmp.eq.s32.totalorder %s17, 0
    %p174 = por %p172, %p173
    %p175 = scmp.ne.s32.totalorder %s161, %s162
    %p176 = scmp.eq.s32.totalorder %s18, 1
    %p177 = por %p175, %p176
    %p179 = scmp.ne.s32.totalorder %s162, %s178
    %p180 = scmp.eq.s32.totalorder %s18, 0
    %p181 = por %p179, %p180
    %p182 = scmp.le.s32.totalorder 1, %s12
    %p183 = scmp.lt.s32.totalorder %s12, 3
    %p184 = pnand %p182, %p183
    %p185 = pneg %p184
    // Predicated region
    $region9: #{pointnet_sa_msg_forward.9} parent=5 // pred_check
      _
    $region10: #{pointnet_sa_msg_forward.9} parent=5 // pred_check_branch
      %187 = sbr.rel (%p184) target = $region12
    $region11: #{pointnet_sa_msg_forward.9} parent=5 // pred_region
      %s188 = ssub.s32 %s12, 1
      // Predicated region
      $region13: #{pointnet_sa_msg_forward.9} parent=11 // pred_check
        %p189 = pneg %p73
      $region14: #{pointnet_sa_msg_forward.9} parent=11 // pred_check_branch
        %191 = sbr.rel (%p189) target = $region16
      $region15: #{pointnet_sa_msg_forward.9} parent=11 // pred_region
        _
      $region16: #{pointnet_sa_msg_forward.9} parent=11 // pred_fallthru
        _
      // Predicated region
      $region17: #{pointnet_sa_msg_forward.9} parent=11 // pred_check
        %p192 = pneg %p94
      $region18: #{pointnet_sa_msg_forward.9} parent=11 // pred_check_branch
        %194 = sbr.rel (%p192) target = $region20
      $region19: #{pointnet_sa_msg_forward.9} parent=11 // pred_region
        _
      $region20: #{pointnet_sa_msg_forward.9} parent=11 // pred_fallthru
        _
    $region12: #{pointnet_sa_msg_forward.9} parent=5 // pred_fallthru
      _
    %p195 = scmp.lt.s32.totalorder %s12, 2
    // Predicated region
    $region21: #{pointnet_sa_msg_forward.9} parent=5 // pred_check
      %p196 = pneg %p195
    $region22: #{pointnet_sa_msg_forward.9} parent=5 // pred_check_branch
      %198 = sbr.rel (%p196) target = $region24
    $region23: #{pointnet_sa_msg_forward.9} parent=5 // pred_region
      // Predicated region
      $region25: #{pointnet_sa_msg_forward.9} parent=23 // pred_check
        %p199 = pneg %p46
      $region26: #{pointnet_sa_msg_forward.9} parent=23 // pred_check_branch
        %201 = sbr.rel (%p199) target = $region28
      $region27: #{pointnet_sa_msg_forward.9} parent=23 // pred_region
        %s202 = sadd.s32 %s19, %s20
        %s203 = smul.u32 16, %s202
        %p204 = scmp.lt.s32.totalorder %s203, 31
        %s205 = scalar_select %p204, %s203, 31
        %s206 = smul.addr %s205, 8
        %s207 = scalar_lea.vmem %s0, %s206
        %s208 = sadd.s32 %s19, %s20
        %s209 = smul.u32 16, %s208
      $region28: #{pointnet_sa_msg_forward.9} parent=23 // pred_fallthru
        _
    $region24: #{pointnet_sa_msg_forward.9} parent=5 // pred_fallthru
      _
    %p210 = scmp.le.s32.totalorder 1, %s12
    %p211 = scmp.lt.s32.totalorder %s12, 3
    %p212 = pnand %p210, %p211
    %p213 = pneg %p212
    // Predicated region
    $region29: #{pointnet_sa_msg_forward.9} parent=5 // pred_check
      _
    $region30: #{pointnet_sa_msg_forward.9} parent=5 // pred_check_branch
      %215 = sbr.rel (%p212) target = $region32
    $region31: #{pointnet_sa_msg_forward.9} parent=5 // pred_region
      %s216 = ssub.s32 %s12, 1
      %s217 = sadd.s32 %s21, %s22
      %s218 = smul.u32 16, %s217
      %p219 = scmp.lt.s32.totalorder %s218, 31
      %s220 = scalar_select %p219, %s218, 31
      %s221 = smul.addr %s220, 8
      %s222 = scalar_lea.vmem %s0, %s221
      %p223 = pneg %p52
      %p224 = pneg %p49
      %p225 = pneg %p73
      %p226 = pneg %p70
      %p227 = pneg %p94
      %p228 = pneg %p91
      %p229 = pneg %p122
      %p230 = pneg %p119
      %s231 = sadd.s32 %s21, %s22
      %s232 = smul.u32 16, %s231
      %p233 = scmp.lt.s32.totalorder %s232, 31
      %s234 = scalar_select %p233, %s232, 31
      %s235 = smul.addr %s234, 4
      %s236 = scalar_lea.vmem %s3, %s235
      %p237 = pneg %p148
      %p238 = pneg %p145
      %p239 = scmp.lt.s32.totalorder %s21, 1
      %s240 = scalar_select %p239, %s21, 1
      %s241 = smul.addr %s240, 8
      %s242 = scalar_lea.vmem %s4, %s241
      %p243 = pneg %p174
      %p244 = pneg %p171
      %p245 = scmp.lt.s32.totalorder %s21, 1
      %s246 = scalar_select %p245, %s21, 1
      %s247 = smul.addr %s246, 8
      %s248 = scalar_lea.vmem %s5, %s247
      %s249 = sadd.s32 %s21, %s22
      %s250 = smul.u32 16, %s249
      %p251 = scmp.lt.s32.totalorder %s250, 31
      %s252 = scalar_select %p251, %s250, 31
      %s253 = smul.addr %s252, 8
      %s254 = scalar_lea.vmem %s0, %s253
      %s255 = sadd.s32 %s21, %s22
      %s256 = smul.u32 16, %s255
      %s257 = sadd.s32 %s21, %s22
      %s258 = smul.u32 16, %s257
      %p259 = scmp.lt.s32.totalorder %s258, 31
      %s260 = scalar_select %p259, %s258, 31
      %s261 = smul.addr %s260, 4
      %s262 = scalar_lea.vmem %s3, %s261
      %s263 = sadd.s32 %s21, %s22
      %s264 = smul.u32 16, %s263
      %p265 = scmp.lt.s32.totalorder %s21, 1
      %s266 = scalar_select %p265, %s21, 1
      %s267 = smul.addr %s266, 8
      %s268 = scalar_lea.vmem %s4, %s267
      %p269 = scmp.lt.s32.totalorder %s21, 1
      %s270 = scalar_select %p269, %s21, 1
      %s271 = smul.addr %s270, 8
      %s272 = scalar_lea.vmem %s5, %s271
      %v274 = vld [vmem:[%s254] sm:$0xff]
      %v275 = vld [vmem:[%s254 + $0x8] sm:$0xff]
      %v276 = vld [vmem:[%s254 + $0x10] sm:$0xff]
      %v277 = vld [vmem:[%s254 + $0x18] sm:$0xff]
      %v278 = vld [vmem:[%s254 + $0x20] sm:$0xff]
      %v279 = vld [vmem:[%s254 + $0x28] sm:$0xff]
      %v280 = vld [vmem:[%s254 + $0x30] sm:$0xff]
      %v281 = vld [vmem:[%s254 + $0x38] sm:$0xff]
      %v282 = vld [vmem:[%s254 + $0x40] sm:$0xff]
      %v283 = vld [vmem:[%s254 + $0x48] sm:$0xff]
      %v284 = vld [vmem:[%s254 + $0x50] sm:$0xff]
      %v285 = vld [vmem:[%s254 + $0x58] sm:$0xff]
      %v286 = vld [vmem:[%s254 + $0x60] sm:$0xff]
      %v287 = vld [vmem:[%s254 + $0x68] sm:$0xff]
      %v288 = vld [vmem:[%s254 + $0x70] sm:$0xff]
      %v289 = vld [vmem:[%s254 + $0x78] sm:$0xff]
      %v290 = vpack.c.bf16 %v275, %v274
      %v291 = vpack.c.bf16 %v277, %v276
      %v292 = vpack.c.bf16 %v279, %v278
      %v293 = vpack.c.bf16 %v281, %v280
      %v294 = vpack.c.bf16 %v283, %v282
      %v295 = vpack.c.bf16 %v285, %v284
      %v296 = vpack.c.bf16 %v287, %v286
      %v297 = vpack.c.bf16 %v289, %v288
      %v298 = vld [vmem:[%s1] sm:$0xf]
      %v299 = vld [vmem:[%s2] sm:$0x1]
      %v301 = vlaneseq
      %v302 = vshrl.u32 %v301, 7
      %v303 = vsub.s32 0, %v302
      %v304 = vrot.slane %v299, %v303
      %vm306 = vcmask 64512
      %v308 = vsel %vm306, %v290, 0
      %v311 = vsel %vm306, %v291, 0
      %v314 = vsel %vm306, %v292, 0
      %v317 = vsel %vm306, %v293, 0
      %v320 = vsel %vm306, %v294, 0
      %v323 = vsel %vm306, %v295, 0
      %v326 = vsel %vm306, %v296, 0
      %v329 = vsel %vm306, %v297, 0
      %vm331 = vcmask 1043456
      %v333 = vsel %vm331, %v298, 0
      %335 = vmatprep.subr.bf16.mxu0 0
      %336 = vmatpush1.bf16.msra.mxu0 %v333
      %337 = vmatprep.subr.bf16.mxu0 0
      %338 = vmatpush1.bf16.msra.mxu0 0
      %339 = vmatprep.subr.bf16.mxu0 0
      %340 = vmatpush1.bf16.msra.mxu0 0
      %341 = vmatprep.subr.bf16.mxu0 0
      %342 = vmatpush1.bf16.msra.mxu0 0
      %343 = vmatprep.subr.bf16.mxu0 0
      %344 = vmatpush1.bf16.msra.mxu0 0
      %345 = vmatprep.subr.bf16.mxu0 0
      %346 = vmatpush1.bf16.msra.mxu0 0
      %347 = vmatprep.subr.bf16.mxu0 0
      %348 = vmatpush1.bf16.msra.mxu0 0
      %349 = vmatprep.subr.bf16.mxu0 0
      %350 = vmatpush1.bf16.msra.mxu0 0
      %351 = vmatprep.subr.bf16.mxu0 0
      %352 = vmatpush1.bf16.msra.mxu0 0
      %353 = vmatprep.subr.bf16.mxu0 0
      %354 = vmatpush1.bf16.msra.mxu0 0
      %355 = vmatprep.subr.bf16.mxu0 0
      %356 = vmatpush1.bf16.msra.mxu0 0
      %357 = vmatprep.subr.bf16.mxu0 0
      %358 = vmatpush1.bf16.msra.mxu0 0
      %359 = vmatprep.subr.bf16.mxu0 0
      %360 = vmatpush1.bf16.msra.mxu0 0
      %361 = vmatprep.subr.bf16.mxu0 0
      %362 = vmatpush1.bf16.msra.mxu0 0
      %363 = vmatprep.subr.bf16.mxu0 0
      %364 = vmatpush1.bf16.msra.mxu0 0
      %365 = vmatprep.subr.bf16.mxu0 0
      %366 = vmatpush1.bf16.msra.mxu0 0
      %367 = vmatprep.mubr.bf16.mxu0 0
      %368 = vmatmul.mubr.bf16.gmra.mrb[0].mxu0 %v308
      %v369 = vpop.f32.mrb[0].mxu0
      %v370 = vadd.f32 %v304, %v369
      %v371 = vpop.f32.mrb[0].mxu0
      %v372 = vpop.f32.mrb[0].mxu0
      %v373 = vadd.f32 %v304, %v372
      %v374 = vpop.f32.mrb[0].mxu0
      %375 = vmatprep.mubr.bf16.mxu0 0
      %376 = vmatmul.mubr.bf16.gmra.mrb[0].mxu0 %v311
      %v377 = vpop.f32.mrb[0].mxu0
      %v378 = vadd.f32 %v304, %v377
      %v379 = vpop.f32.mrb[0].mxu0
      %v380 = vpop.f32.mrb[0].mxu0
      %v381 = vadd.f32 %v304, %v380
      %v382 = vpop.f32.mrb[0].mxu0
      %383 = vmatprep.mubr.bf16.mxu0 0
      %384 = vmatmul.mubr.bf16.gmra.mrb[0].mxu0 %v314
      %v385 = vpop.f32.mrb[0].mxu0
      %v386 = vadd.f32 %v304, %v385
      %v387 = vpop.f32.mrb[0].mxu0
      %v388 = vpop.f32.mrb[0].mxu0
      %v389 = vadd.f32 %v304, %v388
      %v390 = vpop.f32.mrb[0].mxu0
      %391 = vmatprep.mubr.bf16.mxu0 0
      %392 = vmatmul.mubr.bf16.gmra.mrb[0].mxu0 %v317
      %v393 = vpop.f32.mrb[0].mxu0
      %v394 = vadd.f32 %v304, %v393
      %v395 = vpop.f32.mrb[0].mxu0
      %v396 = vpop.f32.mrb[0].mxu0
      %v397 = vadd.f32 %v304, %v396
      %v398 = vpop.f32.mrb[0].mxu0
      %399 = vmatprep.mubr.bf16.mxu0 0
      %400 = vmatmul.mubr.bf16.gmra.mrb[0].mxu0 %v320
      %v401 = vpop.f32.mrb[0].mxu0
      %v402 = vadd.f32 %v304, %v401
      %v403 = vpop.f32.mrb[0].mxu0
      %v404 = vpop.f32.mrb[0].mxu0
      %v405 = vadd.f32 %v304, %v404
      %v406 = vpop.f32.mrb[0].mxu0
      %407 = vmatprep.mubr.bf16.mxu0 0
      %408 = vmatmul.mubr.bf16.gmra.mrb[0].mxu0 %v323
      %v409 = vpop.f32.mrb[0].mxu0
      %v410 = vadd.f32 %v304, %v409
      %v411 = vpop.f32.mrb[0].mxu0
      %v412 = vpop.f32.mrb[0].mxu0
      %v413 = vadd.f32 %v304, %v412
      %v414 = vpop.f32.mrb[0].mxu0
      %415 = vmatprep.mubr.bf16.mxu0 0
      %416 = vmatmul.mubr.bf16.gmra.mrb[0].mxu0 %v326
      %v417 = vpop.f32.mrb[0].mxu0
      %v418 = vadd.f32 %v304, %v417
      %v419 = vpop.f32.mrb[0].mxu0
      %v420 = vpop.f32.mrb[0].mxu0
      %v421 = vadd.f32 %v304, %v420
      %v422 = vpop.f32.mrb[0].mxu0
      %423 = vmatprep.mubr.bf16.mxu0 0
      %424 = vmatmul.mubr.bf16.gmra.mrb[0].mxu0 %v329
      %v425 = vpop.f32.mrb[0].mxu0
      %v426 = vadd.f32 %v304, %v425
      %v427 = vpop.f32.mrb[0].mxu0
      %v428 = vpop.f32.mrb[0].mxu0
      %v429 = vadd.f32 %v304, %v428
      %v430 = vpop.f32.mrb[0].mxu0
      %431 = vdwg.mxu0
      %v432 = vpack.c.bf16 %v373, %v370
      %v433 = vpack.c.bf16 %v381, %v378
      %v434 = vpack.c.bf16 %v389, %v386
      %v435 = vpack.c.bf16 %v397, %v394
      %v436 = vpack.c.bf16 %v405, %v402
      %v437 = vpack.c.bf16 %v413, %v410
      %v438 = vpack.c.bf16 %v421, %v418
      %v439 = vpack.c.bf16 %v429, %v426
      %v448 = vunpack.c.l.b16 %v432
      %v449 = vunpack.c.h.b16 %v432
      %v450 = vunpack.c.l.b16 %v433
      %v451 = vunpack.c.h.b16 %v433
      %v452 = vunpack.c.l.b16 %v434
      %v453 = vunpack.c.h.b16 %v434
      %v454 = vunpack.c.l.b16 %v435
      %v455 = vunpack.c.h.b16 %v435
      %v456 = vunpack.c.l.b16 %v436
      %v457 = vunpack.c.h.b16 %v436
      %v458 = vunpack.c.l.b16 %v437
      %v459 = vunpack.c.h.b16 %v437
      %v460 = vunpack.c.l.b16 %v438
      %v461 = vunpack.c.h.b16 %v438
      %v462 = vunpack.c.l.b16 %v439
      %v463 = vunpack.c.h.b16 %v439
      %v464 = vpack.c.b16 %v448, %v448
      %v465 = vpack.c.b16 %v449, %v449
      %v466 = vpack.c.b16 %v450, %v450
      %v467 = vpack.c.b16 %v451, %v451
      %v468 = vpack.c.b16 %v452, %v452
      %v469 = vpack.c.b16 %v453, %v453
      %v470 = vpack.c.b16 %v454, %v454
      %v471 = vpack.c.b16 %v455, %v455
      %v472 = vpack.c.b16 %v456, %v456
      %v473 = vpack.c.b16 %v457, %v457
      %v474 = vpack.c.b16 %v458, %v458
      %v475 = vpack.c.b16 %v459, %v459
      %v476 = vpack.c.b16 %v460, %v460
      %v477 = vpack.c.b16 %v461, %v461
      %v478 = vpack.c.b16 %v462, %v462
      %v479 = vpack.c.b16 %v463, %v463
      %496 = vst [vmem:[%s262] sm:$0xf] %v464
      %497 = vst [vmem:[%s262 + $0x4] sm:$0xf] %v465
      %498 = vst [vmem:[%s262 + $0x8] sm:$0xf] %v466
      %499 = vst [vmem:[%s262 + $0xc] sm:$0xf] %v467
      %500 = vst [vmem:[%s262 + $0x10] sm:$0xf] %v468
      %501 = vst [vmem:[%s262 + $0x14] sm:$0xf] %v469
      %502 = vst [vmem:[%s262 + $0x18] sm:$0xf] %v470
      %503 = vst [vmem:[%s262 + $0x1c] sm:$0xf] %v471
      %504 = vst [vmem:[%s262 + $0x20] sm:$0xf] %v472
      %505 = vst [vmem:[%s262 + $0x24] sm:$0xf] %v473
      %506 = vst [vmem:[%s262 + $0x28] sm:$0xf] %v474
      %507 = vst [vmem:[%s262 + $0x2c] sm:$0xf] %v475
      %508 = vst [vmem:[%s262 + $0x30] sm:$0xf] %v476
      %509 = vst [vmem:[%s262 + $0x34] sm:$0xf] %v477
      %510 = vst [vmem:[%s262 + $0x38] sm:$0xf] %v478
      %511 = vst [vmem:[%s262 + $0x3c] sm:$0xf] %v479
      %p512 = scmp.eq.s32.totalorder %s22, 0
      // Predicated region
      $region33: #{pointnet_sa_msg_forward.9} parent=31 // pred_check
        %p513 = pneg %p512
      $region34: #{pointnet_sa_msg_forward.9} parent=31 // pred_check_branch
        %515 = sbr.rel (%p513) target = $region36
      $region35: #{pointnet_sa_msg_forward.9} parent=31 // pred_region
        %516 = vst [vmem:[%s268] sm:$0xff] 0.0
        %517 = vst [vmem:[%s272] sm:$0xff] 0.0
      $region36: #{pointnet_sa_msg_forward.9} parent=31 // pred_fallthru
        _
      %v518 = vld [vmem:[%s268] sm:$0xff]
      %v519 = vadd.f32 %v370, %v373
      %v520 = vadd.f32 %v519, %v378
      %v521 = vadd.f32 %v520, %v381
      %v522 = vadd.f32 %v521, %v386
      %v523 = vadd.f32 %v522, %v389
      %v524 = vadd.f32 %v523, %v394
      %v525 = vadd.f32 %v524, %v397
      %v526 = vadd.f32 %v525, %v402
      %v527 = vadd.f32 %v526, %v405
      %v528 = vadd.f32 %v527, %v410
      %v529 = vadd.f32 %v528, %v413
      %v530 = vadd.f32 %v529, %v418
      %v531 = vadd.f32 %v530, %v421
      %v532 = vadd.f32 %v531, %v426
      %v533 = vadd.f32 %v532, %v429
      %v534 = vadd.f32 %v518, %v533
      %535 = vst [vmem:[%s268] sm:$0xff] %v534
      %v536 = vld [vmem:[%s272] sm:$0xff]
      %v537 = vmul.f32 %v370, %v370
      %v538 = vmul.f32 %v373, %v373
      %v539 = vmul.f32 %v378, %v378
      %v540 = vmul.f32 %v381, %v381
      %v541 = vmul.f32 %v386, %v386
      %v542 = vmul.f32 %v389, %v389
      %v543 = vmul.f32 %v394, %v394
      %v544 = vmul.f32 %v397, %v397
      %v545 = vmul.f32 %v402, %v402
      %v546 = vmul.f32 %v405, %v405
      %v547 = vmul.f32 %v410, %v410
      %v548 = vmul.f32 %v413, %v413
      %v549 = vmul.f32 %v418, %v418
      %v550 = vmul.f32 %v421, %v421
      %v551 = vmul.f32 %v426, %v426
      %v552 = vmul.f32 %v429, %v429
      %v553 = vadd.f32 %v537, %v538
      %v554 = vadd.f32 %v553, %v539
      %v555 = vadd.f32 %v554, %v540
      %v556 = vadd.f32 %v555, %v541
      %v557 = vadd.f32 %v556, %v542
      %v558 = vadd.f32 %v557, %v543
      %v559 = vadd.f32 %v558, %v544
      %v560 = vadd.f32 %v559, %v545
      %v561 = vadd.f32 %v560, %v546
      %v562 = vadd.f32 %v561, %v547
      %v563 = vadd.f32 %v562, %v548
      %v564 = vadd.f32 %v563, %v549
      %v565 = vadd.f32 %v564, %v550
      %v566 = vadd.f32 %v565, %v551
      %v567 = vadd.f32 %v566, %v552
      %v568 = vadd.f32 %v536, %v567
      %569 = vst [vmem:[%s272] sm:$0xff] %v568
      %s570 = sadd.s32 %s21, %s22
      %s571 = smul.u32 16, %s570
      %p572 = scmp.lt.s32.totalorder %s571, 31
      %s573 = scalar_select %p572, %s571, 31
      %s574 = smul.addr %s573, 4
      %s575 = scalar_lea.vmem %s3, %s574
      %p576 = scmp.lt.s32.totalorder %s21, 1
      %s577 = scalar_select %p576, %s21, 1
      %s578 = smul.addr %s577, 8
      %s579 = scalar_lea.vmem %s4, %s578
      %p580 = scmp.lt.s32.totalorder %s21, 1
      %s581 = scalar_select %p580, %s21, 1
      %s582 = smul.addr %s581, 8
      %s583 = scalar_lea.vmem %s5, %s582
      // Predicated region
      $region37: #{pointnet_sa_msg_forward.9} parent=31 // pred_check
        %p584 = pneg %p119
      $region38: #{pointnet_sa_msg_forward.9} parent=31 // pred_check_branch
        %586 = sbr.rel (%p584) target = $region40
      $region39: #{pointnet_sa_msg_forward.9} parent=31 // pred_region
        %s587 = sadd.s32 %s21, %s22
        %s588 = smul.u32 16, %s587
      $region40: #{pointnet_sa_msg_forward.9} parent=31 // pred_fallthru
        _
      // Predicated region
      $region41: #{pointnet_sa_msg_forward.9} parent=31 // pred_check
        %p589 = pneg %p145
      $region42: #{pointnet_sa_msg_forward.9} parent=31 // pred_check_branch
        %591 = sbr.rel (%p589) target = $region44
      $region43: #{pointnet_sa_msg_forward.9} parent=31 // pred_region
        _
      $region44: #{pointnet_sa_msg_forward.9} parent=31 // pred_fallthru
        _
      // Predicated region
      $region45: #{pointnet_sa_msg_forward.9} parent=31 // pred_check
        %p592 = pneg %p171
      $region46: #{pointnet_sa_msg_forward.9} parent=31 // pred_check_branch
        %594 = sbr.rel (%p592) target = $region48
      $region47: #{pointnet_sa_msg_forward.9} parent=31 // pred_region
        _
      $region48: #{pointnet_sa_msg_forward.9} parent=31 // pred_fallthru
        _
    $region32: #{pointnet_sa_msg_forward.9} parent=5 // pred_fallthru
      _
    %p595 = scmp.le.s32.totalorder 2, %s12
    // Predicated region
    $region49: #{pointnet_sa_msg_forward.9} parent=5 // pred_check
      %p596 = pneg %p595
    $region50: #{pointnet_sa_msg_forward.9} parent=5 // pred_check_branch
      %598 = sbr.rel (%p596) target = $region52
    $region51: #{pointnet_sa_msg_forward.9} parent=5 // pred_region
      %s599 = ssub.s32 %s12, 2
      // Predicated region
      $region53: #{pointnet_sa_msg_forward.9} parent=51 // pred_check
        %p600 = pneg %p125
      $region54: #{pointnet_sa_msg_forward.9} parent=51 // pred_check_branch
        %602 = sbr.rel (%p600) target = $region56
      $region55: #{pointnet_sa_msg_forward.9} parent=51 // pred_region
        %s603 = sadd.s32 %s23, %s24
        %s604 = smul.u32 16, %s603
        %p605 = scmp.lt.s32.totalorder %s604, 31
        %s606 = scalar_select %p605, %s604, 31
        %s607 = smul.addr %s606, 4
        %s608 = scalar_lea.vmem %s3, %s607
      $region56: #{pointnet_sa_msg_forward.9} parent=51 // pred_fallthru
        _
      // Predicated region
      $region57: #{pointnet_sa_msg_forward.9} parent=51 // pred_check
        %p609 = pneg %p151
      $region58: #{pointnet_sa_msg_forward.9} parent=51 // pred_check_branch
        %611 = sbr.rel (%p609) target = $region60
      $region59: #{pointnet_sa_msg_forward.9} parent=51 // pred_region
        %p612 = scmp.lt.s32.totalorder %s23, 1
        %s613 = scalar_select %p612, %s23, 1
        %s614 = smul.addr %s613, 8
        %s615 = scalar_lea.vmem %s4, %s614
      $region60: #{pointnet_sa_msg_forward.9} parent=51 // pred_fallthru
        _
      // Predicated region
      $region61: #{pointnet_sa_msg_forward.9} parent=51 // pred_check
        %p616 = pneg %p177
      $region62: #{pointnet_sa_msg_forward.9} parent=51 // pred_check_branch
        %618 = sbr.rel (%p616) target = $region64
      $region63: #{pointnet_sa_msg_forward.9} parent=51 // pred_region
        %p619 = scmp.lt.s32.totalorder %s23, 1
        %s620 = scalar_select %p619, %s23, 1
        %s621 = smul.addr %s620, 8
        %s622 = scalar_lea.vmem %s5, %s621
      $region64: #{pointnet_sa_msg_forward.9} parent=51 // pred_fallthru
        _
    $region52: #{pointnet_sa_msg_forward.9} parent=5 // pred_fallthru
      _
  $region6: #{pointnet_sa_msg_forward.9} parent=0 // loop_footer
    %s16 = sadd.s32 1, %s12
  $region7: #{pointnet_sa_msg_forward.9} parent=0 // loop_footer_branch
    %11 = sbr.rel target = $region3
  $region8: #{pointnet_sa_msg_forward.9} parent=0 // loop_exit
    _

// kernel: pointnet_sa_msg_forward.11
$region0: #{pointnet_sa_msg_forward.11}
  #allocation0 [shape = 'u32[]', space=smem, size = 0x4, offset = 0x4, fixed_abs, tag = 'smem constant byte address 0x4 - core index']
  #allocation1 [shape = 'u32[144,128]{1,0:T(1,128)}', space=vmem, size = 0x12000, scoped, tag = 'internal scratch']
  %s0 = inlined_call_operand.vmem [shape: bf16[32,8,128], index: 0, kind: input, shape index: {}]
  %s1 = inlined_call_operand.vmem [shape: f32[1,128], index: 1, kind: input, shape index: {}]
  %s2 = inlined_call_operand.vmem [shape: f32[1,128], index: 2, kind: input, shape index: {}]
  %s3 = inlined_call_operand.vmem [shape: f32[32,128], index: 3, kind: output, shape index: {}]
  %s4 = sld [smem:[#allocation0]]
  $region45: #{pointnet_sa_msg_forward.11} parent=0
    _
  %s6 = ssub.s32 1, %s4
  %s7 = scalar_select 0, %s6, %s4
  loop: start=0, step=1, limit=4
  $region2: #{pointnet_sa_msg_forward.11} parent=0 // loop_pre_header
    _
  $region3: #{pointnet_sa_msg_forward.11} parent=0 // loop_header
    %s9 = sphi 0, %s13
    %p10 = scmp.ge.s32.totalorder %s9, 4
    %s19 = sphi 0, %s21
    %s22 = sphi 0, %s19
    %s23 = sphi 0, %s22
    %s39 = sphi 0, %s23
    %s43 = sphi 0, %s43
    %s45 = sphi 0, %s43
    %s46 = sphi 0, %s45
    %s60 = sphi 0, %s46
    %s64 = sphi 0, %s64
    %s66 = sphi 0, %s64
    %s67 = sphi 0, %s66
    %s81 = sphi 0, %s67
    %s87 = sphi 0, %s89
    %s90 = sphi 0, %s87
    %s91 = sphi 0, %s90
    %s107 = sphi 0, %s91
  $region4: #{pointnet_sa_msg_forward.11} parent=0 // loop_header_branch
    %12 = sbr.rel (%p10) target = $region8
  $region5: #{pointnet_sa_msg_forward.11} parent=0 // loop_body
    %s14 = ssub.s32 %s9, 1
    %s15 = ssub.s32 %s9, 2
    %s16 = sadd.s32 %s9, 1
    %s17 = ssub.s32 %s9, %s16
    %p18 = scmp.eq.s32.totalorder %s17, 0
    %s20 = sadd.s32 %s19, 1
    %s21 = scalar_select %p18, %s19, %s20
    %p24 = pneg %p18
    %p25 = scmp.eq.s32.totalorder %s9, 1
    %p26 = por %p24, %p25
    %p27 = scmp.ne.s32.totalorder %s19, %s22
    %p28 = scmp.eq.s32.totalorder %s9, 0
    %p29 = por %p27, %p28
    %p30 = scmp.ne.s32.totalorder %s19, %s22
    %p31 = scmp.eq.s32.totalorder %s14, 1
    %p32 = por %p30, %p31
    %p33 = scmp.ne.s32.totalorder %s22, %s23
    %p34 = scmp.eq.s32.totalorder %s14, 0
    %p35 = por %p33, %p34
    %p36 = scmp.ne.s32.totalorder %s22, %s23
    %p37 = scmp.eq.s32.totalorder %s15, 1
    %p38 = por %p36, %p37
    %p40 = scmp.ne.s32.totalorder %s23, %s39
    %p41 = scmp.eq.s32.totalorder %s15, 0
    %p42 = por %p40, %p41
    %s44 = sadd.s32 %s43, 1
    %p47 = scmp.eq.s32.totalorder %s9, 1
    %p48 = scmp.ne.s32.totalorder %s43, %s45
    %p49 = scmp.eq.s32.totalorder %s9, 0
    %p50 = por %p48, %p49
    %p51 = scmp.ne.s32.totalorder %s43, %s45
    %p52 = scmp.eq.s32.totalorder %s14, 1
    %p53 = por %p51, %p52
    %p54 = scmp.ne.s32.totalorder %s45, %s46
    %p55 = scmp.eq.s32.totalorder %s14, 0
    %p56 = por %p54, %p55
    %p57 = scmp.ne.s32.totalorder %s45, %s46
    %p58 = scmp.eq.s32.totalorder %s15, 1
    %p59 = por %p57, %p58
    %p61 = scmp.ne.s32.totalorder %s46, %s60
    %p62 = scmp.eq.s32.totalorder %s15, 0
    %p63 = por %p61, %p62
    %s65 = sadd.s32 %s64, 1
    %p68 = scmp.eq.s32.totalorder %s9, 1
    %p69 = scmp.ne.s32.totalorder %s64, %s66
    %p70 = scmp.eq.s32.totalorder %s9, 0
    %p71 = por %p69, %p70
    %p72 = scmp.ne.s32.totalorder %s64, %s66
    %p73 = scmp.eq.s32.totalorder %s14, 1
    %p74 = por %p72, %p73
    %p75 = scmp.ne.s32.totalorder %s66, %s67
    %p76 = scmp.eq.s32.totalorder %s14, 0
    %p77 = por %p75, %p76
    %p78 = scmp.ne.s32.totalorder %s66, %s67
    %p79 = scmp.eq.s32.totalorder %s15, 1
    %p80 = por %p78, %p79
    %p82 = scmp.ne.s32.totalorder %s67, %s81
    %p83 = scmp.eq.s32.totalorder %s15, 0
    %p84 = por %p82, %p83
    %s85 = ssub.s32 %s9, %s16
    %p86 = scmp.eq.s32.totalorder %s85, 0
    %s88 = sadd.s32 %s87, 1
    %s89 = scalar_select %p86, %s87, %s88
    %p92 = pneg %p86
    %p93 = scmp.eq.s32.totalorder %s9, 1
    %p94 = por %p92, %p93
    %p95 = scmp.ne.s32.totalorder %s87, %s90
    %p96 = scmp.eq.s32.totalorder %s9, 0
    %p97 = por %p95, %p96
    %p98 = scmp.ne.s32.totalorder %s87, %s90
    %p99 = scmp.eq.s32.totalorder %s14, 1
    %p100 = por %p98, %p99
    %p101 = scmp.ne.s32.totalorder %s90, %s91
    %p102 = scmp.eq.s32.totalorder %s14, 0
    %p103 = por %p101, %p102
    %p104 = scmp.ne.s32.totalorder %s90, %s91
    %p105 = scmp.eq.s32.totalorder %s15, 1
    %p106 = por %p104, %p105
    %p108 = scmp.ne.s32.totalorder %s91, %s107
    %p109 = scmp.eq.s32.totalorder %s15, 0
    %p110 = por %p108, %p109
    %p111 = scmp.le.s32.totalorder 1, %s9
    %p112 = scmp.lt.s32.totalorder %s9, 3
    %p113 = pnand %p111, %p112
    %p114 = pneg %p113
    // Predicated region
    $region9: #{pointnet_sa_msg_forward.11} parent=5 // pred_check
      _
    $region10: #{pointnet_sa_msg_forward.11} parent=5 // pred_check_branch
      %116 = sbr.rel (%p113) target = $region12
    $region11: #{pointnet_sa_msg_forward.11} parent=5 // pred_region
      %s117 = ssub.s32 %s9, 1
      // Predicated region
      $region13: #{pointnet_sa_msg_forward.11} parent=11 // pred_check
        %p118 = pneg %p56
      $region14: #{pointnet_sa_msg_forward.11} parent=11 // pred_check_branch
        %120 = sbr.rel (%p118) target = $region16
      $region15: #{pointnet_sa_msg_forward.11} parent=11 // pred_region
        _
      $region16: #{pointnet_sa_msg_forward.11} parent=11 // pred_fallthru
        _
      // Predicated region
      $region17: #{pointnet_sa_msg_forward.11} parent=11 // pred_check
        %p121 = pneg %p77
      $region18: #{pointnet_sa_msg_forward.11} parent=11 // pred_check_branch
        %123 = sbr.rel (%p121) target = $region20
      $region19: #{pointnet_sa_msg_forward.11} parent=11 // pred_region
        _
      $region20: #{pointnet_sa_msg_forward.11} parent=11 // pred_fallthru
        _
    $region12: #{pointnet_sa_msg_forward.11} parent=5 // pred_fallthru
      _
    %p124 = scmp.lt.s32.totalorder %s9, 2
    // Predicated region
    $region21: #{pointnet_sa_msg_forward.11} parent=5 // pred_check
      %p125 = pneg %p124
    $region22: #{pointnet_sa_msg_forward.11} parent=5 // pred_check_branch
      %127 = sbr.rel (%p125) target = $region24
    $region23: #{pointnet_sa_msg_forward.11} parent=5 // pred_region
      // Predicated region
      $region25: #{pointnet_sa_msg_forward.11} parent=23 // pred_check
        %p128 = pneg %p29
      $region26: #{pointnet_sa_msg_forward.11} parent=23 // pred_check_branch
        %130 = sbr.rel (%p128) target = $region28
      $region27: #{pointnet_sa_msg_forward.11} parent=23 // pred_region
        %s131 = smul.u32 16, %s9
        %p132 = scmp.lt.s32.totalorder %s131, 31
        %s133 = scalar_select %p132, %s131, 31
        %s134 = smul.addr %s133, 4
        %s135 = scalar_lea.vmem %s0, %s134
        %s136 = smul.u32 16, %s9
      $region28: #{pointnet_sa_msg_forward.11} parent=23 // pred_fallthru
        _
    $region24: #{pointnet_sa_msg_forward.11} parent=5 // pred_fallthru
      _
    %p137 = scmp.le.s32.totalorder 1, %s9
    %p138 = scmp.lt.s32.totalorder %s9, 3
    %p139 = pnand %p137, %p138
    %p140 = pneg %p139
    // Predicated region
    $region29: #{pointnet_sa_msg_forward.11} parent=5 // pred_check
      _
    $region30: #{pointnet_sa_msg_forward.11} parent=5 // pred_check_branch
      %142 = sbr.rel (%p139) target = $region32
    $region31: #{pointnet_sa_msg_forward.11} parent=5 // pred_region
      %s143 = ssub.s32 %s9, 1
      %s144 = smul.u32 16, %s14
      %p145 = scmp.lt.s32.totalorder %s144, 31
      %s146 = scalar_select %p145, %s144, 31
      %s147 = smul.addr %s146, 4
      %s148 = scalar_lea.vmem %s0, %s147
      %p149 = pneg %p35
      %p150 = pneg %p32
      %p151 = pneg %p56
      %p152 = pneg %p53
      %p153 = pneg %p77
      %p154 = pneg %p74
      %p155 = pneg %p103
      %p156 = pneg %p100
      %s157 = smul.u32 2, %s14
      %p158 = scmp.lt.s32.totalorder %s157, 3
      %s159 = scalar_select %p158, %s157, 3
      %s160 = smul.addr %s159, 8
      %s161 = scalar_lea.vmem %s3, %s160
      %s162 = smul.u32 16, %s14
      %p163 = scmp.lt.s32.totalorder %s162, 31
      %s164 = scalar_select %p163, %s162, 31
      %s165 = smul.addr %s164, 4
      %s166 = scalar_lea.vmem %s0, %s165
      %s167 = smul.u32 16, %s14
      %s168 = smul.u32 2, %s14
      %p169 = scmp.lt.s32.totalorder %s168, 3
      %s170 = scalar_select %p169, %s168, 3
      %s171 = smul.addr %s170, 8
      %s172 = scalar_lea.vmem %s3, %s171
      %s173 = smul.u32 2, %s14
      %v174 = vld [vmem:[%s166] sm:$0xf]
      %v175 = vld [vmem:[%s166 + $0x4] sm:$0xf]
      %v176 = vld [vmem:[%s166 + $0x8] sm:$0xf]
      %v177 = vld [vmem:[%s166 + $0xc] sm:$0xf]
      %v178 = vld [vmem:[%s166 + $0x10] sm:$0xf]
      %v179 = vld [vmem:[%s166 + $0x14] sm:$0xf]
      %v180 = vld [vmem:[%s166 + $0x18] sm:$0xf]
      %v181 = vld [vmem:[%s166 + $0x1c] sm:$0xf]
      %v182 = vld [vmem:[%s166 + $0x20] sm:$0xf]
      %v183 = vld [vmem:[%s166 + $0x24] sm:$0xf]
      %v184 = vld [vmem:[%s166 + $0x28] sm:$0xf]
      %v185 = vld [vmem:[%s166 + $0x2c] sm:$0xf]
      %v186 = vld [vmem:[%s166 + $0x30] sm:$0xf]
      %v187 = vld [vmem:[%s166 + $0x34] sm:$0xf]
      %v188 = vld [vmem:[%s166 + $0x38] sm:$0xf]
      %v189 = vld [vmem:[%s166 + $0x3c] sm:$0xf]
      %v190 = vunpack.c.l.bf16 %v174
      %v191 = vunpack.c.l.bf16 %v175
      %v192 = vunpack.c.l.bf16 %v176
      %v193 = vunpack.c.l.bf16 %v177
      %v194 = vunpack.c.l.bf16 %v178
      %v195 = vunpack.c.l.bf16 %v179
      %v196 = vunpack.c.l.bf16 %v180
      %v197 = vunpack.c.l.bf16 %v181
      %v198 = vunpack.c.l.bf16 %v182
      %v199 = vunpack.c.l.bf16 %v183
      %v200 = vunpack.c.l.bf16 %v184
      %v201 = vunpack.c.l.bf16 %v185
      %v202 = vunpack.c.l.bf16 %v186
      %v203 = vunpack.c.l.bf16 %v187
      %v204 = vunpack.c.l.bf16 %v188
      %v205 = vunpack.c.l.bf16 %v189
      %v206 = vld [vmem:[%s1] sm:$0x1]
      %v208 = vlaneseq
      %v209 = vshrl.u32 %v208, 7
      %v210 = vsub.s32 0, %v209
      %v211 = vrot.slane %v206, %v210
      %v213 = vmul.f32 %v190, %v211
      %v214 = vmul.f32 %v191, %v211
      %v215 = vmul.f32 %v192, %v211
      %v216 = vmul.f32 %v193, %v211
      %v217 = vmul.f32 %v194, %v211
      %v218 = vmul.f32 %v195, %v211
      %v219 = vmul.f32 %v196, %v211
      %v220 = vmul.f32 %v197, %v211
      %v221 = vmul.f32 %v198, %v211
      %v222 = vmul.f32 %v199, %v211
      %v223 = vmul.f32 %v200, %v211
      %v224 = vmul.f32 %v201, %v211
      %v225 = vmul.f32 %v202, %v211
      %v226 = vmul.f32 %v203, %v211
      %v227 = vmul.f32 %v204, %v211
      %v228 = vmul.f32 %v205, %v211
      %v229 = vld [vmem:[%s2] sm:$0x1]
      %v231 = vlaneseq
      %v232 = vshrl.u32 %v231, 7
      %v233 = vsub.s32 0, %v232
      %v234 = vrot.slane %v229, %v233
      %v236 = vadd.f32 %v213, %v234
      %v237 = vadd.f32 %v214, %v234
      %v238 = vadd.f32 %v215, %v234
      %v239 = vadd.f32 %v216, %v234
      %v240 = vadd.f32 %v217, %v234
      %v241 = vadd.f32 %v218, %v234
      %v242 = vadd.f32 %v219, %v234
      %v243 = vadd.f32 %v220, %v234
      %v244 = vadd.f32 %v221, %v234
      %v245 = vadd.f32 %v222, %v234
      %v246 = vadd.f32 %v223, %v234
      %v247 = vadd.f32 %v224, %v234
      %v248 = vadd.f32 %v225, %v234
      %v249 = vadd.f32 %v226, %v234
      %v250 = vadd.f32 %v227, %v234
      %v251 = vadd.f32 %v228, %v234
      %v252 = vmax.f32 %v236, 0.0
      %v253 = vmax.f32 %v237, 0.0
      %v254 = vmax.f32 %v238, 0.0
      %v255 = vmax.f32 %v239, 0.0
      %v256 = vmax.f32 %v240, 0.0
      %v257 = vmax.f32 %v241, 0.0
      %v258 = vmax.f32 %v242, 0.0
      %v259 = vmax.f32 %v243, 0.0
      %v260 = vmax.f32 %v244, 0.0
      %v261 = vmax.f32 %v245, 0.0
      %v262 = vmax.f32 %v246, 0.0
      %v263 = vmax.f32 %v247, 0.0
      %v264 = vmax.f32 %v248, 0.0
      %v265 = vmax.f32 %v249, 0.0
      %v266 = vmax.f32 %v250, 0.0
      %v267 = vmax.f32 %v251, 0.0
      %v268 = vrot.slane %v252, 4
      %v269 = vmax.f32 %v252, %v268
      %v270 = vrot.slane %v269, 2
      %v271 = vmax.f32 %v269, %v270
      %v272 = vrot.slane %v271, 1
      %v273 = vmax.f32 %v271, %v272
      %v274 = vrot.slane %v253, 4
      %v275 = vmax.f32 %v253, %v274
      %v276 = vrot.slane %v275, 2
      %v277 = vmax.f32 %v275, %v276
      %v278 = vrot.slane %v277, 1
      %v279 = vmax.f32 %v277, %v278
      %v280 = vrot.slane %v254, 4
      %v281 = vmax.f32 %v254, %v280
      %v282 = vrot.slane %v281, 2
      %v283 = vmax.f32 %v281, %v282
      %v284 = vrot.slane %v283, 1
      %v285 = vmax.f32 %v283, %v284
      %v286 = vrot.slane %v255, 4
      %v287 = vmax.f32 %v255, %v286
      %v288 = vrot.slane %v287, 2
      %v289 = vmax.f32 %v287, %v288
      %v290 = vrot.slane %v289, 1
      %v291 = vmax.f32 %v289, %v290
      %v292 = vrot.slane %v256, 4
      %v293 = vmax.f32 %v256, %v292
      %v294 = vrot.slane %v293, 2
      %v295 = vmax.f32 %v293, %v294
      %v296 = vrot.slane %v295, 1
      %v297 = vmax.f32 %v295, %v296
      %v298 = vrot.slane %v257, 4
      %v299 = vmax.f32 %v257, %v298
      %v300 = vrot.slane %v299, 2
      %v301 = vmax.f32 %v299, %v300
      %v302 = vrot.slane %v301, 1
      %v303 = vmax.f32 %v301, %v302
      %v304 = vrot.slane %v258, 4
      %v305 = vmax.f32 %v258, %v304
      %v306 = vrot.slane %v305, 2
      %v307 = vmax.f32 %v305, %v306
      %v308 = vrot.slane %v307, 1
      %v309 = vmax.f32 %v307, %v308
      %v310 = vrot.slane %v259, 4
      %v311 = vmax.f32 %v259, %v310
      %v312 = vrot.slane %v311, 2
      %v313 = vmax.f32 %v311, %v312
      %v314 = vrot.slane %v313, 1
      %v315 = vmax.f32 %v313, %v314
      %v316 = vrot.slane %v260, 4
      %v317 = vmax.f32 %v260, %v316
      %v318 = vrot.slane %v317, 2
      %v319 = vmax.f32 %v317, %v318
      %v320 = vrot.slane %v319, 1
      %v321 = vmax.f32 %v319, %v320
      %v322 = vrot.slane %v261, 4
      %v323 = vmax.f32 %v261, %v322
      %v324 = vrot.slane %v323, 2
      %v325 = vmax.f32 %v323, %v324
      %v326 = vrot.slane %v325, 1
      %v327 = vmax.f32 %v325, %v326
      %v328 = vrot.slane %v262, 4
      %v329 = vmax.f32 %v262, %v328
      %v330 = vrot.slane %v329, 2
      %v331 = vmax.f32 %v329, %v330
      %v332 = vrot.slane %v331, 1
      %v333 = vmax.f32 %v331, %v332
      %v334 = vrot.slane %v263, 4
      %v335 = vmax.f32 %v263, %v334
      %v336 = vrot.slane %v335, 2
      %v337 = vmax.f32 %v335, %v336
      %v338 = vrot.slane %v337, 1
      %v339 = vmax.f32 %v337, %v338
      %v340 = vrot.slane %v264, 4
      %v341 = vmax.f32 %v264, %v340
      %v342 = vrot.slane %v341, 2
      %v343 = vmax.f32 %v341, %v342
      %v344 = vrot.slane %v343, 1
      %v345 = vmax.f32 %v343, %v344
      %v346 = vrot.slane %v265, 4
      %v347 = vmax.f32 %v265, %v346
      %v348 = vrot.slane %v347, 2
      %v349 = vmax.f32 %v347, %v348
      %v350 = vrot.slane %v349, 1
      %v351 = vmax.f32 %v349, %v350
      %v352 = vrot.slane %v266, 4
      %v353 = vmax.f32 %v266, %v352
      %v354 = vrot.slane %v353, 2
      %v355 = vmax.f32 %v353, %v354
      %v356 = vrot.slane %v355, 1
      %v357 = vmax.f32 %v355, %v356
      %v358 = vrot.slane %v267, 4
      %v359 = vmax.f32 %v267, %v358
      %v360 = vrot.slane %v359, 2
      %v361 = vmax.f32 %v359, %v360
      %v362 = vrot.slane %v361, 1
      %v363 = vmax.f32 %v361, %v362
      %vm380 = vcmask 1041409
      %v381 = vsel %vm380, %v279, %v273
      %vm382 = vcmask 1042434
      %v383 = vsel %vm382, %v285, %v381
      %vm384 = vcmask 1043459
      %v385 = vsel %vm384, %v291, %v383
      %vm386 = vcmask 1044484
      %v387 = vsel %vm386, %v297, %v385
      %vm388 = vcmask 1045509
      %v389 = vsel %vm388, %v303, %v387
      %vm390 = vcmask 1046534
      %v391 = vsel %vm390, %v309, %v389
      %vm392 = vcmask 1047559
      %v393 = vsel %vm392, %v315, %v391
      %v394 = vsel %vm380, %v327, %v321
      %v395 = vsel %vm382, %v333, %v394
      %v396 = vsel %vm384, %v339, %v395
      %v397 = vsel %vm386, %v345, %v396
      %v398 = vsel %vm388, %v351, %v397
      %v399 = vsel %vm390, %v357, %v398
      %v400 = vsel %vm392, %v363, %v399
      %403 = vst [vmem:[%s172] sm:$0xff] %v393
      %404 = vst [vmem:[%s172 + $0x8] sm:$0xff] %v400
      %s405 = smul.u32 2, %s14
      %p406 = scmp.lt.s32.totalorder %s405, 3
      %s407 = scalar_select %p406, %s405, 3
      %s408 = smul.addr %s407, 8
      %s409 = scalar_lea.vmem %s3, %s408
      // Predicated region
      $region33: #{pointnet_sa_msg_forward.11} parent=31 // pred_check
        %p410 = pneg %p100
      $region34: #{pointnet_sa_msg_forward.11} parent=31 // pred_check_branch
        %412 = sbr.rel (%p410) target = $region36
      $region35: #{pointnet_sa_msg_forward.11} parent=31 // pred_region
        %s413 = smul.u32 2, %s14
      $region36: #{pointnet_sa_msg_forward.11} parent=31 // pred_fallthru
        _
    $region32: #{pointnet_sa_msg_forward.11} parent=5 // pred_fallthru
      _
    %p414 = scmp.le.s32.totalorder 2, %s9
    // Predicated region
    $region37: #{pointnet_sa_msg_forward.11} parent=5 // pred_check
      %p415 = pneg %p414
    $region38: #{pointnet_sa_msg_forward.11} parent=5 // pred_check_branch
      %417 = sbr.rel (%p415) target = $region40
    $region39: #{pointnet_sa_msg_forward.11} parent=5 // pred_region
      %s418 = ssub.s32 %s9, 2
      // Predicated region
      $region41: #{pointnet_sa_msg_forward.11} parent=39 // pred_check
        %p419 = pneg %p106
      $region42: #{pointnet_sa_msg_forward.11} parent=39 // pred_check_branch
        %421 = sbr.rel (%p419) target = $region44
      $region43: #{pointnet_sa_msg_forward.11} parent=39 // pred_region
        %s422 = smul.u32 2, %s15
        %p423 = scmp.lt.s32.totalorder %s422, 3
        %s424 = scalar_select %p423, %s422, 3
        %s425 = smul.addr %s424, 8
        %s426 = scalar_lea.vmem %s3, %s425
      $region44: #{pointnet_sa_msg_forward.11} parent=39 // pred_fallthru
        _
    $region40: #{pointnet_sa_msg_forward.11} parent=5 // pred_fallthru
      _
  $region6: #{pointnet_sa_msg_forward.11} parent=0 // loop_footer
    %s13 = sadd.s32 1, %s9
  $region7: #{pointnet_sa_msg_forward.11} parent=0 // loop_footer_branch
    %8 = sbr.rel target = $region3
  $region8: #{pointnet_sa_msg_forward.11} parent=0 // loop_exit
    _

// kernel: pointnet_sa_msg_forward.10
$region0: #{pointnet_sa_msg_forward.10}
  #allocation0 [shape = 'u32[]', space=smem, size = 0x4, offset = 0x4, fixed_abs, tag = 'smem constant byte address 0x4 - core index']
  #allocation1 [shape = 'u32[144,128]{1,0:T(1,128)}', space=vmem, size = 0x12000, scoped, tag = 'internal scratch']
  %s0 = inlined_call_operand.vmem [shape: bf16[256,128], index: 0, kind: input, shape index: {}]
  %s1 = inlined_call_operand.vmem [shape: f32[1,128], index: 1, kind: input, shape index: {}]
  %s2 = inlined_call_operand.vmem [shape: f32[1,128], index: 2, kind: input, shape index: {}]
  %s3 = inlined_call_operand.vmem [shape: bf16[128,128], index: 3, kind: input, shape index: {}]
  %s4 = inlined_call_operand.vmem [shape: f32[1,128], index: 4, kind: input, shape index: {}]
  %s5 = inlined_call_operand.vmem [shape: bf16[256,128], index: 5, kind: output, shape index: {0}]
  %s6 = inlined_call_operand.vmem [shape: f32[2,8,128], index: 6, kind: output, shape index: {1}]
  %s7 = inlined_call_operand.vmem [shape: f32[2,8,128], index: 7, kind: output, shape index: {2}]
  %8 = xla_tuple %s5, %s6, %s7
  %s9 = sld [smem:[#allocation0]]
  $region73: #{pointnet_sa_msg_forward.10} parent=0
    _
  %s11 = ssub.s32 1, %s9
  %s12 = scalar_select 0, %s11, %s9
  loop: start=0, step=1, limit=4
  $region2: #{pointnet_sa_msg_forward.10} parent=0 // loop_pre_header
    _
  $region3: #{pointnet_sa_msg_forward.10} parent=0 // loop_header
    %s14 = sphi 0, %s18
    %p15 = scmp.ge.s32.totalorder %s14, 4
    %s21 = sphi 0, %s33
    %s22 = sphi 0, %s29
    %s23 = sphi 0, %s21
    %s24 = sphi 0, %s22
    %s25 = sphi 0, %s23
    %s26 = sphi 0, %s24
    %s38 = sphi 0, %s40
    %s41 = sphi 0, %s38
    %s42 = sphi 0, %s41
    %s58 = sphi 0, %s42
    %s62 = sphi 0, %s62
    %s64 = sphi 0, %s62
    %s65 = sphi 0, %s64
    %s79 = sphi 0, %s65
    %s83 = sphi 0, %s83
    %s85 = sphi 0, %s83
    %s86 = sphi 0, %s85
    %s100 = sphi 0, %s86
    %s104 = sphi 0, %s104
    %s106 = sphi 0, %s104
    %s107 = sphi 0, %s106
    %s121 = sphi 0, %s107
    %s125 = sphi 0, %s125
    %s127 = sphi 0, %s125
    %s128 = sphi 0, %s127
    %s142 = sphi 0, %s128
    %s150 = sphi 0, %s152
    %s153 = sphi 0, %s150
    %s154 = sphi 0, %s153
    %s170 = sphi 0, %s154
    %s176 = sphi 0, %s178
    %s179 = sphi 0, %s176
    %s180 = sphi 0, %s179
    %s196 = sphi 0, %s180
    %s202 = sphi 0, %s204
    %s205 = sphi 0, %s202
    %s206 = sphi 0, %s205
    %s222 = sphi 0, %s206
  $region4: #{pointnet_sa_msg_forward.10} parent=0 // loop_header_branch
    %17 = sbr.rel (%p15) target = $region8
  $region5: #{pointnet_sa_msg_forward.10} parent=0 // loop_body
    %s19 = ssub.s32 %s14, 1
    %s20 = ssub.s32 %s14, 2
    %s27 = sadd.s32 1, %s22
    %p28 = scmp.ge.s32.totalorder %s27, 1
    %s29 = scalar_select %p28, 0, %s27
    %s30 = sadd.s32 1, %s21
    %s31 = scalar_select %p28, %s30, %s21
    %p32 = scmp.ge.s32.totalorder %s31, 2
    %s33 = scalar_select %p32, 0, %s31
    %s34 = sadd.s32 %s21, %s22
    %s35 = sadd.s32 %s33, %s29
    %s36 = ssub.s32 %s34, %s35
    %p37 = scmp.eq.s32.totalorder %s36, 0
    %s39 = sadd.s32 %s38, 1
    %s40 = scalar_select %p37, %s38, %s39
    %p43 = pneg %p37
    %p44 = scmp.eq.s32.totalorder %s14, 1
    %p45 = por %p43, %p44
    %p46 = scmp.ne.s32.totalorder %s38, %s41
    %p47 = scmp.eq.s32.totalorder %s14, 0
    %p48 = por %p46, %p47
    %p49 = scmp.ne.s32.totalorder %s38, %s41
    %p50 = scmp.eq.s32.totalorder %s19, 1
    %p51 = por %p49, %p50
    %p52 = scmp.ne.s32.totalorder %s41, %s42
    %p53 = scmp.eq.s32.totalorder %s19, 0
    %p54 = por %p52, %p53
    %p55 = scmp.ne.s32.totalorder %s41, %s42
    %p56 = scmp.eq.s32.totalorder %s20, 1
    %p57 = por %p55, %p56
    %p59 = scmp.ne.s32.totalorder %s42, %s58
    %p60 = scmp.eq.s32.totalorder %s20, 0
    %p61 = por %p59, %p60
    %s63 = sadd.s32 %s62, 1
    %p66 = scmp.eq.s32.totalorder %s14, 1
    %p67 = scmp.ne.s32.totalorder %s62, %s64
    %p68 = scmp.eq.s32.totalorder %s14, 0
    %p69 = por %p67, %p68
    %p70 = scmp.ne.s32.totalorder %s62, %s64
    %p71 = scmp.eq.s32.totalorder %s19, 1
    %p72 = por %p70, %p71
    %p73 = scmp.ne.s32.totalorder %s64, %s65
    %p74 = scmp.eq.s32.totalorder %s19, 0
    %p75 = por %p73, %p74
    %p76 = scmp.ne.s32.totalorder %s64, %s65
    %p77 = scmp.eq.s32.totalorder %s20, 1
    %p78 = por %p76, %p77
    %p80 = scmp.ne.s32.totalorder %s65, %s79
    %p81 = scmp.eq.s32.totalorder %s20, 0
    %p82 = por %p80, %p81
    %s84 = sadd.s32 %s83, 1
    %p87 = scmp.eq.s32.totalorder %s14, 1
    %p88 = scmp.ne.s32.totalorder %s83, %s85
    %p89 = scmp.eq.s32.totalorder %s14, 0
    %p90 = por %p88, %p89
    %p91 = scmp.ne.s32.totalorder %s83, %s85
    %p92 = scmp.eq.s32.totalorder %s19, 1
    %p93 = por %p91, %p92
    %p94 = scmp.ne.s32.totalorder %s85, %s86
    %p95 = scmp.eq.s32.totalorder %s19, 0
    %p96 = por %p94, %p95
    %p97 = scmp.ne.s32.totalorder %s85, %s86
    %p98 = scmp.eq.s32.totalorder %s20, 1
    %p99 = por %p97, %p98
    %p101 = scmp.ne.s32.totalorder %s86, %s100
    %p102 = scmp.eq.s32.totalorder %s20, 0
    %p103 = por %p101, %p102
    %s105 = sadd.s32 %s104, 1
    %p108 = scmp.eq.s32.totalorder %s14, 1
    %p109 = scmp.ne.s32.totalorder %s104, %s106
    %p110 = scmp.eq.s32.totalorder %s14, 0
    %p111 = por %p109, %p110
    %p112 = scmp.ne.s32.totalorder %s104, %s106
    %p113 = scmp.eq.s32.totalorder %s19, 1
    %p114 = por %p112, %p113
    %p115 = scmp.ne.s32.totalorder %s106, %s107
    %p116 = scmp.eq.s32.totalorder %s19, 0
    %p117 = por %p115, %p116
    %p118 = scmp.ne.s32.totalorder %s106, %s107
    %p119 = scmp.eq.s32.totalorder %s20, 1
    %p120 = por %p118, %p119
    %p122 = scmp.ne.s32.totalorder %s107, %s121
    %p123 = scmp.eq.s32.totalorder %s20, 0
    %p124 = por %p122, %p123
    %s126 = sadd.s32 %s125, 1
    %p129 = scmp.eq.s32.totalorder %s14, 1
    %p130 = scmp.ne.s32.totalorder %s125, %s127
    %p131 = scmp.eq.s32.totalorder %s14, 0
    %p132 = por %p130, %p131
    %p133 = scmp.ne.s32.totalorder %s125, %s127
    %p134 = scmp.eq.s32.totalorder %s19, 1
    %p135 = por %p133, %p134
    %p136 = scmp.ne.s32.totalorder %s127, %s128
    %p137 = scmp.eq.s32.totalorder %s19, 0
    %p138 = por %p136, %p137
    %p139 = scmp.ne.s32.totalorder %s127, %s128
    %p140 = scmp.eq.s32.totalorder %s20, 1
    %p141 = por %p139, %p140
    %p143 = scmp.ne.s32.totalorder %s128, %s142
    %p144 = scmp.eq.s32.totalorder %s20, 0
    %p145 = por %p143, %p144
    %s146 = sadd.s32 %s21, %s22
    %s147 = sadd.s32 %s33, %s29
    %s148 = ssub.s32 %s146, %s147
    %p149 = scmp.eq.s32.totalorder %s148, 0
    %s151 = sadd.s32 %s150, 1
    %s152 = scalar_select %p149, %s150, %s151
    %p155 = pneg %p149
    %p156 = scmp.eq.s32.totalorder %s14, 1
    %p157 = por %p155, %p156
    %p158 = scmp.ne.s32.totalorder %s150, %s153
    %p159 = scmp.eq.s32.totalorder %s14, 0
    %p160 = por %p158, %p159
    %p161 = scmp.ne.s32.totalorder %s150, %s153
    %p162 = scmp.eq.s32.totalorder %s19, 1
    %p163 = por %p161, %p162
    %p164 = scmp.ne.s32.totalorder %s153, %s154
    %p165 = scmp.eq.s32.totalorder %s19, 0
    %p166 = por %p164, %p165
    %p167 = scmp.ne.s32.totalorder %s153, %s154
    %p168 = scmp.eq.s32.totalorder %s20, 1
    %p169 = por %p167, %p168
    %p171 = scmp.ne.s32.totalorder %s154, %s170
    %p172 = scmp.eq.s32.totalorder %s20, 0
    %p173 = por %p171, %p172
    %s174 = ssub.s32 %s21, %s33
    %p175 = scmp.eq.s32.totalorder %s174, 0
    %s177 = sadd.s32 %s176, 1
    %s178 = scalar_select %p175, %s176, %s177
    %p181 = pneg %p175
    %p182 = scmp.eq.s32.totalorder %s14, 1
    %p183 = por %p181, %p182
    %p184 = scmp.ne.s32.totalorder %s176, %s179
    %p185 = scmp.eq.s32.totalorder %s14, 0
    %p186 = por %p184, %p185
    %p187 = scmp.ne.s32.totalorder %s176, %s179
    %p188 = scmp.eq.s32.totalorder %s19, 1
    %p189 = por %p187, %p188
    %p190 = scmp.ne.s32.totalorder %s179, %s180
    %p191 = scmp.eq.s32.totalorder %s19, 0
    %p192 = por %p190, %p191
    %p193 = scmp.ne.s32.totalorder %s179, %s180
    %p194 = scmp.eq.s32.totalorder %s20, 1
    %p195 = por %p193, %p194
    %p197 = scmp.ne.s32.totalorder %s180, %s196
    %p198 = scmp.eq.s32.totalorder %s20, 0
    %p199 = por %p197, %p198
    %s200 = ssub.s32 %s21, %s33
    %p201 = scmp.eq.s32.totalorder %s200, 0
    %s203 = sadd.s32 %s202, 1
    %s204 = scalar_select %p201, %s202, %s203
    %p207 = pneg %p201
    %p208 = scmp.eq.s32.totalorder %s14, 1
    %p209 = por %p207, %p208
    %p210 = scmp.ne.s32.totalorder %s202, %s205
    %p211 = scmp.eq.s32.totalorder %s14, 0
    %p212 = por %p210, %p211
    %p213 = scmp.ne.s32.totalorder %s202, %s205
    %p214 = scmp.eq.s32.totalorder %s19, 1
    %p215 = por %p213, %p214
    %p216 = scmp.ne.s32.totalorder %s205, %s206
    %p217 = scmp.eq.s32.totalorder %s19, 0
    %p218 = por %p216, %p217
    %p219 = scmp.ne.s32.totalorder %s205, %s206
    %p220 = scmp.eq.s32.totalorder %s20, 1
    %p221 = por %p219, %p220
    %p223 = scmp.ne.s32.totalorder %s206, %s222
    %p224 = scmp.eq.s32.totalorder %s20, 0
    %p225 = por %p223, %p224
    %p226 = scmp.le.s32.totalorder 1, %s14
    %p227 = scmp.lt.s32.totalorder %s14, 3
    %p228 = pnand %p226, %p227
    %p229 = pneg %p228
    // Predicated region
    $region9: #{pointnet_sa_msg_forward.10} parent=5 // pred_check
      _
    $region10: #{pointnet_sa_msg_forward.10} parent=5 // pred_check_branch
      %231 = sbr.rel (%p228) target = $region12
    $region11: #{pointnet_sa_msg_forward.10} parent=5 // pred_region
      %s232 = ssub.s32 %s14, 1
      // Predicated region
      $region13: #{pointnet_sa_msg_forward.10} parent=11 // pred_check
        %p233 = pneg %p75
      $region14: #{pointnet_sa_msg_forward.10} parent=11 // pred_check_branch
        %235 = sbr.rel (%p233) target = $region16
      $region15: #{pointnet_sa_msg_forward.10} parent=11 // pred_region
        _
      $region16: #{pointnet_sa_msg_forward.10} parent=11 // pred_fallthru
        _
      // Predicated region
      $region17: #{pointnet_sa_msg_forward.10} parent=11 // pred_check
        %p236 = pneg %p96
      $region18: #{pointnet_sa_msg_forward.10} parent=11 // pred_check_branch
        %238 = sbr.rel (%p236) target = $region20
      $region19: #{pointnet_sa_msg_forward.10} parent=11 // pred_region
        _
      $region20: #{pointnet_sa_msg_forward.10} parent=11 // pred_fallthru
        _
      // Predicated region
      $region21: #{pointnet_sa_msg_forward.10} parent=11 // pred_check
        %p239 = pneg %p117
      $region22: #{pointnet_sa_msg_forward.10} parent=11 // pred_check_branch
        %241 = sbr.rel (%p239) target = $region24
      $region23: #{pointnet_sa_msg_forward.10} parent=11 // pred_region
        _
      $region24: #{pointnet_sa_msg_forward.10} parent=11 // pred_fallthru
        _
      // Predicated region
      $region25: #{pointnet_sa_msg_forward.10} parent=11 // pred_check
        %p242 = pneg %p138
      $region26: #{pointnet_sa_msg_forward.10} parent=11 // pred_check_branch
        %244 = sbr.rel (%p242) target = $region28
      $region27: #{pointnet_sa_msg_forward.10} parent=11 // pred_region
        _
      $region28: #{pointnet_sa_msg_forward.10} parent=11 // pred_fallthru
        _
    $region12: #{pointnet_sa_msg_forward.10} parent=5 // pred_fallthru
      _
    %p245 = scmp.lt.s32.totalorder %s14, 2
    // Predicated region
    $region29: #{pointnet_sa_msg_forward.10} parent=5 // pred_check
      %p246 = pneg %p245
    $region30: #{pointnet_sa_msg_forward.10} parent=5 // pred_check_branch
      %248 = sbr.rel (%p246) target = $region32
    $region31: #{pointnet_sa_msg_forward.10} parent=5 // pred_region
      // Predicated region
      $region33: #{pointnet_sa_msg_forward.10} parent=31 // pred_check
        %p249 = pneg %p48
      $region34: #{pointnet_sa_msg_forward.10} parent=31 // pred_check_branch
        %251 = sbr.rel (%p249) target = $region36
      $region35: #{pointnet_sa_msg_forward.10} parent=31 // pred_region
        %s252 = sadd.s32 %s21, %s22
        %s253 = smul.u32 16, %s252
        %p254 = scmp.lt.s32.totalorder %s253, 31
        %s255 = scalar_select %p254, %s253, 31
        %s256 = smul.addr %s255, 4
        %s257 = scalar_lea.vmem %s0, %s256
        %s258 = sadd.s32 %s21, %s22
        %s259 = smul.u32 16, %s258
      $region36: #{pointnet_sa_msg_forward.10} parent=31 // pred_fallthru
        _
    $region32: #{pointnet_sa_msg_forward.10} parent=5 // pred_fallthru
      _
    %p260 = scmp.le.s32.totalorder 1, %s14
    %p261 = scmp.lt.s32.totalorder %s14, 3
    %p262 = pnand %p260, %p261
    %p263 = pneg %p262
    // Predicated region
    $region37: #{pointnet_sa_msg_forward.10} parent=5 // pred_check
      _
    $region38: #{pointnet_sa_msg_forward.10} parent=5 // pred_check_branch
      %265 = sbr.rel (%p262) target = $region40
    $region39: #{pointnet_sa_msg_forward.10} parent=5 // pred_region
      %s266 = ssub.s32 %s14, 1
      %s267 = sadd.s32 %s23, %s24
      %s268 = smul.u32 16, %s267
      %p269 = scmp.lt.s32.totalorder %s268, 31
      %s270 = scalar_select %p269, %s268, 31
      %s271 = smul.addr %s270, 4
      %s272 = scalar_lea.vmem %s0, %s271
      %p273 = pneg %p54
      %p274 = pneg %p51
      %p275 = pneg %p75
      %p276 = pneg %p72
      %p277 = pneg %p96
      %p278 = pneg %p93
      %p279 = pneg %p117
      %p280 = pneg %p114
      %p281 = pneg %p138
      %p282 = pneg %p135
      %p283 = pneg %p166
      %p284 = pneg %p163
      %s285 = sadd.s32 %s23, %s24
      %s286 = smul.u32 16, %s285
      %p287 = scmp.lt.s32.totalorder %s286, 31
      %s288 = scalar_select %p287, %s286, 31
      %s289 = smul.addr %s288, 4
      %s290 = scalar_lea.vmem %s5, %s289
      %p291 = pneg %p192
      %p292 = pneg %p189
      %p293 = scmp.lt.s32.totalorder %s23, 1
      %s294 = scalar_select %p293, %s23, 1
      %s295 = smul.addr %s294, 8
      %s296 = scalar_lea.vmem %s6, %s295
      %p297 = pneg %p218
      %p298 = pneg %p215
      %p299 = scmp.lt.s32.totalorder %s23, 1
      %s300 = scalar_select %p299, %s23, 1
      %s301 = smul.addr %s300, 8
      %s302 = scalar_lea.vmem %s7, %s301
      %s303 = sadd.s32 %s23, %s24
      %s304 = smul.u32 16, %s303
      %p305 = scmp.lt.s32.totalorder %s304, 31
      %s306 = scalar_select %p305, %s304, 31
      %s307 = smul.addr %s306, 4
      %s308 = scalar_lea.vmem %s0, %s307
      %s309 = sadd.s32 %s23, %s24
      %s310 = smul.u32 16, %s309
      %s311 = sadd.s32 %s23, %s24
      %s312 = smul.u32 16, %s311
      %p313 = scmp.lt.s32.totalorder %s312, 31
      %s314 = scalar_select %p313, %s312, 31
      %s315 = smul.addr %s314, 4
      %s316 = scalar_lea.vmem %s5, %s315
      %s317 = sadd.s32 %s23, %s24
      %s318 = smul.u32 16, %s317
      %p319 = scmp.lt.s32.totalorder %s23, 1
      %s320 = scalar_select %p319, %s23, 1
      %s321 = smul.addr %s320, 8
      %s322 = scalar_lea.vmem %s6, %s321
      %p323 = scmp.lt.s32.totalorder %s23, 1
      %s324 = scalar_select %p323, %s23, 1
      %s325 = smul.addr %s324, 8
      %s326 = scalar_lea.vmem %s7, %s325
      %v328 = vld [vmem:[%s308] sm:$0xf]
      %v329 = vld [vmem:[%s308 + $0x4] sm:$0xf]
      %v330 = vld [vmem:[%s308 + $0x8] sm:$0xf]
      %v331 = vld [vmem:[%s308 + $0xc] sm:$0xf]
      %v332 = vld [vmem:[%s308 + $0x10] sm:$0xf]
      %v333 = vld [vmem:[%s308 + $0x14] sm:$0xf]
      %v334 = vld [vmem:[%s308 + $0x18] sm:$0xf]
      %v335 = vld [vmem:[%s308 + $0x1c] sm:$0xf]
      %v336 = vld [vmem:[%s308 + $0x20] sm:$0xf]
      %v337 = vld [vmem:[%s308 + $0x24] sm:$0xf]
      %v338 = vld [vmem:[%s308 + $0x28] sm:$0xf]
      %v339 = vld [vmem:[%s308 + $0x2c] sm:$0xf]
      %v340 = vld [vmem:[%s308 + $0x30] sm:$0xf]
      %v341 = vld [vmem:[%s308 + $0x34] sm:$0xf]
      %v342 = vld [vmem:[%s308 + $0x38] sm:$0xf]
      %v343 = vld [vmem:[%s308 + $0x3c] sm:$0xf]
      %v344 = vunpack.c.l.bf16 %v328
      %v345 = vunpack.c.l.bf16 %v329
      %v346 = vunpack.c.l.bf16 %v330
      %v347 = vunpack.c.l.bf16 %v331
      %v348 = vunpack.c.l.bf16 %v332
      %v349 = vunpack.c.l.bf16 %v333
      %v350 = vunpack.c.l.bf16 %v334
      %v351 = vunpack.c.l.bf16 %v335
      %v352 = vunpack.c.l.bf16 %v336
      %v353 = vunpack.c.l.bf16 %v337
      %v354 = vunpack.c.l.bf16 %v338
      %v355 = vunpack.c.l.bf16 %v339
      %v356 = vunpack.c.l.bf16 %v340
      %v357 = vunpack.c.l.bf16 %v341
      %v358 = vunpack.c.l.bf16 %v342
      %v359 = vunpack.c.l.bf16 %v343
      %v360 = vld [vmem:[%s1] sm:$0x1]
      %v362 = vlaneseq
      %v363 = vshrl.u32 %v362, 7
      %v364 = vsub.s32 0, %v363
      %v365 = vrot.slane %v360, %v364
      %v367 = vmul.f32 %v344, %v365
      %v368 = vmul.f32 %v345, %v365
      %v369 = vmul.f32 %v346, %v365
      %v370 = vmul.f32 %v347, %v365
      %v371 = vmul.f32 %v348, %v365
      %v372 = vmul.f32 %v349, %v365
      %v373 = vmul.f32 %v350, %v365
      %v374 = vmul.f32 %v351, %v365
      %v375 = vmul.f32 %v352, %v365
      %v376 = vmul.f32 %v353, %v365
      %v377 = vmul.f32 %v354, %v365
      %v378 = vmul.f32 %v355, %v365
      %v379 = vmul.f32 %v356, %v365
      %v380 = vmul.f32 %v357, %v365
      %v381 = vmul.f32 %v358, %v365
      %v382 = vmul.f32 %v359, %v365
      %v383 = vld [vmem:[%s2] sm:$0x1]
      %v385 = vlaneseq
      %v386 = vshrl.u32 %v385, 7
      %v387 = vsub.s32 0, %v386
      %v388 = vrot.slane %v383, %v387
      %v390 = vadd.f32 %v367, %v388
      %v391 = vadd.f32 %v368, %v388
      %v392 = vadd.f32 %v369, %v388
      %v393 = vadd.f32 %v370, %v388
      %v394 = vadd.f32 %v371, %v388
      %v395 = vadd.f32 %v372, %v388
      %v396 = vadd.f32 %v373, %v388
      %v397 = vadd.f32 %v374, %v388
      %v398 = vadd.f32 %v375, %v388
      %v399 = vadd.f32 %v376, %v388
      %v400 = vadd.f32 %v377, %v388
      %v401 = vadd.f32 %v378, %v388
      %v402 = vadd.f32 %v379, %v388
      %v403 = vadd.f32 %v380, %v388
      %v404 = vadd.f32 %v381, %v388
      %v405 = vadd.f32 %v382, %v388
      %v406 = vmax.f32 %v390, 0.0
      %v407 = vmax.f32 %v391, 0.0
      %v408 = vmax.f32 %v392, 0.0
      %v409 = vmax.f32 %v393, 0.0
      %v410 = vmax.f32 %v394, 0.0
      %v411 = vmax.f32 %v395, 0.0
      %v412 = vmax.f32 %v396, 0.0
      %v413 = vmax.f32 %v397, 0.0
      %v414 = vmax.f32 %v398, 0.0
      %v415 = vmax.f32 %v399, 0.0
      %v416 = vmax.f32 %v400, 0.0
      %v417 = vmax.f32 %v401, 0.0
      %v418 = vmax.f32 %v402, 0.0
      %v419 = vmax.f32 %v403, 0.0
      %v420 = vmax.f32 %v404, 0.0
      %v421 = vmax.f32 %v405, 0.0
      %v422 = vpack.c.bf16 %v407, %v406
      %v423 = vpack.c.bf16 %v409, %v408
      %v424 = vpack.c.bf16 %v411, %v410
      %v425 = vpack.c.bf16 %v413, %v412
      %v426 = vpack.c.bf16 %v415, %v414
      %v427 = vpack.c.bf16 %v417, %v416
      %v428 = vpack.c.bf16 %v419, %v418
      %v429 = vpack.c.bf16 %v421, %v420
      %v430 = vld [vmem:[%s3] sm:$0xf]
      %v431 = vld [vmem:[%s3 + $0x4] sm:$0xf]
      %v432 = vld [vmem:[%s3 + $0x8] sm:$0xf]
      %v433 = vld [vmem:[%s3 + $0xc] sm:$0xf]
      %v434 = vld [vmem:[%s3 + $0x10] sm:$0xf]
      %v435 = vld [vmem:[%s3 + $0x14] sm:$0xf]
      %v436 = vld [vmem:[%s3 + $0x18] sm:$0xf]
      %v437 = vld [vmem:[%s3 + $0x1c] sm:$0xf]
      %v438 = vld [vmem:[%s3 + $0x20] sm:$0xf]
      %v439 = vld [vmem:[%s3 + $0x24] sm:$0xf]
      %v440 = vld [vmem:[%s3 + $0x28] sm:$0xf]
      %v441 = vld [vmem:[%s3 + $0x2c] sm:$0xf]
      %v442 = vld [vmem:[%s3 + $0x30] sm:$0xf]
      %v443 = vld [vmem:[%s3 + $0x34] sm:$0xf]
      %v444 = vld [vmem:[%s3 + $0x38] sm:$0xf]
      %v445 = vld [vmem:[%s3 + $0x3c] sm:$0xf]
      %v446 = vld [vmem:[%s4] sm:$0x1]
      %v448 = vlaneseq
      %v449 = vshrl.u32 %v448, 7
      %v450 = vsub.s32 0, %v449
      %v451 = vrot.slane %v446, %v450
      %v469 = vunpack.c.l.b16 %v430
      %v470 = vunpack.c.l.b16 %v431
      %v471 = vunpack.c.l.b16 %v432
      %v472 = vunpack.c.l.b16 %v433
      %v473 = vunpack.c.l.b16 %v434
      %v474 = vunpack.c.l.b16 %v435
      %v475 = vunpack.c.l.b16 %v436
      %v476 = vunpack.c.l.b16 %v437
      %v477 = vunpack.c.l.b16 %v438
      %v478 = vunpack.c.l.b16 %v439
      %v479 = vunpack.c.l.b16 %v440
      %v480 = vunpack.c.l.b16 %v441
      %v481 = vunpack.c.l.b16 %v442
      %v482 = vunpack.c.l.b16 %v443
      %v483 = vunpack.c.l.b16 %v444
      %v484 = vunpack.c.l.b16 %v445
      %v485 = vpack.c.b16 %v470, %v469
      %v486 = vpack.c.b16 %v472, %v471
      %v487 = vpack.c.b16 %v474, %v473
      %v488 = vpack.c.b16 %v476, %v475
      %v489 = vpack.c.b16 %v478, %v477
      %v490 = vpack.c.b16 %v480, %v479
      %v491 = vpack.c.b16 %v482, %v481
      %v492 = vpack.c.b16 %v484, %v483
      %501 = vmatprep.subr.bf16.mxu0 0
      %502 = vmatpush1.bf16.msra.mxu0 %v485
      %503 = vmatprep.subr.bf16.mxu0 0
      %504 = vmatpush1.bf16.msra.mxu0 %v486
      %505 = vmatprep.subr.bf16.mxu0 0
      %506 = vmatpush1.bf16.msra.mxu0 %v487
      %507 = vmatprep.subr.bf16.mxu0 0
      %508 = vmatpush1.bf16.msra.mxu0 %v488
      %509 = vmatprep.subr.bf16.mxu0 0
      %510 = vmatpush1.bf16.msra.mxu0 %v489
      %511 = vmatprep.subr.bf16.mxu0 0
      %512 = vmatpush1.bf16.msra.mxu0 %v490
      %513 = vmatprep.subr.bf16.mxu0 0
      %514 = vmatpush1.bf16.msra.mxu0 %v491
      %515 = vmatprep.subr.bf16.mxu0 0
      %516 = vmatpush1.bf16.msra.mxu0 %v492
      %517 = vmatprep.subr.bf16.mxu0 0
      %518 = vmatpush1.bf16.msra.mxu0 0
      %519 = vmatprep.subr.bf16.mxu0 0
      %520 = vmatpush1.bf16.msra.mxu0 0
      %521 = vmatprep.subr.bf16.mxu0 0
      %522 = vmatpush1.bf16.msra.mxu0 0
      %523 = vmatprep.subr.bf16.mxu0 0
      %524 = vmatpush1.bf16.msra.mxu0 0
      %525 = vmatprep.subr.bf16.mxu0 0
      %526 = vmatpush1.bf16.msra.mxu0 0
      %527 = vmatprep.subr.bf16.mxu0 0
      %528 = vmatpush1.bf16.msra.mxu0 0
      %529 = vmatprep.subr.bf16.mxu0 0
      %530 = vmatpush1.bf16.msra.mxu0 0
      %531 = vmatprep.subr.bf16.mxu0 0
      %532 = vmatpush1.bf16.msra.mxu0 0
      %533 = vmatprep.mubr.bf16.mxu0 0
      %534 = vmatmul.mubr.bf16.gmra.mrb[0].mxu0 %v422
      %v535 = vpop.f32.mrb[0].mxu0
      %v536 = vadd.f32 %v451, %v535
      %v537 = vpop.f32.mrb[0].mxu0
      %v538 = vpop.f32.mrb[0].mxu0
      %v539 = vadd.f32 %v451, %v538
      %v540 = vpop.f32.mrb[0].mxu0
      %541 = vmatprep.mubr.bf16.mxu0 0
      %542 = vmatmul.mubr.bf16.gmra.mrb[0].mxu0 %v423
      %v543 = vpop.f32.mrb[0].mxu0
      %v544 = vadd.f32 %v451, %v543
      %v545 = vpop.f32.mrb[0].mxu0
      %v546 = vpop.f32.mrb[0].mxu0
      %v547 = vadd.f32 %v451, %v546
      %v548 = vpop.f32.mrb[0].mxu0
      %549 = vmatprep.mubr.bf16.mxu0 0
      %550 = vmatmul.mubr.bf16.gmra.mrb[0].mxu0 %v424
      %v551 = vpop.f32.mrb[0].mxu0
      %v552 = vadd.f32 %v451, %v551
      %v553 = vpop.f32.mrb[0].mxu0
      %v554 = vpop.f32.mrb[0].mxu0
      %v555 = vadd.f32 %v451, %v554
      %v556 = vpop.f32.mrb[0].mxu0
      %557 = vmatprep.mubr.bf16.mxu0 0
      %558 = vmatmul.mubr.bf16.gmra.mrb[0].mxu0 %v425
      %v559 = vpop.f32.mrb[0].mxu0
      %v560 = vadd.f32 %v451, %v559
      %v561 = vpop.f32.mrb[0].mxu0
      %v562 = vpop.f32.mrb[0].mxu0
      %v563 = vadd.f32 %v451, %v562
      %v564 = vpop.f32.mrb[0].mxu0
      %565 = vmatprep.mubr.bf16.mxu0 0
      %566 = vmatmul.mubr.bf16.gmra.mrb[0].mxu0 %v426
      %v567 = vpop.f32.mrb[0].mxu0
      %v568 = vadd.f32 %v451, %v567
      %v569 = vpop.f32.mrb[0].mxu0
      %v570 = vpop.f32.mrb[0].mxu0
      %v571 = vadd.f32 %v451, %v570
      %v572 = vpop.f32.mrb[0].mxu0
      %573 = vmatprep.mubr.bf16.mxu0 0
      %574 = vmatmul.mubr.bf16.gmra.mrb[0].mxu0 %v427
      %v575 = vpop.f32.mrb[0].mxu0
      %v576 = vadd.f32 %v451, %v575
      %v577 = vpop.f32.mrb[0].mxu0
      %v578 = vpop.f32.mrb[0].mxu0
      %v579 = vadd.f32 %v451, %v578
      %v580 = vpop.f32.mrb[0].mxu0
      %581 = vmatprep.mubr.bf16.mxu0 0
      %582 = vmatmul.mubr.bf16.gmra.mrb[0].mxu0 %v428
      %v583 = vpop.f32.mrb[0].mxu0
      %v584 = vadd.f32 %v451, %v583
      %v585 = vpop.f32.mrb[0].mxu0
      %v586 = vpop.f32.mrb[0].mxu0
      %v587 = vadd.f32 %v451, %v586
      %v588 = vpop.f32.mrb[0].mxu0
      %589 = vmatprep.mubr.bf16.mxu0 0
      %590 = vmatmul.mubr.bf16.gmra.mrb[0].mxu0 %v429
      %v591 = vpop.f32.mrb[0].mxu0
      %v592 = vadd.f32 %v451, %v591
      %v593 = vpop.f32.mrb[0].mxu0
      %v594 = vpop.f32.mrb[0].mxu0
      %v595 = vadd.f32 %v451, %v594
      %v596 = vpop.f32.mrb[0].mxu0
      %597 = vdwg.mxu0
      %v598 = vpack.c.bf16 %v539, %v536
      %v599 = vpack.c.bf16 %v547, %v544
      %v600 = vpack.c.bf16 %v555, %v552
      %v601 = vpack.c.bf16 %v563, %v560
      %v602 = vpack.c.bf16 %v571, %v568
      %v603 = vpack.c.bf16 %v579, %v576
      %v604 = vpack.c.bf16 %v587, %v584
      %v605 = vpack.c.bf16 %v595, %v592
      %v614 = vunpack.c.l.b16 %v598
      %v615 = vunpack.c.h.b16 %v598
      %v616 = vunpack.c.l.b16 %v599
      %v617 = vunpack.c.h.b16 %v599
      %v618 = vunpack.c.l.b16 %v600
      %v619 = vunpack.c.h.b16 %v600
      %v620 = vunpack.c.l.b16 %v601
      %v621 = vunpack.c.h.b16 %v601
      %v622 = vunpack.c.l.b16 %v602
      %v623 = vunpack.c.h.b16 %v602
      %v624 = vunpack.c.l.b16 %v603
      %v625 = vunpack.c.h.b16 %v603
      %v626 = vunpack.c.l.b16 %v604
      %v627 = vunpack.c.h.b16 %v604
      %v628 = vunpack.c.l.b16 %v605
      %v629 = vunpack.c.h.b16 %v605
      %v630 = vpack.c.b16 %v614, %v614
      %v631 = vpack.c.b16 %v615, %v615
      %v632 = vpack.c.b16 %v616, %v616
      %v633 = vpack.c.b16 %v617, %v617
      %v634 = vpack.c.b16 %v618, %v618
      %v635 = vpack.c.b16 %v619, %v619
      %v636 = vpack.c.b16 %v620, %v620
      %v637 = vpack.c.b16 %v621, %v621
      %v638 = vpack.c.b16 %v622, %v622
      %v639 = vpack.c.b16 %v623, %v623
      %v640 = vpack.c.b16 %v624, %v624
      %v641 = vpack.c.b16 %v625, %v625
      %v642 = vpack.c.b16 %v626, %v626
      %v643 = vpack.c.b16 %v627, %v627
      %v644 = vpack.c.b16 %v628, %v628
      %v645 = vpack.c.b16 %v629, %v629
      %662 = vst [vmem:[%s316] sm:$0xf] %v630
      %663 = vst [vmem:[%s316 + $0x4] sm:$0xf] %v631
      %664 = vst [vmem:[%s316 + $0x8] sm:$0xf] %v632
      %665 = vst [vmem:[%s316 + $0xc] sm:$0xf] %v633
      %666 = vst [vmem:[%s316 + $0x10] sm:$0xf] %v634
      %667 = vst [vmem:[%s316 + $0x14] sm:$0xf] %v635
      %668 = vst [vmem:[%s316 + $0x18] sm:$0xf] %v636
      %669 = vst [vmem:[%s316 + $0x1c] sm:$0xf] %v637
      %670 = vst [vmem:[%s316 + $0x20] sm:$0xf] %v638
      %671 = vst [vmem:[%s316 + $0x24] sm:$0xf] %v639
      %672 = vst [vmem:[%s316 + $0x28] sm:$0xf] %v640
      %673 = vst [vmem:[%s316 + $0x2c] sm:$0xf] %v641
      %674 = vst [vmem:[%s316 + $0x30] sm:$0xf] %v642
      %675 = vst [vmem:[%s316 + $0x34] sm:$0xf] %v643
      %676 = vst [vmem:[%s316 + $0x38] sm:$0xf] %v644
      %677 = vst [vmem:[%s316 + $0x3c] sm:$0xf] %v645
      %p678 = scmp.eq.s32.totalorder %s24, 0
      // Predicated region
      $region41: #{pointnet_sa_msg_forward.10} parent=39 // pred_check
        %p679 = pneg %p678
      $region42: #{pointnet_sa_msg_forward.10} parent=39 // pred_check_branch
        %681 = sbr.rel (%p679) target = $region44
      $region43: #{pointnet_sa_msg_forward.10} parent=39 // pred_region
        %682 = vst [vmem:[%s322] sm:$0xff] 0.0
        %683 = vst [vmem:[%s326] sm:$0xff] 0.0
      $region44: #{pointnet_sa_msg_forward.10} parent=39 // pred_fallthru
        _
      %v684 = vld [vmem:[%s322] sm:$0xff]
      %v685 = vadd.f32 %v536, %v539
      %v686 = vadd.f32 %v685, %v544
      %v687 = vadd.f32 %v686, %v547
      %v688 = vadd.f32 %v687, %v552
      %v689 = vadd.f32 %v688, %v555
      %v690 = vadd.f32 %v689, %v560
      %v691 = vadd.f32 %v690, %v563
      %v692 = vadd.f32 %v691, %v568
      %v693 = vadd.f32 %v692, %v571
      %v694 = vadd.f32 %v693, %v576
      %v695 = vadd.f32 %v694, %v579
      %v696 = vadd.f32 %v695, %v584
      %v697 = vadd.f32 %v696, %v587
      %v698 = vadd.f32 %v697, %v592
      %v699 = vadd.f32 %v698, %v595
      %v700 = vadd.f32 %v684, %v699
      %701 = vst [vmem:[%s322] sm:$0xff] %v700
      %v702 = vld [vmem:[%s326] sm:$0xff]
      %v703 = vmul.f32 %v536, %v536
      %v704 = vmul.f32 %v539, %v539
      %v705 = vmul.f32 %v544, %v544
      %v706 = vmul.f32 %v547, %v547
      %v707 = vmul.f32 %v552, %v552
      %v708 = vmul.f32 %v555, %v555
      %v709 = vmul.f32 %v560, %v560
      %v710 = vmul.f32 %v563, %v563
      %v711 = vmul.f32 %v568, %v568
      %v712 = vmul.f32 %v571, %v571
      %v713 = vmul.f32 %v576, %v576
      %v714 = vmul.f32 %v579, %v579
      %v715 = vmul.f32 %v584, %v584
      %v716 = vmul.f32 %v587, %v587
      %v717 = vmul.f32 %v592, %v592
      %v718 = vmul.f32 %v595, %v595
      %v719 = vadd.f32 %v703, %v704
      %v720 = vadd.f32 %v719, %v705
      %v721 = vadd.f32 %v720, %v706
      %v722 = vadd.f32 %v721, %v707
      %v723 = vadd.f32 %v722, %v708
      %v724 = vadd.f32 %v723, %v709
      %v725 = vadd.f32 %v724, %v710
      %v726 = vadd.f32 %v725, %v711
      %v727 = vadd.f32 %v726, %v712
      %v728 = vadd.f32 %v727, %v713
      %v729 = vadd.f32 %v728, %v714
      %v730 = vadd.f32 %v729, %v715
      %v731 = vadd.f32 %v730, %v716
      %v732 = vadd.f32 %v731, %v717
      %v733 = vadd.f32 %v732, %v718
      %v734 = vadd.f32 %v702, %v733
      %735 = vst [vmem:[%s326] sm:$0xff] %v734
      %s736 = sadd.s32 %s23, %s24
      %s737 = smul.u32 16, %s736
      %p738 = scmp.lt.s32.totalorder %s737, 31
      %s739 = scalar_select %p738, %s737, 31
      %s740 = smul.addr %s739, 4
      %s741 = scalar_lea.vmem %s5, %s740
      %p742 = scmp.lt.s32.totalorder %s23, 1
      %s743 = scalar_select %p742, %s23, 1
      %s744 = smul.addr %s743, 8
      %s745 = scalar_lea.vmem %s6, %s744
      %p746 = scmp.lt.s32.totalorder %s23, 1
      %s747 = scalar_select %p746, %s23, 1
      %s748 = smul.addr %s747, 8
      %s749 = scalar_lea.vmem %s7, %s748
      // Predicated region
      $region45: #{pointnet_sa_msg_forward.10} parent=39 // pred_check
        %p750 = pneg %p163
      $region46: #{pointnet_sa_msg_forward.10} parent=39 // pred_check_branch
        %752 = sbr.rel (%p750) target = $region48
      $region47: #{pointnet_sa_msg_forward.10} parent=39 // pred_region
        %s753 = sadd.s32 %s23, %s24
        %s754 = smul.u32 16, %s753
      $region48: #{pointnet_sa_msg_forward.10} parent=39 // pred_fallthru
        _
      // Predicated region
      $region49: #{pointnet_sa_msg_forward.10} parent=39 // pred_check
        %p755 = pneg %p189
      $region50: #{pointnet_sa_msg_forward.10} parent=39 // pred_check_branch
        %757 = sbr.rel (%p755) target = $region52
      $region51: #{pointnet_sa_msg_forward.10} parent=39 // pred_region
        _
      $region52: #{pointnet_sa_msg_forward.10} parent=39 // pred_fallthru
        _
      // Predicated region
      $region53: #{pointnet_sa_msg_forward.10} parent=39 // pred_check
        %p758 = pneg %p215
      $region54: #{pointnet_sa_msg_forward.10} parent=39 // pred_check_branch
        %760 = sbr.rel (%p758) target = $region56
      $region55: #{pointnet_sa_msg_forward.10} parent=39 // pred_region
        _
      $region56: #{pointnet_sa_msg_forward.10} parent=39 // pred_fallthru
        _
    $region40: #{pointnet_sa_msg_forward.10} parent=5 // pred_fallthru
      _
    %p761 = scmp.le.s32.totalorder 2, %s14
    // Predicated region
    $region57: #{pointnet_sa_msg_forward.10} parent=5 // pred_check
      %p762 = pneg %p761
    $region58: #{pointnet_sa_msg_forward.10} parent=5 // pred_check_branch
      %764 = sbr.rel (%p762) target = $region60
    $region59: #{pointnet_sa_msg_forward.10} parent=5 // pred_region
      %s765 = ssub.s32 %s14, 2
      // Predicated region
      $region61: #{pointnet_sa_msg_forward.10} parent=59 // pred_check
        %p766 = pneg %p169
      $region62: #{pointnet_sa_msg_forward.10} parent=59 // pred_check_branch
        %768 = sbr.rel (%p766) target = $region64
      $region63: #{pointnet_sa_msg_forward.10} parent=59 // pred_region
        %s769 = sadd.s32 %s25, %s26
        %s770 = smul.u32 16, %s769
        %p771 = scmp.lt.s32.totalorder %s770, 31
        %s772 = scalar_select %p771, %s770, 31
        %s773 = smul.addr %s772, 4
        %s774 = scalar_lea.vmem %s5, %s773
      $region64: #{pointnet_sa_msg_forward.10} parent=59 // pred_fallthru
        _
      // Predicated region
      $region65: #{pointnet_sa_msg_forward.10} parent=59 // pred_check
        %p775 = pneg %p195
      $region66: #{pointnet_sa_msg_forward.10} parent=59 // pred_check_branch
        %777 = sbr.rel (%p775) target = $region68
      $region67: #{pointnet_sa_msg_forward.10} parent=59 // pred_region
        %p778 = scmp.lt.s32.totalorder %s25, 1
        %s779 = scalar_select %p778, %s25, 1
        %s780 = smul.addr %s779, 8
        %s781 = scalar_lea.vmem %s6, %s780
      $region68: #{pointnet_sa_msg_forward.10} parent=59 // pred_fallthru
        _
      // Predicated region
      $region69: #{pointnet_sa_msg_forward.10} parent=59 // pred_check
        %p782 = pneg %p221
      $region70: #{pointnet_sa_msg_forward.10} parent=59 // pred_check_branch
        %784 = sbr.rel (%p782) target = $region72
      $region71: #{pointnet_sa_msg_forward.10} parent=59 // pred_region
        %p785 = scmp.lt.s32.totalorder %s25, 1
        %s786 = scalar_select %p785, %s25, 1
        %s787 = smul.addr %s786, 8
        %s788 = scalar_lea.vmem %s7, %s787
      $region72: #{pointnet_sa_msg_forward.10} parent=59 // pred_fallthru
        _
    $region60: #{pointnet_sa_msg_forward.10} parent=5 // pred_fallthru
      _
  $region6: #{pointnet_sa_msg_forward.10} parent=0 // loop_footer
    %s18 = sadd.s32 1, %s14
  $region7: #{pointnet_sa_msg_forward.10} parent=0 // loop_footer_branch
    %13 = sbr.rel target = $region3
  $region8: #{pointnet_sa_msg_forward.10} parent=0 // loop_exit
    _

// kernel: pointnet_sa_msg_forward.13
$region0: #{pointnet_sa_msg_forward.13}
  #allocation0 [shape = 'u32[]', space=smem, size = 0x4, offset = 0x4, fixed_abs, tag = 'smem constant byte address 0x4 - core index']
  #allocation1 [shape = 'u32[144,128]{1,0:T(1,128)}', space=vmem, size = 0x12000, scoped, tag = 'internal scratch']
  %s0 = inlined_call_operand.vmem [shape: bf16[512,128], index: 0, kind: input, shape index: {}]
  %s1 = inlined_call_operand.vmem [shape: f32[1,128], index: 1, kind: input, shape index: {}]
  %s2 = inlined_call_operand.vmem [shape: f32[1,128], index: 2, kind: input, shape index: {}]
  %s3 = inlined_call_operand.vmem [shape: bf16[128,128], index: 3, kind: input, shape index: {}]
  %s4 = inlined_call_operand.vmem [shape: f32[1,128], index: 4, kind: input, shape index: {}]
  %s5 = inlined_call_operand.vmem [shape: bf16[512,128], index: 5, kind: output, shape index: {0}]
  %s6 = inlined_call_operand.vmem [shape: f32[2,8,128], index: 6, kind: output, shape index: {1}]
  %s7 = inlined_call_operand.vmem [shape: f32[2,8,128], index: 7, kind: output, shape index: {2}]
  %8 = xla_tuple %s5, %s6, %s7
  %s9 = sld [smem:[#allocation0]]
  $region73: #{pointnet_sa_msg_forward.13} parent=0
    _
  %s11 = ssub.s32 1, %s9
  %s12 = scalar_select 0, %s11, %s9
  loop: start=0, step=1, limit=4
  $region2: #{pointnet_sa_msg_forward.13} parent=0 // loop_pre_header
    _
  $region3: #{pointnet_sa_msg_forward.13} parent=0 // loop_header
    %s14 = sphi 0, %s18
    %p15 = scmp.ge.s32.totalorder %s14, 4
    %s21 = sphi 0, %s33
    %s22 = sphi 0, %s29
    %s23 = sphi 0, %s21
    %s24 = sphi 0, %s22
    %s25 = sphi 0, %s23
    %s26 = sphi 0, %s24
    %s38 = sphi 0, %s40
    %s41 = sphi 0, %s38
    %s42 = sphi 0, %s41
    %s58 = sphi 0, %s42
    %s62 = sphi 0, %s62
    %s64 = sphi 0, %s62
    %s65 = sphi 0, %s64
    %s79 = sphi 0, %s65
    %s83 = sphi 0, %s83
    %s85 = sphi 0, %s83
    %s86 = sphi 0, %s85
    %s100 = sphi 0, %s86
    %s104 = sphi 0, %s104
    %s106 = sphi 0, %s104
    %s107 = sphi 0, %s106
    %s121 = sphi 0, %s107
    %s125 = sphi 0, %s125
    %s127 = sphi 0, %s125
    %s128 = sphi 0, %s127
    %s142 = sphi 0, %s128
    %s150 = sphi 0, %s152
    %s153 = sphi 0, %s150
    %s154 = sphi 0, %s153
    %s170 = sphi 0, %s154
    %s176 = sphi 0, %s178
    %s179 = sphi 0, %s176
    %s180 = sphi 0, %s179
    %s196 = sphi 0, %s180
    %s202 = sphi 0, %s204
    %s205 = sphi 0, %s202
    %s206 = sphi 0, %s205
    %s222 = sphi 0, %s206
  $region4: #{pointnet_sa_msg_forward.13} parent=0 // loop_header_branch
    %17 = sbr.rel (%p15) target = $region8
  $region5: #{pointnet_sa_msg_forward.13} parent=0 // loop_body
    %s19 = ssub.s32 %s14, 1
    %s20 = ssub.s32 %s14, 2
    %s27 = sadd.s32 1, %s22
    %p28 = scmp.ge.s32.totalorder %s27, 1
    %s29 = scalar_select %p28, 0, %s27
    %s30 = sadd.s32 1, %s21
    %s31 = scalar_select %p28, %s30, %s21
    %p32 = scmp.ge.s32.totalorder %s31, 2
    %s33 = scalar_select %p32, 0, %s31
    %s34 = sadd.s32 %s21, %s22
    %s35 = sadd.s32 %s33, %s29
    %s36 = ssub.s32 %s34, %s35
    %p37 = scmp.eq.s32.totalorder %s36, 0
    %s39 = sadd.s32 %s38, 1
    %s40 = scalar_select %p37, %s38, %s39
    %p43 = pneg %p37
    %p44 = scmp.eq.s32.totalorder %s14, 1
    %p45 = por %p43, %p44
    %p46 = scmp.ne.s32.totalorder %s38, %s41
    %p47 = scmp.eq.s32.totalorder %s14, 0
    %p48 = por %p46, %p47
    %p49 = scmp.ne.s32.totalorder %s38, %s41
    %p50 = scmp.eq.s32.totalorder %s19, 1
    %p51 = por %p49, %p50
    %p52 = scmp.ne.s32.totalorder %s41, %s42
    %p53 = scmp.eq.s32.totalorder %s19, 0
    %p54 = por %p52, %p53
    %p55 = scmp.ne.s32.totalorder %s41, %s42
    %p56 = scmp.eq.s32.totalorder %s20, 1
    %p57 = por %p55, %p56
    %p59 = scmp.ne.s32.totalorder %s42, %s58
    %p60 = scmp.eq.s32.totalorder %s20, 0
    %p61 = por %p59, %p60
    %s63 = sadd.s32 %s62, 1
    %p66 = scmp.eq.s32.totalorder %s14, 1
    %p67 = scmp.ne.s32.totalorder %s62, %s64
    %p68 = scmp.eq.s32.totalorder %s14, 0
    %p69 = por %p67, %p68
    %p70 = scmp.ne.s32.totalorder %s62, %s64
    %p71 = scmp.eq.s32.totalorder %s19, 1
    %p72 = por %p70, %p71
    %p73 = scmp.ne.s32.totalorder %s64, %s65
    %p74 = scmp.eq.s32.totalorder %s19, 0
    %p75 = por %p73, %p74
    %p76 = scmp.ne.s32.totalorder %s64, %s65
    %p77 = scmp.eq.s32.totalorder %s20, 1
    %p78 = por %p76, %p77
    %p80 = scmp.ne.s32.totalorder %s65, %s79
    %p81 = scmp.eq.s32.totalorder %s20, 0
    %p82 = por %p80, %p81
    %s84 = sadd.s32 %s83, 1
    %p87 = scmp.eq.s32.totalorder %s14, 1
    %p88 = scmp.ne.s32.totalorder %s83, %s85
    %p89 = scmp.eq.s32.totalorder %s14, 0
    %p90 = por %p88, %p89
    %p91 = scmp.ne.s32.totalorder %s83, %s85
    %p92 = scmp.eq.s32.totalorder %s19, 1
    %p93 = por %p91, %p92
    %p94 = scmp.ne.s32.totalorder %s85, %s86
    %p95 = scmp.eq.s32.totalorder %s19, 0
    %p96 = por %p94, %p95
    %p97 = scmp.ne.s32.totalorder %s85, %s86
    %p98 = scmp.eq.s32.totalorder %s20, 1
    %p99 = por %p97, %p98
    %p101 = scmp.ne.s32.totalorder %s86, %s100
    %p102 = scmp.eq.s32.totalorder %s20, 0
    %p103 = por %p101, %p102
    %s105 = sadd.s32 %s104, 1
    %p108 = scmp.eq.s32.totalorder %s14, 1
    %p109 = scmp.ne.s32.totalorder %s104, %s106
    %p110 = scmp.eq.s32.totalorder %s14, 0
    %p111 = por %p109, %p110
    %p112 = scmp.ne.s32.totalorder %s104, %s106
    %p113 = scmp.eq.s32.totalorder %s19, 1
    %p114 = por %p112, %p113
    %p115 = scmp.ne.s32.totalorder %s106, %s107
    %p116 = scmp.eq.s32.totalorder %s19, 0
    %p117 = por %p115, %p116
    %p118 = scmp.ne.s32.totalorder %s106, %s107
    %p119 = scmp.eq.s32.totalorder %s20, 1
    %p120 = por %p118, %p119
    %p122 = scmp.ne.s32.totalorder %s107, %s121
    %p123 = scmp.eq.s32.totalorder %s20, 0
    %p124 = por %p122, %p123
    %s126 = sadd.s32 %s125, 1
    %p129 = scmp.eq.s32.totalorder %s14, 1
    %p130 = scmp.ne.s32.totalorder %s125, %s127
    %p131 = scmp.eq.s32.totalorder %s14, 0
    %p132 = por %p130, %p131
    %p133 = scmp.ne.s32.totalorder %s125, %s127
    %p134 = scmp.eq.s32.totalorder %s19, 1
    %p135 = por %p133, %p134
    %p136 = scmp.ne.s32.totalorder %s127, %s128
    %p137 = scmp.eq.s32.totalorder %s19, 0
    %p138 = por %p136, %p137
    %p139 = scmp.ne.s32.totalorder %s127, %s128
    %p140 = scmp.eq.s32.totalorder %s20, 1
    %p141 = por %p139, %p140
    %p143 = scmp.ne.s32.totalorder %s128, %s142
    %p144 = scmp.eq.s32.totalorder %s20, 0
    %p145 = por %p143, %p144
    %s146 = sadd.s32 %s21, %s22
    %s147 = sadd.s32 %s33, %s29
    %s148 = ssub.s32 %s146, %s147
    %p149 = scmp.eq.s32.totalorder %s148, 0
    %s151 = sadd.s32 %s150, 1
    %s152 = scalar_select %p149, %s150, %s151
    %p155 = pneg %p149
    %p156 = scmp.eq.s32.totalorder %s14, 1
    %p157 = por %p155, %p156
    %p158 = scmp.ne.s32.totalorder %s150, %s153
    %p159 = scmp.eq.s32.totalorder %s14, 0
    %p160 = por %p158, %p159
    %p161 = scmp.ne.s32.totalorder %s150, %s153
    %p162 = scmp.eq.s32.totalorder %s19, 1
    %p163 = por %p161, %p162
    %p164 = scmp.ne.s32.totalorder %s153, %s154
    %p165 = scmp.eq.s32.totalorder %s19, 0
    %p166 = por %p164, %p165
    %p167 = scmp.ne.s32.totalorder %s153, %s154
    %p168 = scmp.eq.s32.totalorder %s20, 1
    %p169 = por %p167, %p168
    %p171 = scmp.ne.s32.totalorder %s154, %s170
    %p172 = scmp.eq.s32.totalorder %s20, 0
    %p173 = por %p171, %p172
    %s174 = ssub.s32 %s21, %s33
    %p175 = scmp.eq.s32.totalorder %s174, 0
    %s177 = sadd.s32 %s176, 1
    %s178 = scalar_select %p175, %s176, %s177
    %p181 = pneg %p175
    %p182 = scmp.eq.s32.totalorder %s14, 1
    %p183 = por %p181, %p182
    %p184 = scmp.ne.s32.totalorder %s176, %s179
    %p185 = scmp.eq.s32.totalorder %s14, 0
    %p186 = por %p184, %p185
    %p187 = scmp.ne.s32.totalorder %s176, %s179
    %p188 = scmp.eq.s32.totalorder %s19, 1
    %p189 = por %p187, %p188
    %p190 = scmp.ne.s32.totalorder %s179, %s180
    %p191 = scmp.eq.s32.totalorder %s19, 0
    %p192 = por %p190, %p191
    %p193 = scmp.ne.s32.totalorder %s179, %s180
    %p194 = scmp.eq.s32.totalorder %s20, 1
    %p195 = por %p193, %p194
    %p197 = scmp.ne.s32.totalorder %s180, %s196
    %p198 = scmp.eq.s32.totalorder %s20, 0
    %p199 = por %p197, %p198
    %s200 = ssub.s32 %s21, %s33
    %p201 = scmp.eq.s32.totalorder %s200, 0
    %s203 = sadd.s32 %s202, 1
    %s204 = scalar_select %p201, %s202, %s203
    %p207 = pneg %p201
    %p208 = scmp.eq.s32.totalorder %s14, 1
    %p209 = por %p207, %p208
    %p210 = scmp.ne.s32.totalorder %s202, %s205
    %p211 = scmp.eq.s32.totalorder %s14, 0
    %p212 = por %p210, %p211
    %p213 = scmp.ne.s32.totalorder %s202, %s205
    %p214 = scmp.eq.s32.totalorder %s19, 1
    %p215 = por %p213, %p214
    %p216 = scmp.ne.s32.totalorder %s205, %s206
    %p217 = scmp.eq.s32.totalorder %s19, 0
    %p218 = por %p216, %p217
    %p219 = scmp.ne.s32.totalorder %s205, %s206
    %p220 = scmp.eq.s32.totalorder %s20, 1
    %p221 = por %p219, %p220
    %p223 = scmp.ne.s32.totalorder %s206, %s222
    %p224 = scmp.eq.s32.totalorder %s20, 0
    %p225 = por %p223, %p224
    %p226 = scmp.le.s32.totalorder 1, %s14
    %p227 = scmp.lt.s32.totalorder %s14, 3
    %p228 = pnand %p226, %p227
    %p229 = pneg %p228
    // Predicated region
    $region9: #{pointnet_sa_msg_forward.13} parent=5 // pred_check
      _
    $region10: #{pointnet_sa_msg_forward.13} parent=5 // pred_check_branch
      %231 = sbr.rel (%p228) target = $region12
    $region11: #{pointnet_sa_msg_forward.13} parent=5 // pred_region
      %s232 = ssub.s32 %s14, 1
      // Predicated region
      $region13: #{pointnet_sa_msg_forward.13} parent=11 // pred_check
        %p233 = pneg %p75
      $region14: #{pointnet_sa_msg_forward.13} parent=11 // pred_check_branch
        %235 = sbr.rel (%p233) target = $region16
      $region15: #{pointnet_sa_msg_forward.13} parent=11 // pred_region
        _
      $region16: #{pointnet_sa_msg_forward.13} parent=11 // pred_fallthru
        _
      // Predicated region
      $region17: #{pointnet_sa_msg_forward.13} parent=11 // pred_check
        %p236 = pneg %p96
      $region18: #{pointnet_sa_msg_forward.13} parent=11 // pred_check_branch
        %238 = sbr.rel (%p236) target = $region20
      $region19: #{pointnet_sa_msg_forward.13} parent=11 // pred_region
        _
      $region20: #{pointnet_sa_msg_forward.13} parent=11 // pred_fallthru
        _
      // Predicated region
      $region21: #{pointnet_sa_msg_forward.13} parent=11 // pred_check
        %p239 = pneg %p117
      $region22: #{pointnet_sa_msg_forward.13} parent=11 // pred_check_branch
        %241 = sbr.rel (%p239) target = $region24
      $region23: #{pointnet_sa_msg_forward.13} parent=11 // pred_region
        _
      $region24: #{pointnet_sa_msg_forward.13} parent=11 // pred_fallthru
        _
      // Predicated region
      $region25: #{pointnet_sa_msg_forward.13} parent=11 // pred_check
        %p242 = pneg %p138
      $region26: #{pointnet_sa_msg_forward.13} parent=11 // pred_check_branch
        %244 = sbr.rel (%p242) target = $region28
      $region27: #{pointnet_sa_msg_forward.13} parent=11 // pred_region
        _
      $region28: #{pointnet_sa_msg_forward.13} parent=11 // pred_fallthru
        _
    $region12: #{pointnet_sa_msg_forward.13} parent=5 // pred_fallthru
      _
    %p245 = scmp.lt.s32.totalorder %s14, 2
    // Predicated region
    $region29: #{pointnet_sa_msg_forward.13} parent=5 // pred_check
      %p246 = pneg %p245
    $region30: #{pointnet_sa_msg_forward.13} parent=5 // pred_check_branch
      %248 = sbr.rel (%p246) target = $region32
    $region31: #{pointnet_sa_msg_forward.13} parent=5 // pred_region
      // Predicated region
      $region33: #{pointnet_sa_msg_forward.13} parent=31 // pred_check
        %p249 = pneg %p48
      $region34: #{pointnet_sa_msg_forward.13} parent=31 // pred_check_branch
        %251 = sbr.rel (%p249) target = $region36
      $region35: #{pointnet_sa_msg_forward.13} parent=31 // pred_region
        %s252 = sadd.s32 %s21, %s22
        %s253 = smul.u32 32, %s252
        %p254 = scmp.lt.s32.totalorder %s253, 63
        %s255 = scalar_select %p254, %s253, 63
        %s256 = smul.addr %s255, 4
        %s257 = scalar_lea.vmem %s0, %s256
        %s258 = sadd.s32 %s21, %s22
        %s259 = smul.u32 32, %s258
      $region36: #{pointnet_sa_msg_forward.13} parent=31 // pred_fallthru
        _
    $region32: #{pointnet_sa_msg_forward.13} parent=5 // pred_fallthru
      _
    %p260 = scmp.le.s32.totalorder 1, %s14
    %p261 = scmp.lt.s32.totalorder %s14, 3
    %p262 = pnand %p260, %p261
    %p263 = pneg %p262
    // Predicated region
    $region37: #{pointnet_sa_msg_forward.13} parent=5 // pred_check
      _
    $region38: #{pointnet_sa_msg_forward.13} parent=5 // pred_check_branch
      %265 = sbr.rel (%p262) target = $region40
    $region39: #{pointnet_sa_msg_forward.13} parent=5 // pred_region
      %s266 = ssub.s32 %s14, 1
      %s267 = sadd.s32 %s23, %s24
      %s268 = smul.u32 32, %s267
      %p269 = scmp.lt.s32.totalorder %s268, 63
      %s270 = scalar_select %p269, %s268, 63
      %s271 = smul.addr %s270, 4
      %s272 = scalar_lea.vmem %s0, %s271
      %p273 = pneg %p54
      %p274 = pneg %p51
      %p275 = pneg %p75
      %p276 = pneg %p72
      %p277 = pneg %p96
      %p278 = pneg %p93
      %p279 = pneg %p117
      %p280 = pneg %p114
      %p281 = pneg %p138
      %p282 = pneg %p135
      %p283 = pneg %p166
      %p284 = pneg %p163
      %s285 = sadd.s32 %s23, %s24
      %s286 = smul.u32 32, %s285
      %p287 = scmp.lt.s32.totalorder %s286, 63
      %s288 = scalar_select %p287, %s286, 63
      %s289 = smul.addr %s288, 4
      %s290 = scalar_lea.vmem %s5, %s289
      %p291 = pneg %p192
      %p292 = pneg %p189
      %p293 = scmp.lt.s32.totalorder %s23, 1
      %s294 = scalar_select %p293, %s23, 1
      %s295 = smul.addr %s294, 8
      %s296 = scalar_lea.vmem %s6, %s295
      %p297 = pneg %p218
      %p298 = pneg %p215
      %p299 = scmp.lt.s32.totalorder %s23, 1
      %s300 = scalar_select %p299, %s23, 1
      %s301 = smul.addr %s300, 8
      %s302 = scalar_lea.vmem %s7, %s301
      %s303 = sadd.s32 %s23, %s24
      %s304 = smul.u32 32, %s303
      %p305 = scmp.lt.s32.totalorder %s304, 63
      %s306 = scalar_select %p305, %s304, 63
      %s307 = smul.addr %s306, 4
      %s308 = scalar_lea.vmem %s0, %s307
      %s309 = sadd.s32 %s23, %s24
      %s310 = smul.u32 32, %s309
      %s311 = sadd.s32 %s23, %s24
      %s312 = smul.u32 32, %s311
      %p313 = scmp.lt.s32.totalorder %s312, 63
      %s314 = scalar_select %p313, %s312, 63
      %s315 = smul.addr %s314, 4
      %s316 = scalar_lea.vmem %s5, %s315
      %s317 = sadd.s32 %s23, %s24
      %s318 = smul.u32 32, %s317
      %p319 = scmp.lt.s32.totalorder %s23, 1
      %s320 = scalar_select %p319, %s23, 1
      %s321 = smul.addr %s320, 8
      %s322 = scalar_lea.vmem %s6, %s321
      %p323 = scmp.lt.s32.totalorder %s23, 1
      %s324 = scalar_select %p323, %s23, 1
      %s325 = smul.addr %s324, 8
      %s326 = scalar_lea.vmem %s7, %s325
      %v328 = vld [vmem:[%s308] sm:$0xf]
      %v329 = vld [vmem:[%s308 + $0x4] sm:$0xf]
      %v330 = vld [vmem:[%s308 + $0x8] sm:$0xf]
      %v331 = vld [vmem:[%s308 + $0xc] sm:$0xf]
      %v332 = vld [vmem:[%s308 + $0x10] sm:$0xf]
      %v333 = vld [vmem:[%s308 + $0x14] sm:$0xf]
      %v334 = vld [vmem:[%s308 + $0x18] sm:$0xf]
      %v335 = vld [vmem:[%s308 + $0x1c] sm:$0xf]
      %v336 = vld [vmem:[%s308 + $0x20] sm:$0xf]
      %v337 = vld [vmem:[%s308 + $0x24] sm:$0xf]
      %v338 = vld [vmem:[%s308 + $0x28] sm:$0xf]
      %v339 = vld [vmem:[%s308 + $0x2c] sm:$0xf]
      %v340 = vld [vmem:[%s308 + $0x30] sm:$0xf]
      %v341 = vld [vmem:[%s308 + $0x34] sm:$0xf]
      %v342 = vld [vmem:[%s308 + $0x38] sm:$0xf]
      %v343 = vld [vmem:[%s308 + $0x3c] sm:$0xf]
      %v344 = vld [vmem:[%s308 + $0x40] sm:$0xf]
      %v345 = vld [vmem:[%s308 + $0x44] sm:$0xf]
      %v346 = vld [vmem:[%s308 + $0x48] sm:$0xf]
      %v347 = vld [vmem:[%s308 + $0x4c] sm:$0xf]
      %v348 = vld [vmem:[%s308 + $0x50] sm:$0xf]
      %v349 = vld [vmem:[%s308 + $0x54] sm:$0xf]
      %v350 = vld [vmem:[%s308 + $0x58] sm:$0xf]
      %v351 = vld [vmem:[%s308 + $0x5c] sm:$0xf]
      %v352 = vld [vmem:[%s308 + $0x60] sm:$0xf]
      %v353 = vld [vmem:[%s308 + $0x64] sm:$0xf]
      %v354 = vld [vmem:[%s308 + $0x68] sm:$0xf]
      %v355 = vld [vmem:[%s308 + $0x6c] sm:$0xf]
      %v356 = vld [vmem:[%s308 + $0x70] sm:$0xf]
      %v357 = vld [vmem:[%s308 + $0x74] sm:$0xf]
      %v358 = vld [vmem:[%s308 + $0x78] sm:$0xf]
      %v359 = vld [vmem:[%s308 + $0x7c] sm:$0xf]
      %v360 = vunpack.c.l.bf16 %v328
      %v361 = vunpack.c.l.bf16 %v329
      %v362 = vunpack.c.l.bf16 %v330
      %v363 = vunpack.c.l.bf16 %v331
      %v364 = vunpack.c.l.bf16 %v332
      %v365 = vunpack.c.l.bf16 %v333
      %v366 = vunpack.c.l.bf16 %v334
      %v367 = vunpack.c.l.bf16 %v335
      %v368 = vunpack.c.l.bf16 %v336
      %v369 = vunpack.c.l.bf16 %v337
      %v370 = vunpack.c.l.bf16 %v338
      %v371 = vunpack.c.l.bf16 %v339
      %v372 = vunpack.c.l.bf16 %v340
      %v373 = vunpack.c.l.bf16 %v341
      %v374 = vunpack.c.l.bf16 %v342
      %v375 = vunpack.c.l.bf16 %v343
      %v376 = vunpack.c.l.bf16 %v344
      %v377 = vunpack.c.l.bf16 %v345
      %v378 = vunpack.c.l.bf16 %v346
      %v379 = vunpack.c.l.bf16 %v347
      %v380 = vunpack.c.l.bf16 %v348
      %v381 = vunpack.c.l.bf16 %v349
      %v382 = vunpack.c.l.bf16 %v350
      %v383 = vunpack.c.l.bf16 %v351
      %v384 = vunpack.c.l.bf16 %v352
      %v385 = vunpack.c.l.bf16 %v353
      %v386 = vunpack.c.l.bf16 %v354
      %v387 = vunpack.c.l.bf16 %v355
      %v388 = vunpack.c.l.bf16 %v356
      %v389 = vunpack.c.l.bf16 %v357
      %v390 = vunpack.c.l.bf16 %v358
      %v391 = vunpack.c.l.bf16 %v359
      %v392 = vld [vmem:[%s1] sm:$0x1]
      %v394 = vlaneseq
      %v395 = vshrl.u32 %v394, 7
      %v396 = vsub.s32 0, %v395
      %v397 = vrot.slane %v392, %v396
      %v399 = vmul.f32 %v360, %v397
      %v400 = vmul.f32 %v361, %v397
      %v401 = vmul.f32 %v362, %v397
      %v402 = vmul.f32 %v363, %v397
      %v403 = vmul.f32 %v364, %v397
      %v404 = vmul.f32 %v365, %v397
      %v405 = vmul.f32 %v366, %v397
      %v406 = vmul.f32 %v367, %v397
      %v407 = vmul.f32 %v368, %v397
      %v408 = vmul.f32 %v369, %v397
      %v409 = vmul.f32 %v370, %v397
      %v410 = vmul.f32 %v371, %v397
      %v411 = vmul.f32 %v372, %v397
      %v412 = vmul.f32 %v373, %v397
      %v413 = vmul.f32 %v374, %v397
      %v414 = vmul.f32 %v375, %v397
      %v415 = vmul.f32 %v376, %v397
      %v416 = vmul.f32 %v377, %v397
      %v417 = vmul.f32 %v378, %v397
      %v418 = vmul.f32 %v379, %v397
      %v419 = vmul.f32 %v380, %v397
      %v420 = vmul.f32 %v381, %v397
      %v421 = vmul.f32 %v382, %v397
      %v422 = vmul.f32 %v383, %v397
      %v423 = vmul.f32 %v384, %v397
      %v424 = vmul.f32 %v385, %v397
      %v425 = vmul.f32 %v386, %v397
      %v426 = vmul.f32 %v387, %v397
      %v427 = vmul.f32 %v388, %v397
      %v428 = vmul.f32 %v389, %v397
      %v429 = vmul.f32 %v390, %v397
      %v430 = vmul.f32 %v391, %v397
      %v431 = vld [vmem:[%s2] sm:$0x1]
      %v433 = vlaneseq
      %v434 = vshrl.u32 %v433, 7
      %v435 = vsub.s32 0, %v434
      %v436 = vrot.slane %v431, %v435
      %v438 = vadd.f32 %v399, %v436
      %v439 = vadd.f32 %v400, %v436
      %v440 = vadd.f32 %v401, %v436
      %v441 = vadd.f32 %v402, %v436
      %v442 = vadd.f32 %v403, %v436
      %v443 = vadd.f32 %v404, %v436
      %v444 = vadd.f32 %v405, %v436
      %v445 = vadd.f32 %v406, %v436
      %v446 = vadd.f32 %v407, %v436
      %v447 = vadd.f32 %v408, %v436
      %v448 = vadd.f32 %v409, %v436
      %v449 = vadd.f32 %v410, %v436
      %v450 = vadd.f32 %v411, %v436
      %v451 = vadd.f32 %v412, %v436
      %v452 = vadd.f32 %v413, %v436
      %v453 = vadd.f32 %v414, %v436
      %v454 = vadd.f32 %v415, %v436
      %v455 = vadd.f32 %v416, %v436
      %v456 = vadd.f32 %v417, %v436
      %v457 = vadd.f32 %v418, %v436
      %v458 = vadd.f32 %v419, %v436
      %v459 = vadd.f32 %v420, %v436
      %v460 = vadd.f32 %v421, %v436
      %v461 = vadd.f32 %v422, %v436
      %v462 = vadd.f32 %v423, %v436
      %v463 = vadd.f32 %v424, %v436
      %v464 = vadd.f32 %v425, %v436
      %v465 = vadd.f32 %v426, %v436
      %v466 = vadd.f32 %v427, %v436
      %v467 = vadd.f32 %v428, %v436
      %v468 = vadd.f32 %v429, %v436
      %v469 = vadd.f32 %v430, %v436
      %v470 = vmax.f32 %v438, 0.0
      %v471 = vmax.f32 %v439, 0.0
      %v472 = vmax.f32 %v440, 0.0
      %v473 = vmax.f32 %v441, 0.0
      %v474 = vmax.f32 %v442, 0.0
      %v475 = vmax.f32 %v443, 0.0
      %v476 = vmax.f32 %v444, 0.0
      %v477 = vmax.f32 %v445, 0.0
      %v478 = vmax.f32 %v446, 0.0
      %v479 = vmax.f32 %v447, 0.0
      %v480 = vmax.f32 %v448, 0.0
      %v481 = vmax.f32 %v449, 0.0
      %v482 = vmax.f32 %v450, 0.0
      %v483 = vmax.f32 %v451, 0.0
      %v484 = vmax.f32 %v452, 0.0
      %v485 = vmax.f32 %v453, 0.0
      %v486 = vmax.f32 %v454, 0.0
      %v487 = vmax.f32 %v455, 0.0
      %v488 = vmax.f32 %v456, 0.0
      %v489 = vmax.f32 %v457, 0.0
      %v490 = vmax.f32 %v458, 0.0
      %v491 = vmax.f32 %v459, 0.0
      %v492 = vmax.f32 %v460, 0.0
      %v493 = vmax.f32 %v461, 0.0
      %v494 = vmax.f32 %v462, 0.0
      %v495 = vmax.f32 %v463, 0.0
      %v496 = vmax.f32 %v464, 0.0
      %v497 = vmax.f32 %v465, 0.0
      %v498 = vmax.f32 %v466, 0.0
      %v499 = vmax.f32 %v467, 0.0
      %v500 = vmax.f32 %v468, 0.0
      %v501 = vmax.f32 %v469, 0.0
      %v502 = vpack.c.bf16 %v471, %v470
      %v503 = vpack.c.bf16 %v473, %v472
      %v504 = vpack.c.bf16 %v475, %v474
      %v505 = vpack.c.bf16 %v477, %v476
      %v506 = vpack.c.bf16 %v479, %v478
      %v507 = vpack.c.bf16 %v481, %v480
      %v508 = vpack.c.bf16 %v483, %v482
      %v509 = vpack.c.bf16 %v485, %v484
      %v510 = vpack.c.bf16 %v487, %v486
      %v511 = vpack.c.bf16 %v489, %v488
      %v512 = vpack.c.bf16 %v491, %v490
      %v513 = vpack.c.bf16 %v493, %v492
      %v514 = vpack.c.bf16 %v495, %v494
      %v515 = vpack.c.bf16 %v497, %v496
      %v516 = vpack.c.bf16 %v499, %v498
      %v517 = vpack.c.bf16 %v501, %v500
      %v518 = vld [vmem:[%s3] sm:$0xf]
      %v519 = vld [vmem:[%s3 + $0x4] sm:$0xf]
      %v520 = vld [vmem:[%s3 + $0x8] sm:$0xf]
      %v521 = vld [vmem:[%s3 + $0xc] sm:$0xf]
      %v522 = vld [vmem:[%s3 + $0x10] sm:$0xf]
      %v523 = vld [vmem:[%s3 + $0x14] sm:$0xf]
      %v524 = vld [vmem:[%s3 + $0x18] sm:$0xf]
      %v525 = vld [vmem:[%s3 + $0x1c] sm:$0xf]
      %v526 = vld [vmem:[%s3 + $0x20] sm:$0xf]
      %v527 = vld [vmem:[%s3 + $0x24] sm:$0xf]
      %v528 = vld [vmem:[%s3 + $0x28] sm:$0xf]
      %v529 = vld [vmem:[%s3 + $0x2c] sm:$0xf]
      %v530 = vld [vmem:[%s3 + $0x30] sm:$0xf]
      %v531 = vld [vmem:[%s3 + $0x34] sm:$0xf]
      %v532 = vld [vmem:[%s3 + $0x38] sm:$0xf]
      %v533 = vld [vmem:[%s3 + $0x3c] sm:$0xf]
      %v534 = vld [vmem:[%s4] sm:$0x1]
      %v536 = vlaneseq
      %v537 = vshrl.u32 %v536, 7
      %v538 = vsub.s32 0, %v537
      %v539 = vrot.slane %v534, %v538
      %v557 = vunpack.c.l.b16 %v518
      %v558 = vunpack.c.l.b16 %v519
      %v559 = vunpack.c.l.b16 %v520
      %v560 = vunpack.c.l.b16 %v521
      %v561 = vunpack.c.l.b16 %v522
      %v562 = vunpack.c.l.b16 %v523
      %v563 = vunpack.c.l.b16 %v524
      %v564 = vunpack.c.l.b16 %v525
      %v565 = vunpack.c.l.b16 %v526
      %v566 = vunpack.c.l.b16 %v527
      %v567 = vunpack.c.l.b16 %v528
      %v568 = vunpack.c.l.b16 %v529
      %v569 = vunpack.c.l.b16 %v530
      %v570 = vunpack.c.l.b16 %v531
      %v571 = vunpack.c.l.b16 %v532
      %v572 = vunpack.c.l.b16 %v533
      %v573 = vpack.c.b16 %v558, %v557
      %v574 = vpack.c.b16 %v560, %v559
      %v575 = vpack.c.b16 %v562, %v561
      %v576 = vpack.c.b16 %v564, %v563
      %v577 = vpack.c.b16 %v566, %v565
      %v578 = vpack.c.b16 %v568, %v567
      %v579 = vpack.c.b16 %v570, %v569
      %v580 = vpack.c.b16 %v572, %v571
      %589 = vmatprep.subr.bf16.mxu0 0
      %590 = vmatpush1.bf16.msra.mxu0 %v573
      %591 = vmatprep.subr.bf16.mxu0 0
      %592 = vmatpush1.bf16.msra.mxu0 %v574
      %593 = vmatprep.subr.bf16.mxu0 0
      %594 = vmatpush1.bf16.msra.mxu0 %v575
      %595 = vmatprep.subr.bf16.mxu0 0
      %596 = vmatpush1.bf16.msra.mxu0 %v576
      %597 = vmatprep.subr.bf16.mxu0 0
      %598 = vmatpush1.bf16.msra.mxu0 %v577
      %599 = vmatprep.subr.bf16.mxu0 0
      %600 = vmatpush1.bf16.msra.mxu0 %v578
      %601 = vmatprep.subr.bf16.mxu0 0
      %602 = vmatpush1.bf16.msra.mxu0 %v579
      %603 = vmatprep.subr.bf16.mxu0 0
      %604 = vmatpush1.bf16.msra.mxu0 %v580
      %605 = vmatprep.subr.bf16.mxu0 0
      %606 = vmatpush1.bf16.msra.mxu0 0
      %607 = vmatprep.subr.bf16.mxu0 0
      %608 = vmatpush1.bf16.msra.mxu0 0
      %609 = vmatprep.subr.bf16.mxu0 0
      %610 = vmatpush1.bf16.msra.mxu0 0
      %611 = vmatprep.subr.bf16.mxu0 0
      %612 = vmatpush1.bf16.msra.mxu0 0
      %613 = vmatprep.subr.bf16.mxu0 0
      %614 = vmatpush1.bf16.msra.mxu0 0
      %615 = vmatprep.subr.bf16.mxu0 0
      %616 = vmatpush1.bf16.msra.mxu0 0
      %617 = vmatprep.subr.bf16.mxu0 0
      %618 = vmatpush1.bf16.msra.mxu0 0
      %619 = vmatprep.subr.bf16.mxu0 0
      %620 = vmatpush1.bf16.msra.mxu0 0
      %621 = vmatprep.mubr.bf16.mxu0 0
      %622 = vmatmul.mubr.bf16.gmra.mrb[0].mxu0 %v502
      %v623 = vpop.f32.mrb[0].mxu0
      %v624 = vadd.f32 %v539, %v623
      %v625 = vpop.f32.mrb[0].mxu0
      %v626 = vpop.f32.mrb[0].mxu0
      %v627 = vadd.f32 %v539, %v626
      %v628 = vpop.f32.mrb[0].mxu0
      %629 = vmatprep.mubr.bf16.mxu0 0
      %630 = vmatmul.mubr.bf16.gmra.mrb[0].mxu0 %v503
      %v631 = vpop.f32.mrb[0].mxu0
      %v632 = vadd.f32 %v539, %v631
      %v633 = vpop.f32.mrb[0].mxu0
      %v634 = vpop.f32.mrb[0].mxu0
      %v635 = vadd.f32 %v539, %v634
      %v636 = vpop.f32.mrb[0].mxu0
      %637 = vmatprep.mubr.bf16.mxu0 0
      %638 = vmatmul.mubr.bf16.gmra.mrb[0].mxu0 %v504
      %v639 = vpop.f32.mrb[0].mxu0
      %v640 = vadd.f32 %v539, %v639
      %v641 = vpop.f32.mrb[0].mxu0
      %v642 = vpop.f32.mrb[0].mxu0
      %v643 = vadd.f32 %v539, %v642
      %v644 = vpop.f32.mrb[0].mxu0
      %645 = vmatprep.mubr.bf16.mxu0 0
      %646 = vmatmul.mubr.bf16.gmra.mrb[0].mxu0 %v505
      %v647 = vpop.f32.mrb[0].mxu0
      %v648 = vadd.f32 %v539, %v647
      %v649 = vpop.f32.mrb[0].mxu0
      %v650 = vpop.f32.mrb[0].mxu0
      %v651 = vadd.f32 %v539, %v650
      %v652 = vpop.f32.mrb[0].mxu0
      %653 = vmatprep.mubr.bf16.mxu0 0
      %654 = vmatmul.mubr.bf16.gmra.mrb[0].mxu0 %v506
      %v655 = vpop.f32.mrb[0].mxu0
      %v656 = vadd.f32 %v539, %v655
      %v657 = vpop.f32.mrb[0].mxu0
      %v658 = vpop.f32.mrb[0].mxu0
      %v659 = vadd.f32 %v539, %v658
      %v660 = vpop.f32.mrb[0].mxu0
      %661 = vmatprep.mubr.bf16.mxu0 0
      %662 = vmatmul.mubr.bf16.gmra.mrb[0].mxu0 %v507
      %v663 = vpop.f32.mrb[0].mxu0
      %v664 = vadd.f32 %v539, %v663
      %v665 = vpop.f32.mrb[0].mxu0
      %v666 = vpop.f32.mrb[0].mxu0
      %v667 = vadd.f32 %v539, %v666
      %v668 = vpop.f32.mrb[0].mxu0
      %669 = vmatprep.mubr.bf16.mxu0 0
      %670 = vmatmul.mubr.bf16.gmra.mrb[0].mxu0 %v508
      %v671 = vpop.f32.mrb[0].mxu0
      %v672 = vadd.f32 %v539, %v671
      %v673 = vpop.f32.mrb[0].mxu0
      %v674 = vpop.f32.mrb[0].mxu0
      %v675 = vadd.f32 %v539, %v674
      %v676 = vpop.f32.mrb[0].mxu0
      %677 = vmatprep.mubr.bf16.mxu0 0
      %678 = vmatmul.mubr.bf16.gmra.mrb[0].mxu0 %v509
      %v679 = vpop.f32.mrb[0].mxu0
      %v680 = vadd.f32 %v539, %v679
      %v681 = vpop.f32.mrb[0].mxu0
      %v682 = vpop.f32.mrb[0].mxu0
      %v683 = vadd.f32 %v539, %v682
      %v684 = vpop.f32.mrb[0].mxu0
      %685 = vmatprep.mubr.bf16.mxu0 0
      %686 = vmatmul.mubr.bf16.gmra.mrb[0].mxu0 %v510
      %v687 = vpop.f32.mrb[0].mxu0
      %v688 = vadd.f32 %v539, %v687
      %v689 = vpop.f32.mrb[0].mxu0
      %v690 = vpop.f32.mrb[0].mxu0
      %v691 = vadd.f32 %v539, %v690
      %v692 = vpop.f32.mrb[0].mxu0
      %693 = vmatprep.mubr.bf16.mxu0 0
      %694 = vmatmul.mubr.bf16.gmra.mrb[0].mxu0 %v511
      %v695 = vpop.f32.mrb[0].mxu0
      %v696 = vadd.f32 %v539, %v695
      %v697 = vpop.f32.mrb[0].mxu0
      %v698 = vpop.f32.mrb[0].mxu0
      %v699 = vadd.f32 %v539, %v698
      %v700 = vpop.f32.mrb[0].mxu0
      %701 = vmatprep.mubr.bf16.mxu0 0
      %702 = vmatmul.mubr.bf16.gmra.mrb[0].mxu0 %v512
      %v703 = vpop.f32.mrb[0].mxu0
      %v704 = vadd.f32 %v539, %v703
      %v705 = vpop.f32.mrb[0].mxu0
      %v706 = vpop.f32.mrb[0].mxu0
      %v707 = vadd.f32 %v539, %v706
      %v708 = vpop.f32.mrb[0].mxu0
      %709 = vmatprep.mubr.bf16.mxu0 0
      %710 = vmatmul.mubr.bf16.gmra.mrb[0].mxu0 %v513
      %v711 = vpop.f32.mrb[0].mxu0
      %v712 = vadd.f32 %v539, %v711
      %v713 = vpop.f32.mrb[0].mxu0
      %v714 = vpop.f32.mrb[0].mxu0
      %v715 = vadd.f32 %v539, %v714
      %v716 = vpop.f32.mrb[0].mxu0
      %717 = vmatprep.mubr.bf16.mxu0 0
      %718 = vmatmul.mubr.bf16.gmra.mrb[0].mxu0 %v514
      %v719 = vpop.f32.mrb[0].mxu0
      %v720 = vadd.f32 %v539, %v719
      %v721 = vpop.f32.mrb[0].mxu0
      %v722 = vpop.f32.mrb[0].mxu0
      %v723 = vadd.f32 %v539, %v722
      %v724 = vpop.f32.mrb[0].mxu0
      %725 = vmatprep.mubr.bf16.mxu0 0
      %726 = vmatmul.mubr.bf16.gmra.mrb[0].mxu0 %v515
      %v727 = vpop.f32.mrb[0].mxu0
      %v728 = vadd.f32 %v539, %v727
      %v729 = vpop.f32.mrb[0].mxu0
      %v730 = vpop.f32.mrb[0].mxu0
      %v731 = vadd.f32 %v539, %v730
      %v732 = vpop.f32.mrb[0].mxu0
      %733 = vmatprep.mubr.bf16.mxu0 0
      %734 = vmatmul.mubr.bf16.gmra.mrb[0].mxu0 %v516
      %v735 = vpop.f32.mrb[0].mxu0
      %v736 = vadd.f32 %v539, %v735
      %v737 = vpop.f32.mrb[0].mxu0
      %v738 = vpop.f32.mrb[0].mxu0
      %v739 = vadd.f32 %v539, %v738
      %v740 = vpop.f32.mrb[0].mxu0
      %741 = vmatprep.mubr.bf16.mxu0 0
      %742 = vmatmul.mubr.bf16.gmra.mrb[0].mxu0 %v517
      %v743 = vpop.f32.mrb[0].mxu0
      %v744 = vadd.f32 %v539, %v743
      %v745 = vpop.f32.mrb[0].mxu0
      %v746 = vpop.f32.mrb[0].mxu0
      %v747 = vadd.f32 %v539, %v746
      %v748 = vpop.f32.mrb[0].mxu0
      %749 = vdwg.mxu0
      %v750 = vpack.c.bf16 %v627, %v624
      %v751 = vpack.c.bf16 %v635, %v632
      %v752 = vpack.c.bf16 %v643, %v640
      %v753 = vpack.c.bf16 %v651, %v648
      %v754 = vpack.c.bf16 %v659, %v656
      %v755 = vpack.c.bf16 %v667, %v664
      %v756 = vpack.c.bf16 %v675, %v672
      %v757 = vpack.c.bf16 %v683, %v680
      %v758 = vpack.c.bf16 %v691, %v688
      %v759 = vpack.c.bf16 %v699, %v696
      %v760 = vpack.c.bf16 %v707, %v704
      %v761 = vpack.c.bf16 %v715, %v712
      %v762 = vpack.c.bf16 %v723, %v720
      %v763 = vpack.c.bf16 %v731, %v728
      %v764 = vpack.c.bf16 %v739, %v736
      %v765 = vpack.c.bf16 %v747, %v744
      %v782 = vunpack.c.l.b16 %v750
      %v783 = vunpack.c.h.b16 %v750
      %v784 = vunpack.c.l.b16 %v751
      %v785 = vunpack.c.h.b16 %v751
      %v786 = vunpack.c.l.b16 %v752
      %v787 = vunpack.c.h.b16 %v752
      %v788 = vunpack.c.l.b16 %v753
      %v789 = vunpack.c.h.b16 %v753
      %v790 = vunpack.c.l.b16 %v754
      %v791 = vunpack.c.h.b16 %v754
      %v792 = vunpack.c.l.b16 %v755
      %v793 = vunpack.c.h.b16 %v755
      %v794 = vunpack.c.l.b16 %v756
      %v795 = vunpack.c.h.b16 %v756
      %v796 = vunpack.c.l.b16 %v757
      %v797 = vunpack.c.h.b16 %v757
      %v798 = vunpack.c.l.b16 %v758
      %v799 = vunpack.c.h.b16 %v758
      %v800 = vunpack.c.l.b16 %v759
      %v801 = vunpack.c.h.b16 %v759
      %v802 = vunpack.c.l.b16 %v760
      %v803 = vunpack.c.h.b16 %v760
      %v804 = vunpack.c.l.b16 %v761
      %v805 = vunpack.c.h.b16 %v761
      %v806 = vunpack.c.l.b16 %v762
      %v807 = vunpack.c.h.b16 %v762
      %v808 = vunpack.c.l.b16 %v763
      %v809 = vunpack.c.h.b16 %v763
      %v810 = vunpack.c.l.b16 %v764
      %v811 = vunpack.c.h.b16 %v764
      %v812 = vunpack.c.l.b16 %v765
      %v813 = vunpack.c.h.b16 %v765
      %v814 = vpack.c.b16 %v782, %v782
      %v815 = vpack.c.b16 %v783, %v783
      %v816 = vpack.c.b16 %v784, %v784
      %v817 = vpack.c.b16 %v785, %v785
      %v818 = vpack.c.b16 %v786, %v786
      %v819 = vpack.c.b16 %v787, %v787
      %v820 = vpack.c.b16 %v788, %v788
      %v821 = vpack.c.b16 %v789, %v789
      %v822 = vpack.c.b16 %v790, %v790
      %v823 = vpack.c.b16 %v791, %v791
      %v824 = vpack.c.b16 %v792, %v792
      %v825 = vpack.c.b16 %v793, %v793
      %v826 = vpack.c.b16 %v794, %v794
      %v827 = vpack.c.b16 %v795, %v795
      %v828 = vpack.c.b16 %v796, %v796
      %v829 = vpack.c.b16 %v797, %v797
      %v830 = vpack.c.b16 %v798, %v798
      %v831 = vpack.c.b16 %v799, %v799
      %v832 = vpack.c.b16 %v800, %v800
      %v833 = vpack.c.b16 %v801, %v801
      %v834 = vpack.c.b16 %v802, %v802
      %v835 = vpack.c.b16 %v803, %v803
      %v836 = vpack.c.b16 %v804, %v804
      %v837 = vpack.c.b16 %v805, %v805
      %v838 = vpack.c.b16 %v806, %v806
      %v839 = vpack.c.b16 %v807, %v807
      %v840 = vpack.c.b16 %v808, %v808
      %v841 = vpack.c.b16 %v809, %v809
      %v842 = vpack.c.b16 %v810, %v810
      %v843 = vpack.c.b16 %v811, %v811
      %v844 = vpack.c.b16 %v812, %v812
      %v845 = vpack.c.b16 %v813, %v813
      %878 = vst [vmem:[%s316] sm:$0xf] %v814
      %879 = vst [vmem:[%s316 + $0x4] sm:$0xf] %v815
      %880 = vst [vmem:[%s316 + $0x8] sm:$0xf] %v816
      %881 = vst [vmem:[%s316 + $0xc] sm:$0xf] %v817
      %882 = vst [vmem:[%s316 + $0x10] sm:$0xf] %v818
      %883 = vst [vmem:[%s316 + $0x14] sm:$0xf] %v819
      %884 = vst [vmem:[%s316 + $0x18] sm:$0xf] %v820
      %885 = vst [vmem:[%s316 + $0x1c] sm:$0xf] %v821
      %886 = vst [vmem:[%s316 + $0x20] sm:$0xf] %v822
      %887 = vst [vmem:[%s316 + $0x24] sm:$0xf] %v823
      %888 = vst [vmem:[%s316 + $0x28] sm:$0xf] %v824
      %889 = vst [vmem:[%s316 + $0x2c] sm:$0xf] %v825
      %890 = vst [vmem:[%s316 + $0x30] sm:$0xf] %v826
      %891 = vst [vmem:[%s316 + $0x34] sm:$0xf] %v827
      %892 = vst [vmem:[%s316 + $0x38] sm:$0xf] %v828
      %893 = vst [vmem:[%s316 + $0x3c] sm:$0xf] %v829
      %894 = vst [vmem:[%s316 + $0x40] sm:$0xf] %v830
      %895 = vst [vmem:[%s316 + $0x44] sm:$0xf] %v831
      %896 = vst [vmem:[%s316 + $0x48] sm:$0xf] %v832
      %897 = vst [vmem:[%s316 + $0x4c] sm:$0xf] %v833
      %898 = vst [vmem:[%s316 + $0x50] sm:$0xf] %v834
      %899 = vst [vmem:[%s316 + $0x54] sm:$0xf] %v835
      %900 = vst [vmem:[%s316 + $0x58] sm:$0xf] %v836
      %901 = vst [vmem:[%s316 + $0x5c] sm:$0xf] %v837
      %902 = vst [vmem:[%s316 + $0x60] sm:$0xf] %v838
      %903 = vst [vmem:[%s316 + $0x64] sm:$0xf] %v839
      %904 = vst [vmem:[%s316 + $0x68] sm:$0xf] %v840
      %905 = vst [vmem:[%s316 + $0x6c] sm:$0xf] %v841
      %906 = vst [vmem:[%s316 + $0x70] sm:$0xf] %v842
      %907 = vst [vmem:[%s316 + $0x74] sm:$0xf] %v843
      %908 = vst [vmem:[%s316 + $0x78] sm:$0xf] %v844
      %909 = vst [vmem:[%s316 + $0x7c] sm:$0xf] %v845
      %p910 = scmp.eq.s32.totalorder %s24, 0
      // Predicated region
      $region41: #{pointnet_sa_msg_forward.13} parent=39 // pred_check
        %p911 = pneg %p910
      $region42: #{pointnet_sa_msg_forward.13} parent=39 // pred_check_branch
        %913 = sbr.rel (%p911) target = $region44
      $region43: #{pointnet_sa_msg_forward.13} parent=39 // pred_region
        %914 = vst [vmem:[%s322] sm:$0xff] 0.0
        %915 = vst [vmem:[%s326] sm:$0xff] 0.0
      $region44: #{pointnet_sa_msg_forward.13} parent=39 // pred_fallthru
        _
      %v916 = vld [vmem:[%s322] sm:$0xff]
      %v917 = vadd.f32 %v624, %v627
      %v918 = vadd.f32 %v917, %v632
      %v919 = vadd.f32 %v918, %v635
      %v920 = vadd.f32 %v919, %v640
      %v921 = vadd.f32 %v920, %v643
      %v922 = vadd.f32 %v921, %v648
      %v923 = vadd.f32 %v922, %v651
      %v924 = vadd.f32 %v923, %v656
      %v925 = vadd.f32 %v924, %v659
      %v926 = vadd.f32 %v925, %v664
      %v927 = vadd.f32 %v926, %v667
      %v928 = vadd.f32 %v927, %v672
      %v929 = vadd.f32 %v928, %v675
      %v930 = vadd.f32 %v929, %v680
      %v931 = vadd.f32 %v930, %v683
      %v932 = vadd.f32 %v931, %v688
      %v933 = vadd.f32 %v932, %v691
      %v934 = vadd.f32 %v933, %v696
      %v935 = vadd.f32 %v934, %v699
      %v936 = vadd.f32 %v935, %v704
      %v937 = vadd.f32 %v936, %v707
      %v938 = vadd.f32 %v937, %v712
      %v939 = vadd.f32 %v938, %v715
      %v940 = vadd.f32 %v939, %v720
      %v941 = vadd.f32 %v940, %v723
      %v942 = vadd.f32 %v941, %v728
      %v943 = vadd.f32 %v942, %v731
      %v944 = vadd.f32 %v943, %v736
      %v945 = vadd.f32 %v944, %v739
      %v946 = vadd.f32 %v945, %v744
      %v947 = vadd.f32 %v946, %v747
      %v948 = vadd.f32 %v916, %v947
      %949 = vst [vmem:[%s322] sm:$0xff] %v948
      %v950 = vld [vmem:[%s326] sm:$0xff]
      %v951 = vmul.f32 %v624, %v624
      %v952 = vmul.f32 %v627, %v627
      %v953 = vmul.f32 %v632, %v632
      %v954 = vmul.f32 %v635, %v635
      %v955 = vmul.f32 %v640, %v640
      %v956 = vmul.f32 %v643, %v643
      %v957 = vmul.f32 %v648, %v648
      %v958 = vmul.f32 %v651, %v651
      %v959 = vmul.f32 %v656, %v656
      %v960 = vmul.f32 %v659, %v659
      %v961 = vmul.f32 %v664, %v664
      %v962 = vmul.f32 %v667, %v667
      %v963 = vmul.f32 %v672, %v672
      %v964 = vmul.f32 %v675, %v675
      %v965 = vmul.f32 %v680, %v680
      %v966 = vmul.f32 %v683, %v683
      %v967 = vmul.f32 %v688, %v688
      %v968 = vmul.f32 %v691, %v691
      %v969 = vmul.f32 %v696, %v696
      %v970 = vmul.f32 %v699, %v699
      %v971 = vmul.f32 %v704, %v704
      %v972 = vmul.f32 %v707, %v707
      %v973 = vmul.f32 %v712, %v712
      %v974 = vmul.f32 %v715, %v715
      %v975 = vmul.f32 %v720, %v720
      %v976 = vmul.f32 %v723, %v723
      %v977 = vmul.f32 %v728, %v728
      %v978 = vmul.f32 %v731, %v731
      %v979 = vmul.f32 %v736, %v736
      %v980 = vmul.f32 %v739, %v739
      %v981 = vmul.f32 %v744, %v744
      %v982 = vmul.f32 %v747, %v747
      %v983 = vadd.f32 %v951, %v952
      %v984 = vadd.f32 %v983, %v953
      %v985 = vadd.f32 %v984, %v954
      %v986 = vadd.f32 %v985, %v955
      %v987 = vadd.f32 %v986, %v956
      %v988 = vadd.f32 %v987, %v957
      %v989 = vadd.f32 %v988, %v958
      %v990 = vadd.f32 %v989, %v959
      %v991 = vadd.f32 %v990, %v960
      %v992 = vadd.f32 %v991, %v961
      %v993 = vadd.f32 %v992, %v962
      %v994 = vadd.f32 %v993, %v963
      %v995 = vadd.f32 %v994, %v964
      %v996 = vadd.f32 %v995, %v965
      %v997 = vadd.f32 %v996, %v966
      %v998 = vadd.f32 %v997, %v967
      %v999 = vadd.f32 %v998, %v968
      %v1000 = vadd.f32 %v999, %v969
      %v1001 = vadd.f32 %v1000, %v970
      %v1002 = vadd.f32 %v1001, %v971
      %v1003 = vadd.f32 %v1002, %v972
      %v1004 = vadd.f32 %v1003, %v973
      %v1005 = vadd.f32 %v1004, %v974
      %v1006 = vadd.f32 %v1005, %v975
      %v1007 = vadd.f32 %v1006, %v976
      %v1008 = vadd.f32 %v1007, %v977
      %v1009 = vadd.f32 %v1008, %v978
      %v1010 = vadd.f32 %v1009, %v979
      %v1011 = vadd.f32 %v1010, %v980
      %v1012 = vadd.f32 %v1011, %v981
      %v1013 = vadd.f32 %v1012, %v982
      %v1014 = vadd.f32 %v950, %v1013
      %1015 = vst [vmem:[%s326] sm:$0xff] %v1014
      %s1016 = sadd.s32 %s23, %s24
      %s1017 = smul.u32 32, %s1016
      %p1018 = scmp.lt.s32.totalorder %s1017, 63
      %s1019 = scalar_select %p1018, %s1017, 63
      %s1020 = smul.addr %s1019, 4
      %s1021 = scalar_lea.vmem %s5, %s1020
      %p1022 = scmp.lt.s32.totalorder %s23, 1
      %s1023 = scalar_select %p1022, %s23, 1
      %s1024 = smul.addr %s1023, 8
      %s1025 = scalar_lea.vmem %s6, %s1024
      %p1026 = scmp.lt.s32.totalorder %s23, 1
      %s1027 = scalar_select %p1026, %s23, 1
      %s1028 = smul.addr %s1027, 8
      %s1029 = scalar_lea.vmem %s7, %s1028
      // Predicated region
      $region45: #{pointnet_sa_msg_forward.13} parent=39 // pred_check
        %p1030 = pneg %p163
      $region46: #{pointnet_sa_msg_forward.13} parent=39 // pred_check_branch
        %1032 = sbr.rel (%p1030) target = $region48
      $region47: #{pointnet_sa_msg_forward.13} parent=39 // pred_region
        %s1033 = sadd.s32 %s23, %s24
        %s1034 = smul.u32 32, %s1033
      $region48: #{pointnet_sa_msg_forward.13} parent=39 // pred_fallthru
        _
      // Predicated region
      $region49: #{pointnet_sa_msg_forward.13} parent=39 // pred_check
        %p1035 = pneg %p189
      $region50: #{pointnet_sa_msg_forward.13} parent=39 // pred_check_branch
        %1037 = sbr.rel (%p1035) target = $region52
      $region51: #{pointnet_sa_msg_forward.13} parent=39 // pred_region
        _
      $region52: #{pointnet_sa_msg_forward.13} parent=39 // pred_fallthru
        _
      // Predicated region
      $region53: #{pointnet_sa_msg_forward.13} parent=39 // pred_check
        %p1038 = pneg %p215
      $region54: #{pointnet_sa_msg_forward.13} parent=39 // pred_check_branch
        %1040 = sbr.rel (%p1038) target = $region56
      $region55: #{pointnet_sa_msg_forward.13} parent=39 // pred_region
        _
      $region56: #{pointnet_sa_msg_forward.13} parent=39 // pred_fallthru
        _
    $region40: #{pointnet_sa_msg_forward.13} parent=5 // pred_fallthru
      _
    %p1041 = scmp.le.s32.totalorder 2, %s14
    // Predicated region
    $region57: #{pointnet_sa_msg_forward.13} parent=5 // pred_check
      %p1042 = pneg %p1041
    $region58: #{pointnet_sa_msg_forward.13} parent=5 // pred_check_branch
      %1044 = sbr.rel (%p1042) target = $region60
    $region59: #{pointnet_sa_msg_forward.13} parent=5 // pred_region
      %s1045 = ssub.s32 %s14, 2
      // Predicated region
      $region61: #{pointnet_sa_msg_forward.13} parent=59 // pred_check
        %p1046 = pneg %p169
      $region62: #{pointnet_sa_msg_forward.13} parent=59 // pred_check_branch
        %1048 = sbr.rel (%p1046) target = $region64
      $region63: #{pointnet_sa_msg_forward.13} parent=59 // pred_region
        %s1049 = sadd.s32 %s25, %s26
        %s1050 = smul.u32 32, %s1049
        %p1051 = scmp.lt.s32.totalorder %s1050, 63
        %s1052 = scalar_select %p1051, %s1050, 63
        %s1053 = smul.addr %s1052, 4
        %s1054 = scalar_lea.vmem %s5, %s1053
      $region64: #{pointnet_sa_msg_forward.13} parent=59 // pred_fallthru
        _
      // Predicated region
      $region65: #{pointnet_sa_msg_forward.13} parent=59 // pred_check
        %p1055 = pneg %p195
      $region66: #{pointnet_sa_msg_forward.13} parent=59 // pred_check_branch
        %1057 = sbr.rel (%p1055) target = $region68
      $region67: #{pointnet_sa_msg_forward.13} parent=59 // pred_region
        %p1058 = scmp.lt.s32.totalorder %s25, 1
        %s1059 = scalar_select %p1058, %s25, 1
        %s1060 = smul.addr %s1059, 8
        %s1061 = scalar_lea.vmem %s6, %s1060
      $region68: #{pointnet_sa_msg_forward.13} parent=59 // pred_fallthru
        _
      // Predicated region
      $region69: #{pointnet_sa_msg_forward.13} parent=59 // pred_check
        %p1062 = pneg %p221
      $region70: #{pointnet_sa_msg_forward.13} parent=59 // pred_check_branch
        %1064 = sbr.rel (%p1062) target = $region72
      $region71: #{pointnet_sa_msg_forward.13} parent=59 // pred_region
        %p1065 = scmp.lt.s32.totalorder %s25, 1
        %s1066 = scalar_select %p1065, %s25, 1
        %s1067 = smul.addr %s1066, 8
        %s1068 = scalar_lea.vmem %s7, %s1067
      $region72: #{pointnet_sa_msg_forward.13} parent=59 // pred_fallthru
        _
    $region60: #{pointnet_sa_msg_forward.13} parent=5 // pred_fallthru
      _
  $region6: #{pointnet_sa_msg_forward.13} parent=0 // loop_footer
    %s18 = sadd.s32 1, %s14
  $region7: #{pointnet_sa_msg_forward.13} parent=0 // loop_footer_branch
    %13 = sbr.rel target = $region3
  $region8: #{pointnet_sa_msg_forward.13} parent=0 // loop_exit
    _

// kernel: pointnet_sa_msg_forward.12
$region0: #{pointnet_sa_msg_forward.12}
  #allocation0 [shape = 'u32[]', space=smem, size = 0x4, offset = 0x4, fixed_abs, tag = 'smem constant byte address 0x4 - core index']
  #allocation1 [shape = 'u32[144,128]{1,0:T(1,128)}', space=vmem, size = 0x12000, scoped, tag = 'internal scratch']
  %s0 = inlined_call_operand.vmem [shape: f32[512,8], index: 0, kind: input, shape index: {}]
  %s1 = inlined_call_operand.vmem [shape: bf16[8,128], index: 1, kind: input, shape index: {}]
  %s2 = inlined_call_operand.vmem [shape: f32[1,128], index: 2, kind: input, shape index: {}]
  %s3 = inlined_call_operand.vmem [shape: bf16[512,128], index: 3, kind: output, shape index: {0}]
  %s4 = inlined_call_operand.vmem [shape: f32[2,8,128], index: 4, kind: output, shape index: {1}]
  %s5 = inlined_call_operand.vmem [shape: f32[2,8,128], index: 5, kind: output, shape index: {2}]
  %6 = xla_tuple %s3, %s4, %s5
  %s7 = sld [smem:[#allocation0]]
  $region65: #{pointnet_sa_msg_forward.12} parent=0
    _
  %s9 = ssub.s32 1, %s7
  %s10 = scalar_select 0, %s9, %s7
  loop: start=0, step=1, limit=4
  $region2: #{pointnet_sa_msg_forward.12} parent=0 // loop_pre_header
    _
  $region3: #{pointnet_sa_msg_forward.12} parent=0 // loop_header
    %s12 = sphi 0, %s16
    %p13 = scmp.ge.s32.totalorder %s12, 4
    %s19 = sphi 0, %s31
    %s20 = sphi 0, %s27
    %s21 = sphi 0, %s19
    %s22 = sphi 0, %s20
    %s23 = sphi 0, %s21
    %s24 = sphi 0, %s22
    %s36 = sphi 0, %s38
    %s39 = sphi 0, %s36
    %s40 = sphi 0, %s39
    %s56 = sphi 0, %s40
    %s60 = sphi 0, %s60
    %s62 = sphi 0, %s60
    %s63 = sphi 0, %s62
    %s77 = sphi 0, %s63
    %s81 = sphi 0, %s81
    %s83 = sphi 0, %s81
    %s84 = sphi 0, %s83
    %s98 = sphi 0, %s84
    %s106 = sphi 0, %s108
    %s109 = sphi 0, %s106
    %s110 = sphi 0, %s109
    %s126 = sphi 0, %s110
    %s132 = sphi 0, %s134
    %s135 = sphi 0, %s132
    %s136 = sphi 0, %s135
    %s152 = sphi 0, %s136
    %s158 = sphi 0, %s160
    %s161 = sphi 0, %s158
    %s162 = sphi 0, %s161
    %s178 = sphi 0, %s162
  $region4: #{pointnet_sa_msg_forward.12} parent=0 // loop_header_branch
    %15 = sbr.rel (%p13) target = $region8
  $region5: #{pointnet_sa_msg_forward.12} parent=0 // loop_body
    %s17 = ssub.s32 %s12, 1
    %s18 = ssub.s32 %s12, 2
    %s25 = sadd.s32 1, %s20
    %p26 = scmp.ge.s32.totalorder %s25, 1
    %s27 = scalar_select %p26, 0, %s25
    %s28 = sadd.s32 1, %s19
    %s29 = scalar_select %p26, %s28, %s19
    %p30 = scmp.ge.s32.totalorder %s29, 2
    %s31 = scalar_select %p30, 0, %s29
    %s32 = sadd.s32 %s19, %s20
    %s33 = sadd.s32 %s31, %s27
    %s34 = ssub.s32 %s32, %s33
    %p35 = scmp.eq.s32.totalorder %s34, 0
    %s37 = sadd.s32 %s36, 1
    %s38 = scalar_select %p35, %s36, %s37
    %p41 = pneg %p35
    %p42 = scmp.eq.s32.totalorder %s12, 1
    %p43 = por %p41, %p42
    %p44 = scmp.ne.s32.totalorder %s36, %s39
    %p45 = scmp.eq.s32.totalorder %s12, 0
    %p46 = por %p44, %p45
    %p47 = scmp.ne.s32.totalorder %s36, %s39
    %p48 = scmp.eq.s32.totalorder %s17, 1
    %p49 = por %p47, %p48
    %p50 = scmp.ne.s32.totalorder %s39, %s40
    %p51 = scmp.eq.s32.totalorder %s17, 0
    %p52 = por %p50, %p51
    %p53 = scmp.ne.s32.totalorder %s39, %s40
    %p54 = scmp.eq.s32.totalorder %s18, 1
    %p55 = por %p53, %p54
    %p57 = scmp.ne.s32.totalorder %s40, %s56
    %p58 = scmp.eq.s32.totalorder %s18, 0
    %p59 = por %p57, %p58
    %s61 = sadd.s32 %s60, 1
    %p64 = scmp.eq.s32.totalorder %s12, 1
    %p65 = scmp.ne.s32.totalorder %s60, %s62
    %p66 = scmp.eq.s32.totalorder %s12, 0
    %p67 = por %p65, %p66
    %p68 = scmp.ne.s32.totalorder %s60, %s62
    %p69 = scmp.eq.s32.totalorder %s17, 1
    %p70 = por %p68, %p69
    %p71 = scmp.ne.s32.totalorder %s62, %s63
    %p72 = scmp.eq.s32.totalorder %s17, 0
    %p73 = por %p71, %p72
    %p74 = scmp.ne.s32.totalorder %s62, %s63
    %p75 = scmp.eq.s32.totalorder %s18, 1
    %p76 = por %p74, %p75
    %p78 = scmp.ne.s32.totalorder %s63, %s77
    %p79 = scmp.eq.s32.totalorder %s18, 0
    %p80 = por %p78, %p79
    %s82 = sadd.s32 %s81, 1
    %p85 = scmp.eq.s32.totalorder %s12, 1
    %p86 = scmp.ne.s32.totalorder %s81, %s83
    %p87 = scmp.eq.s32.totalorder %s12, 0
    %p88 = por %p86, %p87
    %p89 = scmp.ne.s32.totalorder %s81, %s83
    %p90 = scmp.eq.s32.totalorder %s17, 1
    %p91 = por %p89, %p90
    %p92 = scmp.ne.s32.totalorder %s83, %s84
    %p93 = scmp.eq.s32.totalorder %s17, 0
    %p94 = por %p92, %p93
    %p95 = scmp.ne.s32.totalorder %s83, %s84
    %p96 = scmp.eq.s32.totalorder %s18, 1
    %p97 = por %p95, %p96
    %p99 = scmp.ne.s32.totalorder %s84, %s98
    %p100 = scmp.eq.s32.totalorder %s18, 0
    %p101 = por %p99, %p100
    %s102 = sadd.s32 %s19, %s20
    %s103 = sadd.s32 %s31, %s27
    %s104 = ssub.s32 %s102, %s103
    %p105 = scmp.eq.s32.totalorder %s104, 0
    %s107 = sadd.s32 %s106, 1
    %s108 = scalar_select %p105, %s106, %s107
    %p111 = pneg %p105
    %p112 = scmp.eq.s32.totalorder %s12, 1
    %p113 = por %p111, %p112
    %p114 = scmp.ne.s32.totalorder %s106, %s109
    %p115 = scmp.eq.s32.totalorder %s12, 0
    %p116 = por %p114, %p115
    %p117 = scmp.ne.s32.totalorder %s106, %s109
    %p118 = scmp.eq.s32.totalorder %s17, 1
    %p119 = por %p117, %p118
    %p120 = scmp.ne.s32.totalorder %s109, %s110
    %p121 = scmp.eq.s32.totalorder %s17, 0
    %p122 = por %p120, %p121
    %p123 = scmp.ne.s32.totalorder %s109, %s110
    %p124 = scmp.eq.s32.totalorder %s18, 1
    %p125 = por %p123, %p124
    %p127 = scmp.ne.s32.totalorder %s110, %s126
    %p128 = scmp.eq.s32.totalorder %s18, 0
    %p129 = por %p127, %p128
    %s130 = ssub.s32 %s19, %s31
    %p131 = scmp.eq.s32.totalorder %s130, 0
    %s133 = sadd.s32 %s132, 1
    %s134 = scalar_select %p131, %s132, %s133
    %p137 = pneg %p131
    %p138 = scmp.eq.s32.totalorder %s12, 1
    %p139 = por %p137, %p138
    %p140 = scmp.ne.s32.totalorder %s132, %s135
    %p141 = scmp.eq.s32.totalorder %s12, 0
    %p142 = por %p140, %p141
    %p143 = scmp.ne.s32.totalorder %s132, %s135
    %p144 = scmp.eq.s32.totalorder %s17, 1
    %p145 = por %p143, %p144
    %p146 = scmp.ne.s32.totalorder %s135, %s136
    %p147 = scmp.eq.s32.totalorder %s17, 0
    %p148 = por %p146, %p147
    %p149 = scmp.ne.s32.totalorder %s135, %s136
    %p150 = scmp.eq.s32.totalorder %s18, 1
    %p151 = por %p149, %p150
    %p153 = scmp.ne.s32.totalorder %s136, %s152
    %p154 = scmp.eq.s32.totalorder %s18, 0
    %p155 = por %p153, %p154
    %s156 = ssub.s32 %s19, %s31
    %p157 = scmp.eq.s32.totalorder %s156, 0
    %s159 = sadd.s32 %s158, 1
    %s160 = scalar_select %p157, %s158, %s159
    %p163 = pneg %p157
    %p164 = scmp.eq.s32.totalorder %s12, 1
    %p165 = por %p163, %p164
    %p166 = scmp.ne.s32.totalorder %s158, %s161
    %p167 = scmp.eq.s32.totalorder %s12, 0
    %p168 = por %p166, %p167
    %p169 = scmp.ne.s32.totalorder %s158, %s161
    %p170 = scmp.eq.s32.totalorder %s17, 1
    %p171 = por %p169, %p170
    %p172 = scmp.ne.s32.totalorder %s161, %s162
    %p173 = scmp.eq.s32.totalorder %s17, 0
    %p174 = por %p172, %p173
    %p175 = scmp.ne.s32.totalorder %s161, %s162
    %p176 = scmp.eq.s32.totalorder %s18, 1
    %p177 = por %p175, %p176
    %p179 = scmp.ne.s32.totalorder %s162, %s178
    %p180 = scmp.eq.s32.totalorder %s18, 0
    %p181 = por %p179, %p180
    %p182 = scmp.le.s32.totalorder 1, %s12
    %p183 = scmp.lt.s32.totalorder %s12, 3
    %p184 = pnand %p182, %p183
    %p185 = pneg %p184
    // Predicated region
    $region9: #{pointnet_sa_msg_forward.12} parent=5 // pred_check
      _
    $region10: #{pointnet_sa_msg_forward.12} parent=5 // pred_check_branch
      %187 = sbr.rel (%p184) target = $region12
    $region11: #{pointnet_sa_msg_forward.12} parent=5 // pred_region
      %s188 = ssub.s32 %s12, 1
      // Predicated region
      $region13: #{pointnet_sa_msg_forward.12} parent=11 // pred_check
        %p189 = pneg %p73
      $region14: #{pointnet_sa_msg_forward.12} parent=11 // pred_check_branch
        %191 = sbr.rel (%p189) target = $region16
      $region15: #{pointnet_sa_msg_forward.12} parent=11 // pred_region
        _
      $region16: #{pointnet_sa_msg_forward.12} parent=11 // pred_fallthru
        _
      // Predicated region
      $region17: #{pointnet_sa_msg_forward.12} parent=11 // pred_check
        %p192 = pneg %p94
      $region18: #{pointnet_sa_msg_forward.12} parent=11 // pred_check_branch
        %194 = sbr.rel (%p192) target = $region20
      $region19: #{pointnet_sa_msg_forward.12} parent=11 // pred_region
        _
      $region20: #{pointnet_sa_msg_forward.12} parent=11 // pred_fallthru
        _
    $region12: #{pointnet_sa_msg_forward.12} parent=5 // pred_fallthru
      _
    %p195 = scmp.lt.s32.totalorder %s12, 2
    // Predicated region
    $region21: #{pointnet_sa_msg_forward.12} parent=5 // pred_check
      %p196 = pneg %p195
    $region22: #{pointnet_sa_msg_forward.12} parent=5 // pred_check_branch
      %198 = sbr.rel (%p196) target = $region24
    $region23: #{pointnet_sa_msg_forward.12} parent=5 // pred_region
      // Predicated region
      $region25: #{pointnet_sa_msg_forward.12} parent=23 // pred_check
        %p199 = pneg %p46
      $region26: #{pointnet_sa_msg_forward.12} parent=23 // pred_check_branch
        %201 = sbr.rel (%p199) target = $region28
      $region27: #{pointnet_sa_msg_forward.12} parent=23 // pred_region
        %s202 = sadd.s32 %s19, %s20
        %s203 = smul.u32 32, %s202
        %p204 = scmp.lt.s32.totalorder %s203, 63
        %s205 = scalar_select %p204, %s203, 63
        %s206 = smul.addr %s205, 8
        %s207 = scalar_lea.vmem %s0, %s206
        %s208 = sadd.s32 %s19, %s20
        %s209 = smul.u32 32, %s208
      $region28: #{pointnet_sa_msg_forward.12} parent=23 // pred_fallthru
        _
    $region24: #{pointnet_sa_msg_forward.12} parent=5 // pred_fallthru
      _
    %p210 = scmp.le.s32.totalorder 1, %s12
    %p211 = scmp.lt.s32.totalorder %s12, 3
    %p212 = pnand %p210, %p211
    %p213 = pneg %p212
    // Predicated region
    $region29: #{pointnet_sa_msg_forward.12} parent=5 // pred_check
      _
    $region30: #{pointnet_sa_msg_forward.12} parent=5 // pred_check_branch
      %215 = sbr.rel (%p212) target = $region32
    $region31: #{pointnet_sa_msg_forward.12} parent=5 // pred_region
      %s216 = ssub.s32 %s12, 1
      %s217 = sadd.s32 %s21, %s22
      %s218 = smul.u32 32, %s217
      %p219 = scmp.lt.s32.totalorder %s218, 63
      %s220 = scalar_select %p219, %s218, 63
      %s221 = smul.addr %s220, 8
      %s222 = scalar_lea.vmem %s0, %s221
      %p223 = pneg %p52
      %p224 = pneg %p49
      %p225 = pneg %p73
      %p226 = pneg %p70
      %p227 = pneg %p94
      %p228 = pneg %p91
      %p229 = pneg %p122
      %p230 = pneg %p119
      %s231 = sadd.s32 %s21, %s22
      %s232 = smul.u32 32, %s231
      %p233 = scmp.lt.s32.totalorder %s232, 63
      %s234 = scalar_select %p233, %s232, 63
      %s235 = smul.addr %s234, 4
      %s236 = scalar_lea.vmem %s3, %s235
      %p237 = pneg %p148
      %p238 = pneg %p145
      %p239 = scmp.lt.s32.totalorder %s21, 1
      %s240 = scalar_select %p239, %s21, 1
      %s241 = smul.addr %s240, 8
      %s242 = scalar_lea.vmem %s4, %s241
      %p243 = pneg %p174
      %p244 = pneg %p171
      %p245 = scmp.lt.s32.totalorder %s21, 1
      %s246 = scalar_select %p245, %s21, 1
      %s247 = smul.addr %s246, 8
      %s248 = scalar_lea.vmem %s5, %s247
      %s249 = sadd.s32 %s21, %s22
      %s250 = smul.u32 32, %s249
      %p251 = scmp.lt.s32.totalorder %s250, 63
      %s252 = scalar_select %p251, %s250, 63
      %s253 = smul.addr %s252, 8
      %s254 = scalar_lea.vmem %s0, %s253
      %s255 = sadd.s32 %s21, %s22
      %s256 = smul.u32 32, %s255
      %s257 = sadd.s32 %s21, %s22
      %s258 = smul.u32 32, %s257
      %p259 = scmp.lt.s32.totalorder %s258, 63
      %s260 = scalar_select %p259, %s258, 63
      %s261 = smul.addr %s260, 4
      %s262 = scalar_lea.vmem %s3, %s261
      %s263 = sadd.s32 %s21, %s22
      %s264 = smul.u32 32, %s263
      %p265 = scmp.lt.s32.totalorder %s21, 1
      %s266 = scalar_select %p265, %s21, 1
      %s267 = smul.addr %s266, 8
      %s268 = scalar_lea.vmem %s4, %s267
      %p269 = scmp.lt.s32.totalorder %s21, 1
      %s270 = scalar_select %p269, %s21, 1
      %s271 = smul.addr %s270, 8
      %s272 = scalar_lea.vmem %s5, %s271
      %v274 = vld [vmem:[%s254] sm:$0xff]
      %v275 = vld [vmem:[%s254 + $0x8] sm:$0xff]
      %v276 = vld [vmem:[%s254 + $0x10] sm:$0xff]
      %v277 = vld [vmem:[%s254 + $0x18] sm:$0xff]
      %v278 = vld [vmem:[%s254 + $0x20] sm:$0xff]
      %v279 = vld [vmem:[%s254 + $0x28] sm:$0xff]
      %v280 = vld [vmem:[%s254 + $0x30] sm:$0xff]
      %v281 = vld [vmem:[%s254 + $0x38] sm:$0xff]
      %v282 = vld [vmem:[%s254 + $0x40] sm:$0xff]
      %v283 = vld [vmem:[%s254 + $0x48] sm:$0xff]
      %v284 = vld [vmem:[%s254 + $0x50] sm:$0xff]
      %v285 = vld [vmem:[%s254 + $0x58] sm:$0xff]
      %v286 = vld [vmem:[%s254 + $0x60] sm:$0xff]
      %v287 = vld [vmem:[%s254 + $0x68] sm:$0xff]
      %v288 = vld [vmem:[%s254 + $0x70] sm:$0xff]
      %v289 = vld [vmem:[%s254 + $0x78] sm:$0xff]
      %v290 = vld [vmem:[%s254 + $0x80] sm:$0xff]
      %v291 = vld [vmem:[%s254 + $0x88] sm:$0xff]
      %v292 = vld [vmem:[%s254 + $0x90] sm:$0xff]
      %v293 = vld [vmem:[%s254 + $0x98] sm:$0xff]
      %v294 = vld [vmem:[%s254 + $0xa0] sm:$0xff]
      %v295 = vld [vmem:[%s254 + $0xa8] sm:$0xff]
      %v296 = vld [vmem:[%s254 + $0xb0] sm:$0xff]
      %v297 = vld [vmem:[%s254 + $0xb8] sm:$0xff]
      %v298 = vld [vmem:[%s254 + $0xc0] sm:$0xff]
      %v299 = vld [vmem:[%s254 + $0xc8] sm:$0xff]
      %v300 = vld [vmem:[%s254 + $0xd0] sm:$0xff]
      %v301 = vld [vmem:[%s254 + $0xd8] sm:$0xff]
      %v302 = vld [vmem:[%s254 + $0xe0] sm:$0xff]
      %v303 = vld [vmem:[%s254 + $0xe8] sm:$0xff]
      %v304 = vld [vmem:[%s254 + $0xf0] sm:$0xff]
      %v305 = vld [vmem:[%s254 + $0xf8] sm:$0xff]
      %v306 = vpack.c.bf16 %v275, %v274
      %v307 = vpack.c.bf16 %v277, %v276
      %v308 = vpack.c.bf16 %v279, %v278
      %v309 = vpack.c.bf16 %v281, %v280
      %v310 = vpack.c.bf16 %v283, %v282
      %v311 = vpack.c.bf16 %v285, %v284
      %v312 = vpack.c.bf16 %v287, %v286
      %v313 = vpack.c.bf16 %v289, %v288
      %v314 = vpack.c.bf16 %v291, %v290
      %v315 = vpack.c.bf16 %v293, %v292
      %v316 = vpack.c.bf16 %v295, %v294
      %v317 = vpack.c.bf16 %v297, %v296
      %v318 = vpack.c.bf16 %v299, %v298
      %v319 = vpack.c.bf16 %v301, %v300
      %v320 = vpack.c.bf16 %v303, %v302
      %v321 = vpack.c.bf16 %v305, %v304
      %v322 = vld [vmem:[%s1] sm:$0xf]
      %v323 = vld [vmem:[%s2] sm:$0x1]
      %v325 = vlaneseq
      %v326 = vshrl.u32 %v325, 7
      %v327 = vsub.s32 0, %v326
      %v328 = vrot.slane %v323, %v327
      %vm330 = vcmask 64512
      %v332 = vsel %vm330, %v306, 0
      %v335 = vsel %vm330, %v307, 0
      %v338 = vsel %vm330, %v308, 0
      %v341 = vsel %vm330, %v309, 0
      %v344 = vsel %vm330, %v310, 0
      %v347 = vsel %vm330, %v311, 0
      %v350 = vsel %vm330, %v312, 0
      %v353 = vsel %vm330, %v313, 0
      %v356 = vsel %vm330, %v314, 0
      %v359 = vsel %vm330, %v315, 0
      %v362 = vsel %vm330, %v316, 0
      %v365 = vsel %vm330, %v317, 0
      %v368 = vsel %vm330, %v318, 0
      %v371 = vsel %vm330, %v319, 0
      %v374 = vsel %vm330, %v320, 0
      %v377 = vsel %vm330, %v321, 0
      %vm379 = vcmask 1043456
      %v381 = vsel %vm379, %v322, 0
      %383 = vmatprep.subr.bf16.mxu0 0
      %384 = vmatpush1.bf16.msra.mxu0 %v381
      %385 = vmatprep.subr.bf16.mxu0 0
      %386 = vmatpush1.bf16.msra.mxu0 0
      %387 = vmatprep.subr.bf16.mxu0 0
      %388 = vmatpush1.bf16.msra.mxu0 0
      %389 = vmatprep.subr.bf16.mxu0 0
      %390 = vmatpush1.bf16.msra.mxu0 0
      %391 = vmatprep.subr.bf16.mxu0 0
      %392 = vmatpush1.bf16.msra.mxu0 0
      %393 = vmatprep.subr.bf16.mxu0 0
      %394 = vmatpush1.bf16.msra.mxu0 0
      %395 = vmatprep.subr.bf16.mxu0 0
      %396 = vmatpush1.bf16.msra.mxu0 0
      %397 = vmatprep.subr.bf16.mxu0 0
      %398 = vmatpush1.bf16.msra.mxu0 0
      %399 = vmatprep.subr.bf16.mxu0 0
      %400 = vmatpush1.bf16.msra.mxu0 0
      %401 = vmatprep.subr.bf16.mxu0 0
      %402 = vmatpush1.bf16.msra.mxu0 0
      %403 = vmatprep.subr.bf16.mxu0 0
      %404 = vmatpush1.bf16.msra.mxu0 0
      %405 = vmatprep.subr.bf16.mxu0 0
      %406 = vmatpush1.bf16.msra.mxu0 0
      %407 = vmatprep.subr.bf16.mxu0 0
      %408 = vmatpush1.bf16.msra.mxu0 0
      %409 = vmatprep.subr.bf16.mxu0 0
      %410 = vmatpush1.bf16.msra.mxu0 0
      %411 = vmatprep.subr.bf16.mxu0 0
      %412 = vmatpush1.bf16.msra.mxu0 0
      %413 = vmatprep.subr.bf16.mxu0 0
      %414 = vmatpush1.bf16.msra.mxu0 0
      %415 = vmatprep.mubr.bf16.mxu0 0
      %416 = vmatmul.mubr.bf16.gmra.mrb[0].mxu0 %v332
      %v417 = vpop.f32.mrb[0].mxu0
      %v418 = vadd.f32 %v328, %v417
      %v419 = vpop.f32.mrb[0].mxu0
      %v420 = vpop.f32.mrb[0].mxu0
      %v421 = vadd.f32 %v328, %v420
      %v422 = vpop.f32.mrb[0].mxu0
      %423 = vmatprep.mubr.bf16.mxu0 0
      %424 = vmatmul.mubr.bf16.gmra.mrb[0].mxu0 %v335
      %v425 = vpop.f32.mrb[0].mxu0
      %v426 = vadd.f32 %v328, %v425
      %v427 = vpop.f32.mrb[0].mxu0
      %v428 = vpop.f32.mrb[0].mxu0
      %v429 = vadd.f32 %v328, %v428
      %v430 = vpop.f32.mrb[0].mxu0
      %431 = vmatprep.mubr.bf16.mxu0 0
      %432 = vmatmul.mubr.bf16.gmra.mrb[0].mxu0 %v338
      %v433 = vpop.f32.mrb[0].mxu0
      %v434 = vadd.f32 %v328, %v433
      %v435 = vpop.f32.mrb[0].mxu0
      %v436 = vpop.f32.mrb[0].mxu0
      %v437 = vadd.f32 %v328, %v436
      %v438 = vpop.f32.mrb[0].mxu0
      %439 = vmatprep.mubr.bf16.mxu0 0
      %440 = vmatmul.mubr.bf16.gmra.mrb[0].mxu0 %v341
      %v441 = vpop.f32.mrb[0].mxu0
      %v442 = vadd.f32 %v328, %v441
      %v443 = vpop.f32.mrb[0].mxu0
      %v444 = vpop.f32.mrb[0].mxu0
      %v445 = vadd.f32 %v328, %v444
      %v446 = vpop.f32.mrb[0].mxu0
      %447 = vmatprep.mubr.bf16.mxu0 0
      %448 = vmatmul.mubr.bf16.gmra.mrb[0].mxu0 %v344
      %v449 = vpop.f32.mrb[0].mxu0
      %v450 = vadd.f32 %v328, %v449
      %v451 = vpop.f32.mrb[0].mxu0
      %v452 = vpop.f32.mrb[0].mxu0
      %v453 = vadd.f32 %v328, %v452
      %v454 = vpop.f32.mrb[0].mxu0
      %455 = vmatprep.mubr.bf16.mxu0 0
      %456 = vmatmul.mubr.bf16.gmra.mrb[0].mxu0 %v347
      %v457 = vpop.f32.mrb[0].mxu0
      %v458 = vadd.f32 %v328, %v457
      %v459 = vpop.f32.mrb[0].mxu0
      %v460 = vpop.f32.mrb[0].mxu0
      %v461 = vadd.f32 %v328, %v460
      %v462 = vpop.f32.mrb[0].mxu0
      %463 = vmatprep.mubr.bf16.mxu0 0
      %464 = vmatmul.mubr.bf16.gmra.mrb[0].mxu0 %v350
      %v465 = vpop.f32.mrb[0].mxu0
      %v466 = vadd.f32 %v328, %v465
      %v467 = vpop.f32.mrb[0].mxu0
      %v468 = vpop.f32.mrb[0].mxu0
      %v469 = vadd.f32 %v328, %v468
      %v470 = vpop.f32.mrb[0].mxu0
      %471 = vmatprep.mubr.bf16.mxu0 0
      %472 = vmatmul.mubr.bf16.gmra.mrb[0].mxu0 %v353
      %v473 = vpop.f32.mrb[0].mxu0
      %v474 = vadd.f32 %v328, %v473
      %v475 = vpop.f32.mrb[0].mxu0
      %v476 = vpop.f32.mrb[0].mxu0
      %v477 = vadd.f32 %v328, %v476
      %v478 = vpop.f32.mrb[0].mxu0
      %479 = vmatprep.mubr.bf16.mxu0 0
      %480 = vmatmul.mubr.bf16.gmra.mrb[0].mxu0 %v356
      %v481 = vpop.f32.mrb[0].mxu0
      %v482 = vadd.f32 %v328, %v481
      %v483 = vpop.f32.mrb[0].mxu0
      %v484 = vpop.f32.mrb[0].mxu0
      %v485 = vadd.f32 %v328, %v484
      %v486 = vpop.f32.mrb[0].mxu0
      %487 = vmatprep.mubr.bf16.mxu0 0
      %488 = vmatmul.mubr.bf16.gmra.mrb[0].mxu0 %v359
      %v489 = vpop.f32.mrb[0].mxu0
      %v490 = vadd.f32 %v328, %v489
      %v491 = vpop.f32.mrb[0].mxu0
      %v492 = vpop.f32.mrb[0].mxu0
      %v493 = vadd.f32 %v328, %v492
      %v494 = vpop.f32.mrb[0].mxu0
      %495 = vmatprep.mubr.bf16.mxu0 0
      %496 = vmatmul.mubr.bf16.gmra.mrb[0].mxu0 %v362
      %v497 = vpop.f32.mrb[0].mxu0
      %v498 = vadd.f32 %v328, %v497
      %v499 = vpop.f32.mrb[0].mxu0
      %v500 = vpop.f32.mrb[0].mxu0
      %v501 = vadd.f32 %v328, %v500
      %v502 = vpop.f32.mrb[0].mxu0
      %503 = vmatprep.mubr.bf16.mxu0 0
      %504 = vmatmul.mubr.bf16.gmra.mrb[0].mxu0 %v365
      %v505 = vpop.f32.mrb[0].mxu0
      %v506 = vadd.f32 %v328, %v505
      %v507 = vpop.f32.mrb[0].mxu0
      %v508 = vpop.f32.mrb[0].mxu0
      %v509 = vadd.f32 %v328, %v508
      %v510 = vpop.f32.mrb[0].mxu0
      %511 = vmatprep.mubr.bf16.mxu0 0
      %512 = vmatmul.mubr.bf16.gmra.mrb[0].mxu0 %v368
      %v513 = vpop.f32.mrb[0].mxu0
      %v514 = vadd.f32 %v328, %v513
      %v515 = vpop.f32.mrb[0].mxu0
      %v516 = vpop.f32.mrb[0].mxu0
      %v517 = vadd.f32 %v328, %v516
      %v518 = vpop.f32.mrb[0].mxu0
      %519 = vmatprep.mubr.bf16.mxu0 0
      %520 = vmatmul.mubr.bf16.gmra.mrb[0].mxu0 %v371
      %v521 = vpop.f32.mrb[0].mxu0
      %v522 = vadd.f32 %v328, %v521
      %v523 = vpop.f32.mrb[0].mxu0
      %v524 = vpop.f32.mrb[0].mxu0
      %v525 = vadd.f32 %v328, %v524
      %v526 = vpop.f32.mrb[0].mxu0
      %527 = vmatprep.mubr.bf16.mxu0 0
      %528 = vmatmul.mubr.bf16.gmra.mrb[0].mxu0 %v374
      %v529 = vpop.f32.mrb[0].mxu0
      %v530 = vadd.f32 %v328, %v529
      %v531 = vpop.f32.mrb[0].mxu0
      %v532 = vpop.f32.mrb[0].mxu0
      %v533 = vadd.f32 %v328, %v532
      %v534 = vpop.f32.mrb[0].mxu0
      %535 = vmatprep.mubr.bf16.mxu0 0
      %536 = vmatmul.mubr.bf16.gmra.mrb[0].mxu0 %v377
      %v537 = vpop.f32.mrb[0].mxu0
      %v538 = vadd.f32 %v328, %v537
      %v539 = vpop.f32.mrb[0].mxu0
      %v540 = vpop.f32.mrb[0].mxu0
      %v541 = vadd.f32 %v328, %v540
      %v542 = vpop.f32.mrb[0].mxu0
      %543 = vdwg.mxu0
      %v544 = vpack.c.bf16 %v421, %v418
      %v545 = vpack.c.bf16 %v429, %v426
      %v546 = vpack.c.bf16 %v437, %v434
      %v547 = vpack.c.bf16 %v445, %v442
      %v548 = vpack.c.bf16 %v453, %v450
      %v549 = vpack.c.bf16 %v461, %v458
      %v550 = vpack.c.bf16 %v469, %v466
      %v551 = vpack.c.bf16 %v477, %v474
      %v552 = vpack.c.bf16 %v485, %v482
      %v553 = vpack.c.bf16 %v493, %v490
      %v554 = vpack.c.bf16 %v501, %v498
      %v555 = vpack.c.bf16 %v509, %v506
      %v556 = vpack.c.bf16 %v517, %v514
      %v557 = vpack.c.bf16 %v525, %v522
      %v558 = vpack.c.bf16 %v533, %v530
      %v559 = vpack.c.bf16 %v541, %v538
      %v576 = vunpack.c.l.b16 %v544
      %v577 = vunpack.c.h.b16 %v544
      %v578 = vunpack.c.l.b16 %v545
      %v579 = vunpack.c.h.b16 %v545
      %v580 = vunpack.c.l.b16 %v546
      %v581 = vunpack.c.h.b16 %v546
      %v582 = vunpack.c.l.b16 %v547
      %v583 = vunpack.c.h.b16 %v547
      %v584 = vunpack.c.l.b16 %v548
      %v585 = vunpack.c.h.b16 %v548
      %v586 = vunpack.c.l.b16 %v549
      %v587 = vunpack.c.h.b16 %v549
      %v588 = vunpack.c.l.b16 %v550
      %v589 = vunpack.c.h.b16 %v550
      %v590 = vunpack.c.l.b16 %v551
      %v591 = vunpack.c.h.b16 %v551
      %v592 = vunpack.c.l.b16 %v552
      %v593 = vunpack.c.h.b16 %v552
      %v594 = vunpack.c.l.b16 %v553
      %v595 = vunpack.c.h.b16 %v553
      %v596 = vunpack.c.l.b16 %v554
      %v597 = vunpack.c.h.b16 %v554
      %v598 = vunpack.c.l.b16 %v555
      %v599 = vunpack.c.h.b16 %v555
      %v600 = vunpack.c.l.b16 %v556
      %v601 = vunpack.c.h.b16 %v556
      %v602 = vunpack.c.l.b16 %v557
      %v603 = vunpack.c.h.b16 %v557
      %v604 = vunpack.c.l.b16 %v558
      %v605 = vunpack.c.h.b16 %v558
      %v606 = vunpack.c.l.b16 %v559
      %v607 = vunpack.c.h.b16 %v559
      %v608 = vpack.c.b16 %v576, %v576
      %v609 = vpack.c.b16 %v577, %v577
      %v610 = vpack.c.b16 %v578, %v578
      %v611 = vpack.c.b16 %v579, %v579
      %v612 = vpack.c.b16 %v580, %v580
      %v613 = vpack.c.b16 %v581, %v581
      %v614 = vpack.c.b16 %v582, %v582
      %v615 = vpack.c.b16 %v583, %v583
      %v616 = vpack.c.b16 %v584, %v584
      %v617 = vpack.c.b16 %v585, %v585
      %v618 = vpack.c.b16 %v586, %v586
      %v619 = vpack.c.b16 %v587, %v587
      %v620 = vpack.c.b16 %v588, %v588
      %v621 = vpack.c.b16 %v589, %v589
      %v622 = vpack.c.b16 %v590, %v590
      %v623 = vpack.c.b16 %v591, %v591
      %v624 = vpack.c.b16 %v592, %v592
      %v625 = vpack.c.b16 %v593, %v593
      %v626 = vpack.c.b16 %v594, %v594
      %v627 = vpack.c.b16 %v595, %v595
      %v628 = vpack.c.b16 %v596, %v596
      %v629 = vpack.c.b16 %v597, %v597
      %v630 = vpack.c.b16 %v598, %v598
      %v631 = vpack.c.b16 %v599, %v599
      %v632 = vpack.c.b16 %v600, %v600
      %v633 = vpack.c.b16 %v601, %v601
      %v634 = vpack.c.b16 %v602, %v602
      %v635 = vpack.c.b16 %v603, %v603
      %v636 = vpack.c.b16 %v604, %v604
      %v637 = vpack.c.b16 %v605, %v605
      %v638 = vpack.c.b16 %v606, %v606
      %v639 = vpack.c.b16 %v607, %v607
      %672 = vst [vmem:[%s262] sm:$0xf] %v608
      %673 = vst [vmem:[%s262 + $0x4] sm:$0xf] %v609
      %674 = vst [vmem:[%s262 + $0x8] sm:$0xf] %v610
      %675 = vst [vmem:[%s262 + $0xc] sm:$0xf] %v611
      %676 = vst [vmem:[%s262 + $0x10] sm:$0xf] %v612
      %677 = vst [vmem:[%s262 + $0x14] sm:$0xf] %v613
      %678 = vst [vmem:[%s262 + $0x18] sm:$0xf] %v614
      %679 = vst [vmem:[%s262 + $0x1c] sm:$0xf] %v615
      %680 = vst [vmem:[%s262 + $0x20] sm:$0xf] %v616
      %681 = vst [vmem:[%s262 + $0x24] sm:$0xf] %v617
      %682 = vst [vmem:[%s262 + $0x28] sm:$0xf] %v618
      %683 = vst [vmem:[%s262 + $0x2c] sm:$0xf] %v619
      %684 = vst [vmem:[%s262 + $0x30] sm:$0xf] %v620
      %685 = vst [vmem:[%s262 + $0x34] sm:$0xf] %v621
      %686 = vst [vmem:[%s262 + $0x38] sm:$0xf] %v622
      %687 = vst [vmem:[%s262 + $0x3c] sm:$0xf] %v623
      %688 = vst [vmem:[%s262 + $0x40] sm:$0xf] %v624
      %689 = vst [vmem:[%s262 + $0x44] sm:$0xf] %v625
      %690 = vst [vmem:[%s262 + $0x48] sm:$0xf] %v626
      %691 = vst [vmem:[%s262 + $0x4c] sm:$0xf] %v627
      %692 = vst [vmem:[%s262 + $0x50] sm:$0xf] %v628
      %693 = vst [vmem:[%s262 + $0x54] sm:$0xf] %v629
      %694 = vst [vmem:[%s262 + $0x58] sm:$0xf] %v630
      %695 = vst [vmem:[%s262 + $0x5c] sm:$0xf] %v631
      %696 = vst [vmem:[%s262 + $0x60] sm:$0xf] %v632
      %697 = vst [vmem:[%s262 + $0x64] sm:$0xf] %v633
      %698 = vst [vmem:[%s262 + $0x68] sm:$0xf] %v634
      %699 = vst [vmem:[%s262 + $0x6c] sm:$0xf] %v635
      %700 = vst [vmem:[%s262 + $0x70] sm:$0xf] %v636
      %701 = vst [vmem:[%s262 + $0x74] sm:$0xf] %v637
      %702 = vst [vmem:[%s262 + $0x78] sm:$0xf] %v638
      %703 = vst [vmem:[%s262 + $0x7c] sm:$0xf] %v639
      %p704 = scmp.eq.s32.totalorder %s22, 0
      // Predicated region
      $region33: #{pointnet_sa_msg_forward.12} parent=31 // pred_check
        %p705 = pneg %p704
      $region34: #{pointnet_sa_msg_forward.12} parent=31 // pred_check_branch
        %707 = sbr.rel (%p705) target = $region36
      $region35: #{pointnet_sa_msg_forward.12} parent=31 // pred_region
        %708 = vst [vmem:[%s268] sm:$0xff] 0.0
        %709 = vst [vmem:[%s272] sm:$0xff] 0.0
      $region36: #{pointnet_sa_msg_forward.12} parent=31 // pred_fallthru
        _
      %v710 = vld [vmem:[%s268] sm:$0xff]
      %v711 = vadd.f32 %v418, %v421
      %v712 = vadd.f32 %v711, %v426
      %v713 = vadd.f32 %v712, %v429
      %v714 = vadd.f32 %v713, %v434
      %v715 = vadd.f32 %v714, %v437
      %v716 = vadd.f32 %v715, %v442
      %v717 = vadd.f32 %v716, %v445
      %v718 = vadd.f32 %v717, %v450
      %v719 = vadd.f32 %v718, %v453
      %v720 = vadd.f32 %v719, %v458
      %v721 = vadd.f32 %v720, %v461
      %v722 = vadd.f32 %v721, %v466
      %v723 = vadd.f32 %v722, %v469
      %v724 = vadd.f32 %v723, %v474
      %v725 = vadd.f32 %v724, %v477
      %v726 = vadd.f32 %v725, %v482
      %v727 = vadd.f32 %v726, %v485
      %v728 = vadd.f32 %v727, %v490
      %v729 = vadd.f32 %v728, %v493
      %v730 = vadd.f32 %v729, %v498
      %v731 = vadd.f32 %v730, %v501
      %v732 = vadd.f32 %v731, %v506
      %v733 = vadd.f32 %v732, %v509
      %v734 = vadd.f32 %v733, %v514
      %v735 = vadd.f32 %v734, %v517
      %v736 = vadd.f32 %v735, %v522
      %v737 = vadd.f32 %v736, %v525
      %v738 = vadd.f32 %v737, %v530
      %v739 = vadd.f32 %v738, %v533
      %v740 = vadd.f32 %v739, %v538
      %v741 = vadd.f32 %v740, %v541
      %v742 = vadd.f32 %v710, %v741
      %743 = vst [vmem:[%s268] sm:$0xff] %v742
      %v744 = vld [vmem:[%s272] sm:$0xff]
      %v745 = vmul.f32 %v418, %v418
      %v746 = vmul.f32 %v421, %v421
      %v747 = vmul.f32 %v426, %v426
      %v748 = vmul.f32 %v429, %v429
      %v749 = vmul.f32 %v434, %v434
      %v750 = vmul.f32 %v437, %v437
      %v751 = vmul.f32 %v442, %v442
      %v752 = vmul.f32 %v445, %v445
      %v753 = vmul.f32 %v450, %v450
      %v754 = vmul.f32 %v453, %v453
      %v755 = vmul.f32 %v458, %v458
      %v756 = vmul.f32 %v461, %v461
      %v757 = vmul.f32 %v466, %v466
      %v758 = vmul.f32 %v469, %v469
      %v759 = vmul.f32 %v474, %v474
      %v760 = vmul.f32 %v477, %v477
      %v761 = vmul.f32 %v482, %v482
      %v762 = vmul.f32 %v485, %v485
      %v763 = vmul.f32 %v490, %v490
      %v764 = vmul.f32 %v493, %v493
      %v765 = vmul.f32 %v498, %v498
      %v766 = vmul.f32 %v501, %v501
      %v767 = vmul.f32 %v506, %v506
      %v768 = vmul.f32 %v509, %v509
      %v769 = vmul.f32 %v514, %v514
      %v770 = vmul.f32 %v517, %v517
      %v771 = vmul.f32 %v522, %v522
      %v772 = vmul.f32 %v525, %v525
      %v773 = vmul.f32 %v530, %v530
      %v774 = vmul.f32 %v533, %v533
      %v775 = vmul.f32 %v538, %v538
      %v776 = vmul.f32 %v541, %v541
      %v777 = vadd.f32 %v745, %v746
      %v778 = vadd.f32 %v777, %v747
      %v779 = vadd.f32 %v778, %v748
      %v780 = vadd.f32 %v779, %v749
      %v781 = vadd.f32 %v780, %v750
      %v782 = vadd.f32 %v781, %v751
      %v783 = vadd.f32 %v782, %v752
      %v784 = vadd.f32 %v783, %v753
      %v785 = vadd.f32 %v784, %v754
      %v786 = vadd.f32 %v785, %v755
      %v787 = vadd.f32 %v786, %v756
      %v788 = vadd.f32 %v787, %v757
      %v789 = vadd.f32 %v788, %v758
      %v790 = vadd.f32 %v789, %v759
      %v791 = vadd.f32 %v790, %v760
      %v792 = vadd.f32 %v791, %v761
      %v793 = vadd.f32 %v792, %v762
      %v794 = vadd.f32 %v793, %v763
      %v795 = vadd.f32 %v794, %v764
      %v796 = vadd.f32 %v795, %v765
      %v797 = vadd.f32 %v796, %v766
      %v798 = vadd.f32 %v797, %v767
      %v799 = vadd.f32 %v798, %v768
      %v800 = vadd.f32 %v799, %v769
      %v801 = vadd.f32 %v800, %v770
      %v802 = vadd.f32 %v801, %v771
      %v803 = vadd.f32 %v802, %v772
      %v804 = vadd.f32 %v803, %v773
      %v805 = vadd.f32 %v804, %v774
      %v806 = vadd.f32 %v805, %v775
      %v807 = vadd.f32 %v806, %v776
      %v808 = vadd.f32 %v744, %v807
      %809 = vst [vmem:[%s272] sm:$0xff] %v808
      %s810 = sadd.s32 %s21, %s22
      %s811 = smul.u32 32, %s810
      %p812 = scmp.lt.s32.totalorder %s811, 63
      %s813 = scalar_select %p812, %s811, 63
      %s814 = smul.addr %s813, 4
      %s815 = scalar_lea.vmem %s3, %s814
      %p816 = scmp.lt.s32.totalorder %s21, 1
      %s817 = scalar_select %p816, %s21, 1
      %s818 = smul.addr %s817, 8
      %s819 = scalar_lea.vmem %s4, %s818
      %p820 = scmp.lt.s32.totalorder %s21, 1
      %s821 = scalar_select %p820, %s21, 1
      %s822 = smul.addr %s821, 8
      %s823 = scalar_lea.vmem %s5, %s822
      // Predicated region
      $region37: #{pointnet_sa_msg_forward.12} parent=31 // pred_check
        %p824 = pneg %p119
      $region38: #{pointnet_sa_msg_forward.12} parent=31 // pred_check_branch
        %826 = sbr.rel (%p824) target = $region40
      $region39: #{pointnet_sa_msg_forward.12} parent=31 // pred_region
        %s827 = sadd.s32 %s21, %s22
        %s828 = smul.u32 32, %s827
      $region40: #{pointnet_sa_msg_forward.12} parent=31 // pred_fallthru
        _
      // Predicated region
      $region41: #{pointnet_sa_msg_forward.12} parent=31 // pred_check
        %p829 = pneg %p145
      $region42: #{pointnet_sa_msg_forward.12} parent=31 // pred_check_branch
        %831 = sbr.rel (%p829) target = $region44
      $region43: #{pointnet_sa_msg_forward.12} parent=31 // pred_region
        _
      $region44: #{pointnet_sa_msg_forward.12} parent=31 // pred_fallthru
        _
      // Predicated region
      $region45: #{pointnet_sa_msg_forward.12} parent=31 // pred_check
        %p832 = pneg %p171
      $region46: #{pointnet_sa_msg_forward.12} parent=31 // pred_check_branch
        %834 = sbr.rel (%p832) target = $region48
      $region47: #{pointnet_sa_msg_forward.12} parent=31 // pred_region
        _
      $region48: #{pointnet_sa_msg_forward.12} parent=31 // pred_fallthru
        _
    $region32: #{pointnet_sa_msg_forward.12} parent=5 // pred_fallthru
      _
    %p835 = scmp.le.s32.totalorder 2, %s12
    // Predicated region
    $region49: #{pointnet_sa_msg_forward.12} parent=5 // pred_check
      %p836 = pneg %p835
    $region50: #{pointnet_sa_msg_forward.12} parent=5 // pred_check_branch
      %838 = sbr.rel (%p836) target = $region52
    $region51: #{pointnet_sa_msg_forward.12} parent=5 // pred_region
      %s839 = ssub.s32 %s12, 2
      // Predicated region
      $region53: #{pointnet_sa_msg_forward.12} parent=51 // pred_check
        %p840 = pneg %p125
      $region54: #{pointnet_sa_msg_forward.12} parent=51 // pred_check_branch
        %842 = sbr.rel (%p840) target = $region56
      $region55: #{pointnet_sa_msg_forward.12} parent=51 // pred_region
        %s843 = sadd.s32 %s23, %s24
        %s844 = smul.u32 32, %s843
        %p845 = scmp.lt.s32.totalorder %s844, 63
        %s846 = scalar_select %p845, %s844, 63
        %s847 = smul.addr %s846, 4
        %s848 = scalar_lea.vmem %s3, %s847
      $region56: #{pointnet_sa_msg_forward.12} parent=51 // pred_fallthru
        _
      // Predicated region
      $region57: #{pointnet_sa_msg_forward.12} parent=51 // pred_check
        %p849 = pneg %p151
      $region58: #{pointnet_sa_msg_forward.12} parent=51 // pred_check_branch
        %851 = sbr.rel (%p849) target = $region60
      $region59: #{pointnet_sa_msg_forward.12} parent=51 // pred_region
        %p852 = scmp.lt.s32.totalorder %s23, 1
        %s853 = scalar_select %p852, %s23, 1
        %s854 = smul.addr %s853, 8
        %s855 = scalar_lea.vmem %s4, %s854
      $region60: #{pointnet_sa_msg_forward.12} parent=51 // pred_fallthru
        _
      // Predicated region
      $region61: #{pointnet_sa_msg_forward.12} parent=51 // pred_check
        %p856 = pneg %p177
      $region62: #{pointnet_sa_msg_forward.12} parent=51 // pred_check_branch
        %858 = sbr.rel (%p856) target = $region64
      $region63: #{pointnet_sa_msg_forward.12} parent=51 // pred_region
        %p859 = scmp.lt.s32.totalorder %s23, 1
        %s860 = scalar_select %p859, %s23, 1
        %s861 = smul.addr %s860, 8
        %s862 = scalar_lea.vmem %s5, %s861
      $region64: #{pointnet_sa_msg_forward.12} parent=51 // pred_fallthru
        _
    $region52: #{pointnet_sa_msg_forward.12} parent=5 // pred_fallthru
      _
  $region6: #{pointnet_sa_msg_forward.12} parent=0 // loop_footer
    %s16 = sadd.s32 1, %s12
  $region7: #{pointnet_sa_msg_forward.12} parent=0 // loop_footer_branch
    %11 = sbr.rel target = $region3
  $region8: #{pointnet_sa_msg_forward.12} parent=0 // loop_exit
    _

// kernel: pointnet_sa_msg_forward.15
$region0: #{pointnet_sa_msg_forward.15}
  #allocation0 [shape = 'u32[]', space=smem, size = 0x4, offset = 0x4, fixed_abs, tag = 'smem constant byte address 0x4 - core index']
  #allocation1 [shape = 'u32[144,128]{1,0:T(1,128)}', space=vmem, size = 0x12000, scoped, tag = 'internal scratch']
  %s0 = inlined_call_operand.vmem [shape: bf16[32,16,128], index: 0, kind: input, shape index: {}]
  %s1 = inlined_call_operand.vmem [shape: f32[1,128], index: 1, kind: input, shape index: {}]
  %s2 = inlined_call_operand.vmem [shape: f32[1,128], index: 2, kind: input, shape index: {}]
  %s3 = inlined_call_operand.vmem [shape: f32[32,128], index: 3, kind: output, shape index: {}]
  %s4 = sld [smem:[#allocation0]]
  $region45: #{pointnet_sa_msg_forward.15} parent=0
    _
  %s6 = ssub.s32 1, %s4
  %s7 = scalar_select 0, %s6, %s4
  loop: start=0, step=1, limit=4
  $region2: #{pointnet_sa_msg_forward.15} parent=0 // loop_pre_header
    _
  $region3: #{pointnet_sa_msg_forward.15} parent=0 // loop_header
    %s9 = sphi 0, %s13
    %p10 = scmp.ge.s32.totalorder %s9, 4
    %s19 = sphi 0, %s21
    %s22 = sphi 0, %s19
    %s23 = sphi 0, %s22
    %s39 = sphi 0, %s23
    %s43 = sphi 0, %s43
    %s45 = sphi 0, %s43
    %s46 = sphi 0, %s45
    %s60 = sphi 0, %s46
    %s64 = sphi 0, %s64
    %s66 = sphi 0, %s64
    %s67 = sphi 0, %s66
    %s81 = sphi 0, %s67
    %s87 = sphi 0, %s89
    %s90 = sphi 0, %s87
    %s91 = sphi 0, %s90
    %s107 = sphi 0, %s91
  $region4: #{pointnet_sa_msg_forward.15} parent=0 // loop_header_branch
    %12 = sbr.rel (%p10) target = $region8
  $region5: #{pointnet_sa_msg_forward.15} parent=0 // loop_body
    %s14 = ssub.s32 %s9, 1
    %s15 = ssub.s32 %s9, 2
    %s16 = sadd.s32 %s9, 1
    %s17 = ssub.s32 %s9, %s16
    %p18 = scmp.eq.s32.totalorder %s17, 0
    %s20 = sadd.s32 %s19, 1
    %s21 = scalar_select %p18, %s19, %s20
    %p24 = pneg %p18
    %p25 = scmp.eq.s32.totalorder %s9, 1
    %p26 = por %p24, %p25
    %p27 = scmp.ne.s32.totalorder %s19, %s22
    %p28 = scmp.eq.s32.totalorder %s9, 0
    %p29 = por %p27, %p28
    %p30 = scmp.ne.s32.totalorder %s19, %s22
    %p31 = scmp.eq.s32.totalorder %s14, 1
    %p32 = por %p30, %p31
    %p33 = scmp.ne.s32.totalorder %s22, %s23
    %p34 = scmp.eq.s32.totalorder %s14, 0
    %p35 = por %p33, %p34
    %p36 = scmp.ne.s32.totalorder %s22, %s23
    %p37 = scmp.eq.s32.totalorder %s15, 1
    %p38 = por %p36, %p37
    %p40 = scmp.ne.s32.totalorder %s23, %s39
    %p41 = scmp.eq.s32.totalorder %s15, 0
    %p42 = por %p40, %p41
    %s44 = sadd.s32 %s43, 1
    %p47 = scmp.eq.s32.totalorder %s9, 1
    %p48 = scmp.ne.s32.totalorder %s43, %s45
    %p49 = scmp.eq.s32.totalorder %s9, 0
    %p50 = por %p48, %p49
    %p51 = scmp.ne.s32.totalorder %s43, %s45
    %p52 = scmp.eq.s32.totalorder %s14, 1
    %p53 = por %p51, %p52
    %p54 = scmp.ne.s32.totalorder %s45, %s46
    %p55 = scmp.eq.s32.totalorder %s14, 0
    %p56 = por %p54, %p55
    %p57 = scmp.ne.s32.totalorder %s45, %s46
    %p58 = scmp.eq.s32.totalorder %s15, 1
    %p59 = por %p57, %p58
    %p61 = scmp.ne.s32.totalorder %s46, %s60
    %p62 = scmp.eq.s32.totalorder %s15, 0
    %p63 = por %p61, %p62
    %s65 = sadd.s32 %s64, 1
    %p68 = scmp.eq.s32.totalorder %s9, 1
    %p69 = scmp.ne.s32.totalorder %s64, %s66
    %p70 = scmp.eq.s32.totalorder %s9, 0
    %p71 = por %p69, %p70
    %p72 = scmp.ne.s32.totalorder %s64, %s66
    %p73 = scmp.eq.s32.totalorder %s14, 1
    %p74 = por %p72, %p73
    %p75 = scmp.ne.s32.totalorder %s66, %s67
    %p76 = scmp.eq.s32.totalorder %s14, 0
    %p77 = por %p75, %p76
    %p78 = scmp.ne.s32.totalorder %s66, %s67
    %p79 = scmp.eq.s32.totalorder %s15, 1
    %p80 = por %p78, %p79
    %p82 = scmp.ne.s32.totalorder %s67, %s81
    %p83 = scmp.eq.s32.totalorder %s15, 0
    %p84 = por %p82, %p83
    %s85 = ssub.s32 %s9, %s16
    %p86 = scmp.eq.s32.totalorder %s85, 0
    %s88 = sadd.s32 %s87, 1
    %s89 = scalar_select %p86, %s87, %s88
    %p92 = pneg %p86
    %p93 = scmp.eq.s32.totalorder %s9, 1
    %p94 = por %p92, %p93
    %p95 = scmp.ne.s32.totalorder %s87, %s90
    %p96 = scmp.eq.s32.totalorder %s9, 0
    %p97 = por %p95, %p96
    %p98 = scmp.ne.s32.totalorder %s87, %s90
    %p99 = scmp.eq.s32.totalorder %s14, 1
    %p100 = por %p98, %p99
    %p101 = scmp.ne.s32.totalorder %s90, %s91
    %p102 = scmp.eq.s32.totalorder %s14, 0
    %p103 = por %p101, %p102
    %p104 = scmp.ne.s32.totalorder %s90, %s91
    %p105 = scmp.eq.s32.totalorder %s15, 1
    %p106 = por %p104, %p105
    %p108 = scmp.ne.s32.totalorder %s91, %s107
    %p109 = scmp.eq.s32.totalorder %s15, 0
    %p110 = por %p108, %p109
    %p111 = scmp.le.s32.totalorder 1, %s9
    %p112 = scmp.lt.s32.totalorder %s9, 3
    %p113 = pnand %p111, %p112
    %p114 = pneg %p113
    // Predicated region
    $region9: #{pointnet_sa_msg_forward.15} parent=5 // pred_check
      _
    $region10: #{pointnet_sa_msg_forward.15} parent=5 // pred_check_branch
      %116 = sbr.rel (%p113) target = $region12
    $region11: #{pointnet_sa_msg_forward.15} parent=5 // pred_region
      %s117 = ssub.s32 %s9, 1
      // Predicated region
      $region13: #{pointnet_sa_msg_forward.15} parent=11 // pred_check
        %p118 = pneg %p56
      $region14: #{pointnet_sa_msg_forward.15} parent=11 // pred_check_branch
        %120 = sbr.rel (%p118) target = $region16
      $region15: #{pointnet_sa_msg_forward.15} parent=11 // pred_region
        _
      $region16: #{pointnet_sa_msg_forward.15} parent=11 // pred_fallthru
        _
      // Predicated region
      $region17: #{pointnet_sa_msg_forward.15} parent=11 // pred_check
        %p121 = pneg %p77
      $region18: #{pointnet_sa_msg_forward.15} parent=11 // pred_check_branch
        %123 = sbr.rel (%p121) target = $region20
      $region19: #{pointnet_sa_msg_forward.15} parent=11 // pred_region
        _
      $region20: #{pointnet_sa_msg_forward.15} parent=11 // pred_fallthru
        _
    $region12: #{pointnet_sa_msg_forward.15} parent=5 // pred_fallthru
      _
    %p124 = scmp.lt.s32.totalorder %s9, 2
    // Predicated region
    $region21: #{pointnet_sa_msg_forward.15} parent=5 // pred_check
      %p125 = pneg %p124
    $region22: #{pointnet_sa_msg_forward.15} parent=5 // pred_check_branch
      %127 = sbr.rel (%p125) target = $region24
    $region23: #{pointnet_sa_msg_forward.15} parent=5 // pred_region
      // Predicated region
      $region25: #{pointnet_sa_msg_forward.15} parent=23 // pred_check
        %p128 = pneg %p29
      $region26: #{pointnet_sa_msg_forward.15} parent=23 // pred_check_branch
        %130 = sbr.rel (%p128) target = $region28
      $region27: #{pointnet_sa_msg_forward.15} parent=23 // pred_region
        %s131 = smul.u32 16, %s9
        %p132 = scmp.lt.s32.totalorder %s131, 31
        %s133 = scalar_select %p132, %s131, 31
        %s134 = smul.addr %s133, 2
        %s135 = smul.addr %s134, 4
        %s136 = scalar_lea.vmem %s0, %s135
        %s137 = smul.u32 16, %s9
      $region28: #{pointnet_sa_msg_forward.15} parent=23 // pred_fallthru
        _
    $region24: #{pointnet_sa_msg_forward.15} parent=5 // pred_fallthru
      _
    %p138 = scmp.le.s32.totalorder 1, %s9
    %p139 = scmp.lt.s32.totalorder %s9, 3
    %p140 = pnand %p138, %p139
    %p141 = pneg %p140
    // Predicated region
    $region29: #{pointnet_sa_msg_forward.15} parent=5 // pred_check
      _
    $region30: #{pointnet_sa_msg_forward.15} parent=5 // pred_check_branch
      %143 = sbr.rel (%p140) target = $region32
    $region31: #{pointnet_sa_msg_forward.15} parent=5 // pred_region
      %s144 = ssub.s32 %s9, 1
      %s145 = smul.u32 16, %s14
      %p146 = scmp.lt.s32.totalorder %s145, 31
      %s147 = scalar_select %p146, %s145, 31
      %s148 = smul.addr %s147, 2
      %s149 = smul.addr %s148, 4
      %s150 = scalar_lea.vmem %s0, %s149
      %p151 = pneg %p35
      %p152 = pneg %p32
      %p153 = pneg %p56
      %p154 = pneg %p53
      %p155 = pneg %p77
      %p156 = pneg %p74
      %p157 = pneg %p103
      %p158 = pneg %p100
      %s159 = smul.u32 2, %s14
      %p160 = scmp.lt.s32.totalorder %s159, 3
      %s161 = scalar_select %p160, %s159, 3
      %s162 = smul.addr %s161, 8
      %s163 = scalar_lea.vmem %s3, %s162
      %s164 = smul.u32 16, %s14
      %p165 = scmp.lt.s32.totalorder %s164, 31
      %s166 = scalar_select %p165, %s164, 31
      %s167 = smul.addr %s166, 2
      %s168 = smul.addr %s167, 4
      %s169 = scalar_lea.vmem %s0, %s168
      %s170 = smul.u32 16, %s14
      %s171 = smul.u32 2, %s14
      %p172 = scmp.lt.s32.totalorder %s171, 3
      %s173 = scalar_select %p172, %s171, 3
      %s174 = smul.addr %s173, 8
      %s175 = scalar_lea.vmem %s3, %s174
      %s176 = smul.u32 2, %s14
      %v177 = vld [vmem:[%s169] sm:$0xf]
      %v178 = vld [vmem:[%s169 + $0x4] sm:$0xf]
      %v179 = vld [vmem:[%s169 + $0x8] sm:$0xf]
      %v180 = vld [vmem:[%s169 + $0xc] sm:$0xf]
      %v181 = vld [vmem:[%s169 + $0x10] sm:$0xf]
      %v182 = vld [vmem:[%s169 + $0x14] sm:$0xf]
      %v183 = vld [vmem:[%s169 + $0x18] sm:$0xf]
      %v184 = vld [vmem:[%s169 + $0x1c] sm:$0xf]
      %v185 = vld [vmem:[%s169 + $0x20] sm:$0xf]
      %v186 = vld [vmem:[%s169 + $0x24] sm:$0xf]
      %v187 = vld [vmem:[%s169 + $0x28] sm:$0xf]
      %v188 = vld [vmem:[%s169 + $0x2c] sm:$0xf]
      %v189 = vld [vmem:[%s169 + $0x30] sm:$0xf]
      %v190 = vld [vmem:[%s169 + $0x34] sm:$0xf]
      %v191 = vld [vmem:[%s169 + $0x38] sm:$0xf]
      %v192 = vld [vmem:[%s169 + $0x3c] sm:$0xf]
      %v193 = vld [vmem:[%s169 + $0x40] sm:$0xf]
      %v194 = vld [vmem:[%s169 + $0x44] sm:$0xf]
      %v195 = vld [vmem:[%s169 + $0x48] sm:$0xf]
      %v196 = vld [vmem:[%s169 + $0x4c] sm:$0xf]
      %v197 = vld [vmem:[%s169 + $0x50] sm:$0xf]
      %v198 = vld [vmem:[%s169 + $0x54] sm:$0xf]
      %v199 = vld [vmem:[%s169 + $0x58] sm:$0xf]
      %v200 = vld [vmem:[%s169 + $0x5c] sm:$0xf]
      %v201 = vld [vmem:[%s169 + $0x60] sm:$0xf]
      %v202 = vld [vmem:[%s169 + $0x64] sm:$0xf]
      %v203 = vld [vmem:[%s169 + $0x68] sm:$0xf]
      %v204 = vld [vmem:[%s169 + $0x6c] sm:$0xf]
      %v205 = vld [vmem:[%s169 + $0x70] sm:$0xf]
      %v206 = vld [vmem:[%s169 + $0x74] sm:$0xf]
      %v207 = vld [vmem:[%s169 + $0x78] sm:$0xf]
      %v208 = vld [vmem:[%s169 + $0x7c] sm:$0xf]
      %v209 = vunpack.c.l.bf16 %v177
      %v210 = vunpack.c.l.bf16 %v178
      %v211 = vunpack.c.l.bf16 %v179
      %v212 = vunpack.c.l.bf16 %v180
      %v213 = vunpack.c.l.bf16 %v181
      %v214 = vunpack.c.l.bf16 %v182
      %v215 = vunpack.c.l.bf16 %v183
      %v216 = vunpack.c.l.bf16 %v184
      %v217 = vunpack.c.l.bf16 %v185
      %v218 = vunpack.c.l.bf16 %v186
      %v219 = vunpack.c.l.bf16 %v187
      %v220 = vunpack.c.l.bf16 %v188
      %v221 = vunpack.c.l.bf16 %v189
      %v222 = vunpack.c.l.bf16 %v190
      %v223 = vunpack.c.l.bf16 %v191
      %v224 = vunpack.c.l.bf16 %v192
      %v225 = vunpack.c.l.bf16 %v193
      %v226 = vunpack.c.l.bf16 %v194
      %v227 = vunpack.c.l.bf16 %v195
      %v228 = vunpack.c.l.bf16 %v196
      %v229 = vunpack.c.l.bf16 %v197
      %v230 = vunpack.c.l.bf16 %v198
      %v231 = vunpack.c.l.bf16 %v199
      %v232 = vunpack.c.l.bf16 %v200
      %v233 = vunpack.c.l.bf16 %v201
      %v234 = vunpack.c.l.bf16 %v202
      %v235 = vunpack.c.l.bf16 %v203
      %v236 = vunpack.c.l.bf16 %v204
      %v237 = vunpack.c.l.bf16 %v205
      %v238 = vunpack.c.l.bf16 %v206
      %v239 = vunpack.c.l.bf16 %v207
      %v240 = vunpack.c.l.bf16 %v208
      %v241 = vld [vmem:[%s1] sm:$0x1]
      %v243 = vlaneseq
      %v244 = vshrl.u32 %v243, 7
      %v245 = vsub.s32 0, %v244
      %v246 = vrot.slane %v241, %v245
      %v248 = vmul.f32 %v209, %v246
      %v249 = vmul.f32 %v210, %v246
      %v250 = vmul.f32 %v211, %v246
      %v251 = vmul.f32 %v212, %v246
      %v252 = vmul.f32 %v213, %v246
      %v253 = vmul.f32 %v214, %v246
      %v254 = vmul.f32 %v215, %v246
      %v255 = vmul.f32 %v216, %v246
      %v256 = vmul.f32 %v217, %v246
      %v257 = vmul.f32 %v218, %v246
      %v258 = vmul.f32 %v219, %v246
      %v259 = vmul.f32 %v220, %v246
      %v260 = vmul.f32 %v221, %v246
      %v261 = vmul.f32 %v222, %v246
      %v262 = vmul.f32 %v223, %v246
      %v263 = vmul.f32 %v224, %v246
      %v264 = vmul.f32 %v225, %v246
      %v265 = vmul.f32 %v226, %v246
      %v266 = vmul.f32 %v227, %v246
      %v267 = vmul.f32 %v228, %v246
      %v268 = vmul.f32 %v229, %v246
      %v269 = vmul.f32 %v230, %v246
      %v270 = vmul.f32 %v231, %v246
      %v271 = vmul.f32 %v232, %v246
      %v272 = vmul.f32 %v233, %v246
      %v273 = vmul.f32 %v234, %v246
      %v274 = vmul.f32 %v235, %v246
      %v275 = vmul.f32 %v236, %v246
      %v276 = vmul.f32 %v237, %v246
      %v277 = vmul.f32 %v238, %v246
      %v278 = vmul.f32 %v239, %v246
      %v279 = vmul.f32 %v240, %v246
      %v280 = vld [vmem:[%s2] sm:$0x1]
      %v282 = vlaneseq
      %v283 = vshrl.u32 %v282, 7
      %v284 = vsub.s32 0, %v283
      %v285 = vrot.slane %v280, %v284
      %v287 = vadd.f32 %v248, %v285
      %v288 = vadd.f32 %v249, %v285
      %v289 = vadd.f32 %v250, %v285
      %v290 = vadd.f32 %v251, %v285
      %v291 = vadd.f32 %v252, %v285
      %v292 = vadd.f32 %v253, %v285
      %v293 = vadd.f32 %v254, %v285
      %v294 = vadd.f32 %v255, %v285
      %v295 = vadd.f32 %v256, %v285
      %v296 = vadd.f32 %v257, %v285
      %v297 = vadd.f32 %v258, %v285
      %v298 = vadd.f32 %v259, %v285
      %v299 = vadd.f32 %v260, %v285
      %v300 = vadd.f32 %v261, %v285
      %v301 = vadd.f32 %v262, %v285
      %v302 = vadd.f32 %v263, %v285
      %v303 = vadd.f32 %v264, %v285
      %v304 = vadd.f32 %v265, %v285
      %v305 = vadd.f32 %v266, %v285
      %v306 = vadd.f32 %v267, %v285
      %v307 = vadd.f32 %v268, %v285
      %v308 = vadd.f32 %v269, %v285
      %v309 = vadd.f32 %v270, %v285
      %v310 = vadd.f32 %v271, %v285
      %v311 = vadd.f32 %v272, %v285
      %v312 = vadd.f32 %v273, %v285
      %v313 = vadd.f32 %v274, %v285
      %v314 = vadd.f32 %v275, %v285
      %v315 = vadd.f32 %v276, %v285
      %v316 = vadd.f32 %v277, %v285
      %v317 = vadd.f32 %v278, %v285
      %v318 = vadd.f32 %v279, %v285
      %v319 = vmax.f32 %v287, 0.0
      %v320 = vmax.f32 %v288, 0.0
      %v321 = vmax.f32 %v289, 0.0
      %v322 = vmax.f32 %v290, 0.0
      %v323 = vmax.f32 %v291, 0.0
      %v324 = vmax.f32 %v292, 0.0
      %v325 = vmax.f32 %v293, 0.0
      %v326 = vmax.f32 %v294, 0.0
      %v327 = vmax.f32 %v295, 0.0
      %v328 = vmax.f32 %v296, 0.0
      %v329 = vmax.f32 %v297, 0.0
      %v330 = vmax.f32 %v298, 0.0
      %v331 = vmax.f32 %v299, 0.0
      %v332 = vmax.f32 %v300, 0.0
      %v333 = vmax.f32 %v301, 0.0
      %v334 = vmax.f32 %v302, 0.0
      %v335 = vmax.f32 %v303, 0.0
      %v336 = vmax.f32 %v304, 0.0
      %v337 = vmax.f32 %v305, 0.0
      %v338 = vmax.f32 %v306, 0.0
      %v339 = vmax.f32 %v307, 0.0
      %v340 = vmax.f32 %v308, 0.0
      %v341 = vmax.f32 %v309, 0.0
      %v342 = vmax.f32 %v310, 0.0
      %v343 = vmax.f32 %v311, 0.0
      %v344 = vmax.f32 %v312, 0.0
      %v345 = vmax.f32 %v313, 0.0
      %v346 = vmax.f32 %v314, 0.0
      %v347 = vmax.f32 %v315, 0.0
      %v348 = vmax.f32 %v316, 0.0
      %v349 = vmax.f32 %v317, 0.0
      %v350 = vmax.f32 %v318, 0.0
      %v351 = vmax.f32 %v319, %v320
      %v352 = vrot.slane %v351, 4
      %v353 = vmax.f32 %v351, %v352
      %v354 = vrot.slane %v353, 2
      %v355 = vmax.f32 %v353, %v354
      %v356 = vrot.slane %v355, 1
      %v357 = vmax.f32 %v355, %v356
      %v358 = vmax.f32 %v321, %v322
      %v359 = vrot.slane %v358, 4
      %v360 = vmax.f32 %v358, %v359
      %v361 = vrot.slane %v360, 2
      %v362 = vmax.f32 %v360, %v361
      %v363 = vrot.slane %v362, 1
      %v364 = vmax.f32 %v362, %v363
      %v365 = vmax.f32 %v323, %v324
      %v366 = vrot.slane %v365, 4
      %v367 = vmax.f32 %v365, %v366
      %v368 = vrot.slane %v367, 2
      %v369 = vmax.f32 %v367, %v368
      %v370 = vrot.slane %v369, 1
      %v371 = vmax.f32 %v369, %v370
      %v372 = vmax.f32 %v325, %v326
      %v373 = vrot.slane %v372, 4
      %v374 = vmax.f32 %v372, %v373
      %v375 = vrot.slane %v374, 2
      %v376 = vmax.f32 %v374, %v375
      %v377 = vrot.slane %v376, 1
      %v378 = vmax.f32 %v376, %v377
      %v379 = vmax.f32 %v327, %v328
      %v380 = vrot.slane %v379, 4
      %v381 = vmax.f32 %v379, %v380
      %v382 = vrot.slane %v381, 2
      %v383 = vmax.f32 %v381, %v382
      %v384 = vrot.slane %v383, 1
      %v385 = vmax.f32 %v383, %v384
      %v386 = vmax.f32 %v329, %v330
      %v387 = vrot.slane %v386, 4
      %v388 = vmax.f32 %v386, %v387
      %v389 = vrot.slane %v388, 2
      %v390 = vmax.f32 %v388, %v389
      %v391 = vrot.slane %v390, 1
      %v392 = vmax.f32 %v390, %v391
      %v393 = vmax.f32 %v331, %v332
      %v394 = vrot.slane %v393, 4
      %v395 = vmax.f32 %v393, %v394
      %v396 = vrot.slane %v395, 2
      %v397 = vmax.f32 %v395, %v396
      %v398 = vrot.slane %v397, 1
      %v399 = vmax.f32 %v397, %v398
      %v400 = vmax.f32 %v333, %v334
      %v401 = vrot.slane %v400, 4
      %v402 = vmax.f32 %v400, %v401
      %v403 = vrot.slane %v402, 2
      %v404 = vmax.f32 %v402, %v403
      %v405 = vrot.slane %v404, 1
      %v406 = vmax.f32 %v404, %v405
      %v407 = vmax.f32 %v335, %v336
      %v408 = vrot.slane %v407, 4
      %v409 = vmax.f32 %v407, %v408
      %v410 = vrot.slane %v409, 2
      %v411 = vmax.f32 %v409, %v410
      %v412 = vrot.slane %v411, 1
      %v413 = vmax.f32 %v411, %v412
      %v414 = vmax.f32 %v337, %v338
      %v415 = vrot.slane %v414, 4
      %v416 = vmax.f32 %v414, %v415
      %v417 = vrot.slane %v416, 2
      %v418 = vmax.f32 %v416, %v417
      %v419 = vrot.slane %v418, 1
      %v420 = vmax.f32 %v418, %v419
      %v421 = vmax.f32 %v339, %v340
      %v422 = vrot.slane %v421, 4
      %v423 = vmax.f32 %v421, %v422
      %v424 = vrot.slane %v423, 2
      %v425 = vmax.f32 %v423, %v424
      %v426 = vrot.slane %v425, 1
      %v427 = vmax.f32 %v425, %v426
      %v428 = vmax.f32 %v341, %v342
      %v429 = vrot.slane %v428, 4
      %v430 = vmax.f32 %v428, %v429
      %v431 = vrot.slane %v430, 2
      %v432 = vmax.f32 %v430, %v431
      %v433 = vrot.slane %v432, 1
      %v434 = vmax.f32 %v432, %v433
      %v435 = vmax.f32 %v343, %v344
      %v436 = vrot.slane %v435, 4
      %v437 = vmax.f32 %v435, %v436
      %v438 = vrot.slane %v437, 2
      %v439 = vmax.f32 %v437, %v438
      %v440 = vrot.slane %v439, 1
      %v441 = vmax.f32 %v439, %v440
      %v442 = vmax.f32 %v345, %v346
      %v443 = vrot.slane %v442, 4
      %v444 = vmax.f32 %v442, %v443
      %v445 = vrot.slane %v444, 2
      %v446 = vmax.f32 %v444, %v445
      %v447 = vrot.slane %v446, 1
      %v448 = vmax.f32 %v446, %v447
      %v449 = vmax.f32 %v347, %v348
      %v450 = vrot.slane %v449, 4
      %v451 = vmax.f32 %v449, %v450
      %v452 = vrot.slane %v451, 2
      %v453 = vmax.f32 %v451, %v452
      %v454 = vrot.slane %v453, 1
      %v455 = vmax.f32 %v453, %v454
      %v456 = vmax.f32 %v349, %v350
      %v457 = vrot.slane %v456, 4
      %v458 = vmax.f32 %v456, %v457
      %v459 = vrot.slane %v458, 2
      %v460 = vmax.f32 %v458, %v459
      %v461 = vrot.slane %v460, 1
      %v462 = vmax.f32 %v460, %v461
      %vm479 = vcmask 1041409
      %v480 = vsel %vm479, %v364, %v357
      %vm481 = vcmask 1042434
      %v482 = vsel %vm481, %v371, %v480
      %vm483 = vcmask 1043459
      %v484 = vsel %vm483, %v378, %v482
      %vm485 = vcmask 1044484
      %v486 = vsel %vm485, %v385, %v484
      %vm487 = vcmask 1045509
      %v488 = vsel %vm487, %v392, %v486
      %vm489 = vcmask 1046534
      %v490 = vsel %vm489, %v399, %v488
      %vm491 = vcmask 1047559
      %v492 = vsel %vm491, %v406, %v490
      %v493 = vsel %vm479, %v420, %v413
      %v494 = vsel %vm481, %v427, %v493
      %v495 = vsel %vm483, %v434, %v494
      %v496 = vsel %vm485, %v441, %v495
      %v497 = vsel %vm487, %v448, %v496
      %v498 = vsel %vm489, %v455, %v497
      %v499 = vsel %vm491, %v462, %v498
      %502 = vst [vmem:[%s175] sm:$0xff] %v492
      %503 = vst [vmem:[%s175 + $0x8] sm:$0xff] %v499
      %s504 = smul.u32 2, %s14
      %p505 = scmp.lt.s32.totalorder %s504, 3
      %s506 = scalar_select %p505, %s504, 3
      %s507 = smul.addr %s506, 8
      %s508 = scalar_lea.vmem %s3, %s507
      // Predicated region
      $region33: #{pointnet_sa_msg_forward.15} parent=31 // pred_check
        %p509 = pneg %p100
      $region34: #{pointnet_sa_msg_forward.15} parent=31 // pred_check_branch
        %511 = sbr.rel (%p509) target = $region36
      $region35: #{pointnet_sa_msg_forward.15} parent=31 // pred_region
        %s512 = smul.u32 2, %s14
      $region36: #{pointnet_sa_msg_forward.15} parent=31 // pred_fallthru
        _
    $region32: #{pointnet_sa_msg_forward.15} parent=5 // pred_fallthru
      _
    %p513 = scmp.le.s32.totalorder 2, %s9
    // Predicated region
    $region37: #{pointnet_sa_msg_forward.15} parent=5 // pred_check
      %p514 = pneg %p513
    $region38: #{pointnet_sa_msg_forward.15} parent=5 // pred_check_branch
      %516 = sbr.rel (%p514) target = $region40
    $region39: #{pointnet_sa_msg_forward.15} parent=5 // pred_region
      %s517 = ssub.s32 %s9, 2
      // Predicated region
      $region41: #{pointnet_sa_msg_forward.15} parent=39 // pred_check
        %p518 = pneg %p106
      $region42: #{pointnet_sa_msg_forward.15} parent=39 // pred_check_branch
        %520 = sbr.rel (%p518) target = $region44
      $region43: #{pointnet_sa_msg_forward.15} parent=39 // pred_region
        %s521 = smul.u32 2, %s15
        %p522 = scmp.lt.s32.totalorder %s521, 3
        %s523 = scalar_select %p522, %s521, 3
        %s524 = smul.addr %s523, 8
        %s525 = scalar_lea.vmem %s3, %s524
      $region44: #{pointnet_sa_msg_forward.15} parent=39 // pred_fallthru
        _
    $region40: #{pointnet_sa_msg_forward.15} parent=5 // pred_fallthru
      _
  $region6: #{pointnet_sa_msg_forward.15} parent=0 // loop_footer
    %s13 = sadd.s32 1, %s9
  $region7: #{pointnet_sa_msg_forward.15} parent=0 // loop_footer_branch
    %8 = sbr.rel target = $region3
  $region8: #{pointnet_sa_msg_forward.15} parent=0 // loop_exit
    _

</llo_original>
